<compile_context>
chip_gen: v7x
topology: tpu7x:2x2x1
jax: 0.10.0
libtpu: 0.0.40
codegen_flags: <defaults>
</compile_context>

<pallas_src>
import math

import jax
import jax.numpy as jnp
from jax.experimental import pallas as pl
from jax.experimental.pallas import tpu as pltpu

# ---------------------------------------------------------------------------
# Model hyper-parameters (small, synthetic)
# ---------------------------------------------------------------------------
B = 2            # batch
S = 8            # sequence length
D = 32           # d_model
H = 4            # num heads
HEAD_DIM = D // H
F = 64           # dim_feedforward
NUM_LAYERS = 2

BS = B * S
QKV_W = 128                 # fused q|k|v output width, zero-padded to one vreg lane-width
DOT_DTYPE = jnp.bfloat16    # MXU operand dtype (accumulation stays f32)


# ---------------------------------------------------------------------------
# Pallas kernel: full encoder stack (all layers, whole batch), no grid
# ---------------------------------------------------------------------------
def encoder_stack_kernel(src_ref, pos_ref, w3_ref, wo_ref, w1_ref, w2_ref,
                         bqkv_ref, bo_ref, b1_ref, b2_ref, out_ref):
    x = src_ref[...]                    # (BS, D) f32 residual stream
    pos = pos_ref[...]                  # (BS, D) f32 (layer-invariant)
    scale = 1.0 / math.sqrt(HEAD_DIM)

    for layer in range(NUM_LAYERS):     # fully unrolled static loop (no grid)
        w3 = w3_ref[layer]              # (2D, QKV_W) bf16  [[wq|wk|wv|0],[wq|wk|0|0]]
        wo = wo_ref[layer]              # (D, D)  bf16
        w1 = w1_ref[layer]              # (D, F)  bf16
        w2 = w2_ref[layer]              # (F, D)  bf16
        bqkv = bqkv_ref[layer]          # (1, QKV_W) f32
        bo = bo_ref[layer]              # (1, D) f32
        b1 = b1_ref[layer]              # (1, F) f32
        b2 = b2_ref[layer]              # (1, D) f32

        # --- fused Q/K/V in-projection: ONE MXU push --------------------------
        # [x | pos] @ [[wq|wk|wv],[wq|wk|0]] = [ (x+pos)wq | (x+pos)wk | x wv ]
        xp = jnp.concatenate([x, pos], axis=-1).astype(DOT_DTYPE)      # (BS, 2D)
        qkv = jnp.dot(xp, w3, preferred_element_type=jnp.float32) + bqkv  # (BS, 128)

        q3 = qkv[:, 0 * D:1 * D].reshape(B, S, D)
        k3 = qkv[:, 1 * D:2 * D].reshape(B, S, D)
        v3 = qkv[:, 2 * D:3 * D].reshape(B, S, D)

        # --- per-head attention with wo folded into the loop ------------------
        attn = jnp.zeros((BS, D), jnp.float32)
        for h in range(H):
            lo = h * HEAD_DIM
            hi = lo + HEAD_DIM
            qh = q3[:, :, lo:hi].astype(DOT_DTYPE)                      # (B, S, Dh)
            kh = k3[:, :, lo:hi].astype(DOT_DTYPE)
            vh = v3[:, :, lo:hi].astype(DOT_DTYPE)
            s = jnp.einsum("bqd,bkd->bqk", qh, kh,
                           preferred_element_type=jnp.float32) * scale  # (B, S, S)
            s = s - jnp.max(s, axis=-1, keepdims=True)
            p = jnp.exp(s)                                              # f32 softmax
            p = p * pl.reciprocal(jnp.sum(p, axis=-1, keepdims=True), approx=True)
            oh = jnp.einsum("bqk,bkd->bqd", p.astype(DOT_DTYPE), vh,
                            preferred_element_type=jnp.float32)         # (B, S, Dh)
            # accumulate head-output @ wo-slice through the MXU (no concatenate)
            attn = attn + jnp.dot(oh.reshape(BS, HEAD_DIM).astype(DOT_DTYPE),
                                  wo[lo:hi, :],
                                  preferred_element_type=jnp.float32)   # (BS, D)

        # --- output-proj bias + residual 1 (no norm: "nonorm") ----------------
        x1 = x + attn + bo

        # --- feed-forward + residual 2 ----------------------------------------
        h1 = jnp.maximum(
            jnp.dot(x1.astype(DOT_DTYPE), w1, preferred_element_type=jnp.float32) + b1,
            0.0)
        ff = jnp.dot(h1.astype(DOT_DTYPE), w2, preferred_element_type=jnp.float32) + b2
        x = x1 + ff

    out_ref[...] = x.astype(out_ref.dtype)


@jax.jit
def transformer_encoder(src, pos, packed):
    """Stack of NUM_LAYERS encoder layers (TransformerEncoder.forward, norm=None)."""
    src2 = src.reshape(BS, D)
    pos2 = pos.reshape(BS, D)
    vmem_spec = lambda: pl.BlockSpec(memory_space=pltpu.MemorySpace.VMEM)
    out = pl.pallas_call(
        encoder_stack_kernel,
        out_shape=jax.ShapeDtypeStruct((BS, D), jnp.float32),
        in_specs=[vmem_spec() for _ in range(10)],
        out_specs=vmem_spec(),
    )(src2, pos2,
      packed["w3"], packed["wo"], packed["w1"], packed["w2"],
      packed["bqkv"], packed["bo"], packed["b1"], packed["b2"])
    return out.reshape(B, S, D)


# ---------------------------------------------------------------------------
# Pure-JAX reference (for sanity checking the kernel)
# ---------------------------------------------------------------------------
def encoder_layer_ref(src, pos, p):
    qk_in = src + pos
    q = qk_in @ p["wq"] + p["bq"]
    k = qk_in @ p["wk"] + p["bk"]
    v = src @ p["wv"] + p["bv"]

    def split(x):   # (B, S, D) -> (B, H, S, HEAD_DIM)
        return x.reshape(B, S, H, HEAD_DIM).transpose(0, 2, 1, 3)

    qh, kh, vh = split(q), split(k), split(v)
    scores = jnp.einsum("bhqd,bhkd->bhqk", qh, kh) / math.sqrt(HEAD_DIM)
    probs = jax.nn.softmax(scores, axis=-1)
    attn = jnp.einsum("bhqk,bhkd->bhqd", probs, vh)
    attn = attn.transpose(0, 2, 1, 3).reshape(B, S, D)
    attn = attn @ p["wo"] + p["bo"]
    x = src + attn
    ff = jnp.maximum(x @ p["w1"] + p["b1"], 0.0) @ p["w2"] + p["b2"]
    return x + ff


def transformer_encoder_ref(src, pos, params):
    out = src
    for p in params:
        out = encoder_layer_ref(out, pos, p)
    return out


# ---------------------------------------------------------------------------
# Deterministic parameter construction + packing for the fused kernel
# ---------------------------------------------------------------------------
def make_params(key):
    params = []
    for layer in range(NUM_LAYERS):
        k = jax.random.fold_in(key, layer)
        ks = jax.random.split(k, 6)
        scale = 0.05
        params.append({
            "wq": scale * jax.random.normal(ks[0], (D, D), jnp.float32),
            "bq": jnp.zeros((1, D), jnp.float32),
            "wk": scale * jax.random.normal(ks[1], (D, D), jnp.float32),
            "bk": jnp.zeros((1, D), jnp.float32),
            "wv": scale * jax.random.normal(ks[2], (D, D), jnp.float32),
            "bv": jnp.zeros((1, D), jnp.float32),
            "wo": scale * jax.random.normal(ks[3], (D, D), jnp.float32),
            "bo": 0.01 * jnp.ones((1, D), jnp.float32),
            "w1": scale * jax.random.normal(ks[4], (D, F), jnp.float32),
            "b1": 0.01 * jnp.ones((1, F), jnp.float32),
            "w2": scale * jax.random.normal(ks[5], (F, D), jnp.float32),
            "b2": 0.01 * jnp.ones((1, D), jnp.float32),
        })
    return params


def pack_params(params):
    """Stack per-layer weights on a leading L axis; fuse wq/wk/wv into one (2D, 128)
    lane-padded matrix so [x | pos] @ w3 produces q|k|v in one MXU push."""
    w3_list, bqkv_list = [], []
    for p in params:
        top = jnp.concatenate([p["wq"], p["wk"], p["wv"]], axis=1)            # (D, 3D)
        bot = jnp.concatenate([p["wq"], p["wk"],
                               jnp.zeros((D, D), jnp.float32)], axis=1)       # (D, 3D)
        w3 = jnp.concatenate([top, bot], axis=0)                              # (2D, 3D)
        w3_list.append(jnp.pad(w3, ((0, 0), (0, QKV_W - 3 * D))))             # (2D, 128)
        bqkv = jnp.concatenate([p["bq"], p["bk"], p["bv"]], axis=1)           # (1, 3D)
        bqkv_list.append(jnp.pad(bqkv, ((0, 0), (0, QKV_W - 3 * D))))         # (1, 128)
    return {
        "w3": jnp.stack(w3_list).astype(DOT_DTYPE),                 # (L, 2D, 128) bf16
        "wo": jnp.stack([p["wo"] for p in params]).astype(DOT_DTYPE),
        "w1": jnp.stack([p["w1"] for p in params]).astype(DOT_DTYPE),
        "w2": jnp.stack([p["w2"] for p in params]).astype(DOT_DTYPE),
        "bqkv": jnp.stack(bqkv_list),                               # (L, 1, 128) f32
        "bo": jnp.stack([p["bo"] for p in params]),                 # (L, 1, D)  f32
        "b1": jnp.stack([p["b1"] for p in params]),                 # (L, 1, F)  f32
        "b2": jnp.stack([p["b2"] for p in params]),                 # (L, 1, D)  f32
    }


if __name__ == "__main__":
    key = jax.random.PRNGKey(0)
    k_src, k_pos, k_param = jax.random.split(key, 3)

    src = jax.random.normal(k_src, (B, S, D), jnp.float32)   # [B, S, D]
    pos = jax.random.normal(k_pos, (B, S, D), jnp.float32)   # positional embedding
    params = make_params(k_param)
    packed = pack_params(params)

    out = transformer_encoder(src, pos, packed)
    out = jax.block_until_ready(out)

    ref = transformer_encoder_ref(src, pos, params)
    assert out.shape == (B, S, D)
    # tolerance accounts for bf16 MXU operands + approx (EUP) softmax reciprocal
    assert jnp.allclose(out, ref, rtol=1e-2, atol=1e-2), "kernel mismatch vs reference"

    print("KERNEL_OK")
</pallas_src>

<mosaic_0001>
module attributes {stable_mosaic.version = 11 : i64} {
  func.func @encoder_stack_kernel(%arg0: memref<16x32xf32, #tpu.memory_space<vmem>>, %arg1: memref<16x32xf32, #tpu.memory_space<vmem>>, %arg2: memref<2x64x128xbf16, #tpu.memory_space<vmem>>, %arg3: memref<2x32x32xbf16, #tpu.memory_space<vmem>>, %arg4: memref<2x32x64xbf16, #tpu.memory_space<vmem>>, %arg5: memref<2x64x32xbf16, #tpu.memory_space<vmem>>, %arg6: memref<2x1x128xf32, #tpu.memory_space<vmem>>, %arg7: memref<2x1x32xf32, #tpu.memory_space<vmem>>, %arg8: memref<2x1x64xf32, #tpu.memory_space<vmem>>, %arg9: memref<2x1x32xf32, #tpu.memory_space<vmem>>, %arg10: memref<16x32xf32, #tpu.memory_space<vmem>>) attributes {dimension_semantics = [], scalar_prefetch = 0 : i64, scratch_operands = 0 : i64, tpu.core_type = #tpu.core_type<tc>} {
    %c0 = arith.constant 0 : index
    %c0_0 = arith.constant 0 : index
    %0 = vector.load %arg0[%c0, %c0_0] : memref<16x32xf32, #tpu.memory_space<vmem>>, vector<16x32xf32>
    %c0_1 = arith.constant 0 : index
    %c0_2 = arith.constant 0 : index
    %1 = vector.load %arg1[%c0_1, %c0_2] : memref<16x32xf32, #tpu.memory_space<vmem>>, vector<16x32xf32>
    %c0_3 = arith.constant 0 : index
    %c0_4 = arith.constant 0 : index
    %c0_5 = arith.constant 0 : index
    %2 = vector.load %arg2[%c0_3, %c0_4, %c0_5] : memref<2x64x128xbf16, #tpu.memory_space<vmem>>, vector<1x64x128xbf16>
    %3 = vector.shape_cast %2 : vector<1x64x128xbf16> to vector<64x128xbf16>
    %c0_6 = arith.constant 0 : index
    %c0_7 = arith.constant 0 : index
    %c0_8 = arith.constant 0 : index
    %4 = vector.load %arg3[%c0_6, %c0_7, %c0_8] : memref<2x32x32xbf16, #tpu.memory_space<vmem>>, vector<1x32x32xbf16>
    %5 = vector.shape_cast %4 : vector<1x32x32xbf16> to vector<32x32xbf16>
    %c0_9 = arith.constant 0 : index
    %c0_10 = arith.constant 0 : index
    %c0_11 = arith.constant 0 : index
    %6 = vector.load %arg4[%c0_9, %c0_10, %c0_11] : memref<2x32x64xbf16, #tpu.memory_space<vmem>>, vector<1x32x64xbf16>
    %7 = vector.shape_cast %6 : vector<1x32x64xbf16> to vector<32x64xbf16>
    %c0_12 = arith.constant 0 : index
    %c0_13 = arith.constant 0 : index
    %c0_14 = arith.constant 0 : index
    %8 = vector.load %arg5[%c0_12, %c0_13, %c0_14] : memref<2x64x32xbf16, #tpu.memory_space<vmem>>, vector<1x64x32xbf16>
    %9 = vector.shape_cast %8 : vector<1x64x32xbf16> to vector<64x32xbf16>
    %c0_15 = arith.constant 0 : index
    %c0_16 = arith.constant 0 : index
    %c0_17 = arith.constant 0 : index
    %10 = vector.load %arg6[%c0_15, %c0_16, %c0_17] : memref<2x1x128xf32, #tpu.memory_space<vmem>>, vector<1x1x128xf32>
    %11 = vector.shape_cast %10 : vector<1x1x128xf32> to vector<1x128xf32>
    %c0_18 = arith.constant 0 : index
    %c0_19 = arith.constant 0 : index
    %c0_20 = arith.constant 0 : index
    %12 = vector.load %arg7[%c0_18, %c0_19, %c0_20] : memref<2x1x32xf32, #tpu.memory_space<vmem>>, vector<1x1x32xf32>
    %13 = vector.shape_cast %12 : vector<1x1x32xf32> to vector<1x32xf32>
    %c0_21 = arith.constant 0 : index
    %c0_22 = arith.constant 0 : index
    %c0_23 = arith.constant 0 : index
    %14 = vector.load %arg8[%c0_21, %c0_22, %c0_23] : memref<2x1x64xf32, #tpu.memory_space<vmem>>, vector<1x1x64xf32>
    %15 = vector.shape_cast %14 : vector<1x1x64xf32> to vector<1x64xf32>
    %c0_24 = arith.constant 0 : index
    %c0_25 = arith.constant 0 : index
    %c0_26 = arith.constant 0 : index
    %16 = vector.load %arg9[%c0_24, %c0_25, %c0_26] : memref<2x1x32xf32, #tpu.memory_space<vmem>>, vector<1x1x32xf32>
    %17 = vector.shape_cast %16 : vector<1x1x32xf32> to vector<1x32xf32>
    %18 = tpu.concatenate %0, %1 in 1 : vector<16x32xf32>, vector<16x32xf32> -> vector<16x64xf32>
    %19 = arith.truncf %18 : vector<16x64xf32> to vector<16x64xbf16>
    %cst = arith.constant dense<0.000000e+00> : vector<16x128xf32>
    %20 = tpu.matmul %19, %3, %cst {dimension_numbers = #tpu.dot_dimension_numbers<[1], [0], [0], [1], [0, 0, 1, 1], [], []>} : vector<16x64xbf16>, vector<64x128xbf16>, vector<16x128xf32> -> vector<16x128xf32>
    %21 = vector.broadcast %11 : vector<1x128xf32> to vector<16x128xf32>
    %22 = arith.addf %20, %21 : vector<16x128xf32>
    %23 = vector.extract_strided_slice %22 {offsets = [0, 0], sizes = [16, 32], strides = [1, 1]} : vector<16x128xf32> to vector<16x32xf32>
    %24 = vector.shape_cast %23 : vector<16x32xf32> to vector<2x8x32xf32>
    %25 = vector.extract_strided_slice %22 {offsets = [0, 32], sizes = [16, 32], strides = [1, 1]} : vector<16x128xf32> to vector<16x32xf32>
    %26 = vector.shape_cast %25 : vector<16x32xf32> to vector<2x8x32xf32>
    %27 = vector.extract_strided_slice %22 {offsets = [0, 64], sizes = [16, 32], strides = [1, 1]} : vector<16x128xf32> to vector<16x32xf32>
    %28 = vector.shape_cast %27 : vector<16x32xf32> to vector<2x8x32xf32>
    %cst_27 = arith.constant 0.000000e+00 : f32
    %29 = vector.broadcast %cst_27 : f32 to vector<16x32xf32>
    %30 = vector.extract_strided_slice %24 {offsets = [0, 0, 0], sizes = [2, 8, 8], strides = [1, 1, 1]} : vector<2x8x32xf32> to vector<2x8x8xf32>
    %31 = arith.truncf %30 : vector<2x8x8xf32> to vector<2x8x8xbf16>
    %32 = vector.extract_strided_slice %26 {offsets = [0, 0, 0], sizes = [2, 8, 8], strides = [1, 1, 1]} : vector<2x8x32xf32> to vector<2x8x8xf32>
    %33 = arith.truncf %32 : vector<2x8x8xf32> to vector<2x8x8xbf16>
    %34 = vector.extract_strided_slice %28 {offsets = [0, 0, 0], sizes = [2, 8, 8], strides = [1, 1, 1]} : vector<2x8x32xf32> to vector<2x8x8xf32>
    %35 = arith.truncf %34 : vector<2x8x8xf32> to vector<2x8x8xbf16>
    "tpu.trace_start"() <{level = 10 : i32, message = "bqd,bkd->bqk"}> : () -> ()
    %cst_28 = arith.constant dense<0.000000e+00> : vector<2x8x8xf32>
    %36 = tpu.matmul %31, %33, %cst_28 {dimension_numbers = #tpu.dot_dimension_numbers<[2], [2], [1], [1], [0, 0, 0, 1, 1, 1], [0], [0]>} : vector<2x8x8xbf16>, vector<2x8x8xbf16>, vector<2x8x8xf32> -> vector<2x8x8xf32>
    "tpu.trace_stop"() : () -> ()
    %cst_29 = arith.constant 0.353553385 : f32
    %37 = vector.broadcast %cst_29 : f32 to vector<2x8x8xf32>
    %38 = arith.mulf %36, %37 : vector<2x8x8xf32>
    %cst_30 = arith.constant dense<0xFF800000> : vector<2x8xf32>
    %39 = vector.multi_reduction <maximumf>, %38, %cst_30 [2] : vector<2x8x8xf32> to vector<2x8xf32>
    %40 = vector.shape_cast %39 : vector<2x8xf32> to vector<2x8x1xf32>
    %41 = vector.broadcast %40 : vector<2x8x1xf32> to vector<2x8x8xf32>
    %42 = arith.subf %38, %41 : vector<2x8x8xf32>
    %43 = math.exp %42 : vector<2x8x8xf32>
    %cst_31 = arith.constant dense<0.000000e+00> : vector<2x8xf32>
    %44 = vector.multi_reduction <add>, %43, %cst_31 [2] : vector<2x8x8xf32> to vector<2x8xf32>
    %45 = vector.shape_cast %44 : vector<2x8xf32> to vector<2x8x1xf32>
    %46 = tpu.reciprocal %45 {approx = true} : vector<2x8x1xf32> -> vector<2x8x1xf32>
    %47 = vector.broadcast %46 : vector<2x8x1xf32> to vector<2x8x8xf32>
    %48 = arith.mulf %43, %47 : vector<2x8x8xf32>
    %49 = arith.truncf %48 : vector<2x8x8xf32> to vector<2x8x8xbf16>
    "tpu.trace_start"() <{level = 10 : i32, message = "bqk,bkd->bqd"}> : () -> ()
    %cst_32 = arith.constant dense<0.000000e+00> : vector<2x8x8xf32>
    %50 = tpu.matmul %49, %35, %cst_32 {dimension_numbers = #tpu.dot_dimension_numbers<[2], [1], [1], [2], [0, 0, 0, 1, 1, 2], [0], [0]>} : vector<2x8x8xbf16>, vector<2x8x8xbf16>, vector<2x8x8xf32> -> vector<2x8x8xf32>
    "tpu.trace_stop"() : () -> ()
    %51 = vector.shape_cast %50 : vector<2x8x8xf32> to vector<16x8xf32>
    %52 = arith.truncf %51 : vector<16x8xf32> to vector<16x8xbf16>
    %53 = vector.extract_strided_slice %5 {offsets = [0, 0], sizes = [8, 32], strides = [1, 1]} : vector<32x32xbf16> to vector<8x32xbf16>
    %cst_33 = arith.constant dense<0.000000e+00> : vector<16x32xf32>
    %54 = tpu.matmul %52, %53, %cst_33 {dimension_numbers = #tpu.dot_dimension_numbers<[1], [0], [0], [1], [0, 0, 1, 1], [], []>} : vector<16x8xbf16>, vector<8x32xbf16>, vector<16x32xf32> -> vector<16x32xf32>
    %55 = arith.addf %29, %54 : vector<16x32xf32>
    %56 = vector.extract_strided_slice %24 {offsets = [0, 0, 8], sizes = [2, 8, 8], strides = [1, 1, 1]} : vector<2x8x32xf32> to vector<2x8x8xf32>
    %57 = arith.truncf %56 : vector<2x8x8xf32> to vector<2x8x8xbf16>
    %58 = vector.extract_strided_slice %26 {offsets = [0, 0, 8], sizes = [2, 8, 8], strides = [1, 1, 1]} : vector<2x8x32xf32> to vector<2x8x8xf32>
    %59 = arith.truncf %58 : vector<2x8x8xf32> to vector<2x8x8xbf16>
    %60 = vector.extract_strided_slice %28 {offsets = [0, 0, 8], sizes = [2, 8, 8], strides = [1, 1, 1]} : vector<2x8x32xf32> to vector<2x8x8xf32>
    %61 = arith.truncf %60 : vector<2x8x8xf32> to vector<2x8x8xbf16>
    "tpu.trace_start"() <{level = 10 : i32, message = "bqd,bkd->bqk"}> : () -> ()
    %cst_34 = arith.constant dense<0.000000e+00> : vector<2x8x8xf32>
    %62 = tpu.matmul %57, %59, %cst_34 {dimension_numbers = #tpu.dot_dimension_numbers<[2], [2], [1], [1], [0, 0, 0, 1, 1, 1], [0], [0]>} : vector<2x8x8xbf16>, vector<2x8x8xbf16>, vector<2x8x8xf32> -> vector<2x8x8xf32>
    "tpu.trace_stop"() : () -> ()
    %cst_35 = arith.constant 0.353553385 : f32
    %63 = vector.broadcast %cst_35 : f32 to vector<2x8x8xf32>
    %64 = arith.mulf %62, %63 : vector<2x8x8xf32>
    %cst_36 = arith.constant dense<0xFF800000> : vector<2x8xf32>
    %65 = vector.multi_reduction <maximumf>, %64, %cst_36 [2] : vector<2x8x8xf32> to vector<2x8xf32>
    %66 = vector.shape_cast %65 : vector<2x8xf32> to vector<2x8x1xf32>
    %67 = vector.broadcast %66 : vector<2x8x1xf32> to vector<2x8x8xf32>
    %68 = arith.subf %64, %67 : vector<2x8x8xf32>
    %69 = math.exp %68 : vector<2x8x8xf32>
    %cst_37 = arith.constant dense<0.000000e+00> : vector<2x8xf32>
    %70 = vector.multi_reduction <add>, %69, %cst_37 [2] : vector<2x8x8xf32> to vector<2x8xf32>
    %71 = vector.shape_cast %70 : vector<2x8xf32> to vector<2x8x1xf32>
    %72 = tpu.reciprocal %71 {approx = true} : vector<2x8x1xf32> -> vector<2x8x1xf32>
    %73 = vector.broadcast %72 : vector<2x8x1xf32> to vector<2x8x8xf32>
    %74 = arith.mulf %69, %73 : vector<2x8x8xf32>
    %75 = arith.truncf %74 : vector<2x8x8xf32> to vector<2x8x8xbf16>
    "tpu.trace_start"() <{level = 10 : i32, message = "bqk,bkd->bqd"}> : () -> ()
    %cst_38 = arith.constant dense<0.000000e+00> : vector<2x8x8xf32>
    %76 = tpu.matmul %75, %61, %cst_38 {dimension_numbers = #tpu.dot_dimension_numbers<[2], [1], [1], [2], [0, 0, 0, 1, 1, 2], [0], [0]>} : vector<2x8x8xbf16>, vector<2x8x8xbf16>, vector<2x8x8xf32> -> vector<2x8x8xf32>
    "tpu.trace_stop"() : () -> ()
    %77 = vector.shape_cast %76 : vector<2x8x8xf32> to vector<16x8xf32>
    %78 = arith.truncf %77 : vector<16x8xf32> to vector<16x8xbf16>
    %79 = vector.extract_strided_slice %5 {offsets = [8, 0], sizes = [8, 32], strides = [1, 1]} : vector<32x32xbf16> to vector<8x32xbf16>
    %cst_39 = arith.constant dense<0.000000e+00> : vector<16x32xf32>
    %80 = tpu.matmul %78, %79, %cst_39 {dimension_numbers = #tpu.dot_dimension_numbers<[1], [0], [0], [1], [0, 0, 1, 1], [], []>} : vector<16x8xbf16>, vector<8x32xbf16>, vector<16x32xf32> -> vector<16x32xf32>
    %81 = arith.addf %55, %80 : vector<16x32xf32>
    %82 = vector.extract_strided_slice %24 {offsets = [0, 0, 16], sizes = [2, 8, 8], strides = [1, 1, 1]} : vector<2x8x32xf32> to vector<2x8x8xf32>
    %83 = arith.truncf %82 : vector<2x8x8xf32> to vector<2x8x8xbf16>
    %84 = vector.extract_strided_slice %26 {offsets = [0, 0, 16], sizes = [2, 8, 8], strides = [1, 1, 1]} : vector<2x8x32xf32> to vector<2x8x8xf32>
    %85 = arith.truncf %84 : vector<2x8x8xf32> to vector<2x8x8xbf16>
    %86 = vector.extract_strided_slice %28 {offsets = [0, 0, 16], sizes = [2, 8, 8], strides = [1, 1, 1]} : vector<2x8x32xf32> to vector<2x8x8xf32>
    %87 = arith.truncf %86 : vector<2x8x8xf32> to vector<2x8x8xbf16>
    "tpu.trace_start"() <{level = 10 : i32, message = "bqd,bkd->bqk"}> : () -> ()
    %cst_40 = arith.constant dense<0.000000e+00> : vector<2x8x8xf32>
    %88 = tpu.matmul %83, %85, %cst_40 {dimension_numbers = #tpu.dot_dimension_numbers<[2], [2], [1], [1], [0, 0, 0, 1, 1, 1], [0], [0]>} : vector<2x8x8xbf16>, vector<2x8x8xbf16>, vector<2x8x8xf32> -> vector<2x8x8xf32>
    "tpu.trace_stop"() : () -> ()
    %cst_41 = arith.constant 0.353553385 : f32
    %89 = vector.broadcast %cst_41 : f32 to vector<2x8x8xf32>
    %90 = arith.mulf %88, %89 : vector<2x8x8xf32>
    %cst_42 = arith.constant dense<0xFF800000> : vector<2x8xf32>
    %91 = vector.multi_reduction <maximumf>, %90, %cst_42 [2] : vector<2x8x8xf32> to vector<2x8xf32>
    %92 = vector.shape_cast %91 : vector<2x8xf32> to vector<2x8x1xf32>
    %93 = vector.broadcast %92 : vector<2x8x1xf32> to vector<2x8x8xf32>
    %94 = arith.subf %90, %93 : vector<2x8x8xf32>
    %95 = math.exp %94 : vector<2x8x8xf32>
    %cst_43 = arith.constant dense<0.000000e+00> : vector<2x8xf32>
    %96 = vector.multi_reduction <add>, %95, %cst_43 [2] : vector<2x8x8xf32> to vector<2x8xf32>
    %97 = vector.shape_cast %96 : vector<2x8xf32> to vector<2x8x1xf32>
    %98 = tpu.reciprocal %97 {approx = true} : vector<2x8x1xf32> -> vector<2x8x1xf32>
    %99 = vector.broadcast %98 : vector<2x8x1xf32> to vector<2x8x8xf32>
    %100 = arith.mulf %95, %99 : vector<2x8x8xf32>
    %101 = arith.truncf %100 : vector<2x8x8xf32> to vector<2x8x8xbf16>
    "tpu.trace_start"() <{level = 10 : i32, message = "bqk,bkd->bqd"}> : () -> ()
    %cst_44 = arith.constant dense<0.000000e+00> : vector<2x8x8xf32>
    %102 = tpu.matmul %101, %87, %cst_44 {dimension_numbers = #tpu.dot_dimension_numbers<[2], [1], [1], [2], [0, 0, 0, 1, 1, 2], [0], [0]>} : vector<2x8x8xbf16>, vector<2x8x8xbf16>, vector<2x8x8xf32> -> vector<2x8x8xf32>
    "tpu.trace_stop"() : () -> ()
    %103 = vector.shape_cast %102 : vector<2x8x8xf32> to vector<16x8xf32>
    %104 = arith.truncf %103 : vector<16x8xf32> to vector<16x8xbf16>
    %105 = vector.extract_strided_slice %5 {offsets = [16, 0], sizes = [8, 32], strides = [1, 1]} : vector<32x32xbf16> to vector<8x32xbf16>
    %cst_45 = arith.constant dense<0.000000e+00> : vector<16x32xf32>
    %106 = tpu.matmul %104, %105, %cst_45 {dimension_numbers = #tpu.dot_dimension_numbers<[1], [0], [0], [1], [0, 0, 1, 1], [], []>} : vector<16x8xbf16>, vector<8x32xbf16>, vector<16x32xf32> -> vector<16x32xf32>
    %107 = arith.addf %81, %106 : vector<16x32xf32>
    %108 = vector.extract_strided_slice %24 {offsets = [0, 0, 24], sizes = [2, 8, 8], strides = [1, 1, 1]} : vector<2x8x32xf32> to vector<2x8x8xf32>
    %109 = arith.truncf %108 : vector<2x8x8xf32> to vector<2x8x8xbf16>
    %110 = vector.extract_strided_slice %26 {offsets = [0, 0, 24], sizes = [2, 8, 8], strides = [1, 1, 1]} : vector<2x8x32xf32> to vector<2x8x8xf32>
    %111 = arith.truncf %110 : vector<2x8x8xf32> to vector<2x8x8xbf16>
    %112 = vector.extract_strided_slice %28 {offsets = [0, 0, 24], sizes = [2, 8, 8], strides = [1, 1, 1]} : vector<2x8x32xf32> to vector<2x8x8xf32>
    %113 = arith.truncf %112 : vector<2x8x8xf32> to vector<2x8x8xbf16>
    "tpu.trace_start"() <{level = 10 : i32, message = "bqd,bkd->bqk"}> : () -> ()
    %cst_46 = arith.constant dense<0.000000e+00> : vector<2x8x8xf32>
    %114 = tpu.matmul %109, %111, %cst_46 {dimension_numbers = #tpu.dot_dimension_numbers<[2], [2], [1], [1], [0, 0, 0, 1, 1, 1], [0], [0]>} : vector<2x8x8xbf16>, vector<2x8x8xbf16>, vector<2x8x8xf32> -> vector<2x8x8xf32>
    "tpu.trace_stop"() : () -> ()
    %cst_47 = arith.constant 0.353553385 : f32
    %115 = vector.broadcast %cst_47 : f32 to vector<2x8x8xf32>
    %116 = arith.mulf %114, %115 : vector<2x8x8xf32>
    %cst_48 = arith.constant dense<0xFF800000> : vector<2x8xf32>
    %117 = vector.multi_reduction <maximumf>, %116, %cst_48 [2] : vector<2x8x8xf32> to vector<2x8xf32>
    %118 = vector.shape_cast %117 : vector<2x8xf32> to vector<2x8x1xf32>
    %119 = vector.broadcast %118 : vector<2x8x1xf32> to vector<2x8x8xf32>
    %120 = arith.subf %116, %119 : vector<2x8x8xf32>
    %121 = math.exp %120 : vector<2x8x8xf32>
    %cst_49 = arith.constant dense<0.000000e+00> : vector<2x8xf32>
    %122 = vector.multi_reduction <add>, %121, %cst_49 [2] : vector<2x8x8xf32> to vector<2x8xf32>
    %123 = vector.shape_cast %122 : vector<2x8xf32> to vector<2x8x1xf32>
    %124 = tpu.reciprocal %123 {approx = true} : vector<2x8x1xf32> -> vector<2x8x1xf32>
    %125 = vector.broadcast %124 : vector<2x8x1xf32> to vector<2x8x8xf32>
    %126 = arith.mulf %121, %125 : vector<2x8x8xf32>
    %127 = arith.truncf %126 : vector<2x8x8xf32> to vector<2x8x8xbf16>
    "tpu.trace_start"() <{level = 10 : i32, message = "bqk,bkd->bqd"}> : () -> ()
    %cst_50 = arith.constant dense<0.000000e+00> : vector<2x8x8xf32>
    %128 = tpu.matmul %127, %113, %cst_50 {dimension_numbers = #tpu.dot_dimension_numbers<[2], [1], [1], [2], [0, 0, 0, 1, 1, 2], [0], [0]>} : vector<2x8x8xbf16>, vector<2x8x8xbf16>, vector<2x8x8xf32> -> vector<2x8x8xf32>
    "tpu.trace_stop"() : () -> ()
    %129 = vector.shape_cast %128 : vector<2x8x8xf32> to vector<16x8xf32>
    %130 = arith.truncf %129 : vector<16x8xf32> to vector<16x8xbf16>
    %131 = vector.extract_strided_slice %5 {offsets = [24, 0], sizes = [8, 32], strides = [1, 1]} : vector<32x32xbf16> to vector<8x32xbf16>
    %cst_51 = arith.constant dense<0.000000e+00> : vector<16x32xf32>
    %132 = tpu.matmul %130, %131, %cst_51 {dimension_numbers = #tpu.dot_dimension_numbers<[1], [0], [0], [1], [0, 0, 1, 1], [], []>} : vector<16x8xbf16>, vector<8x32xbf16>, vector<16x32xf32> -> vector<16x32xf32>
    %133 = arith.addf %107, %132 : vector<16x32xf32>
    %134 = arith.addf %0, %133 : vector<16x32xf32>
    %135 = vector.broadcast %13 : vector<1x32xf32> to vector<16x32xf32>
    %136 = arith.addf %134, %135 : vector<16x32xf32>
    %137 = arith.truncf %136 : vector<16x32xf32> to vector<16x32xbf16>
    %cst_52 = arith.constant dense<0.000000e+00> : vector<16x64xf32>
    %138 = tpu.matmul %137, %7, %cst_52 {dimension_numbers = #tpu.dot_dimension_numbers<[1], [0], [0], [1], [0, 0, 1, 1], [], []>} : vector<16x32xbf16>, vector<32x64xbf16>, vector<16x64xf32> -> vector<16x64xf32>
    %139 = vector.broadcast %15 : vector<1x64xf32> to vector<16x64xf32>
    %140 = arith.addf %138, %139 : vector<16x64xf32>
    %cst_53 = arith.constant 0.000000e+00 : f32
    %141 = vector.broadcast %cst_53 : f32 to vector<16x64xf32>
    %142 = arith.maximumf %140, %141 : vector<16x64xf32>
    %143 = arith.truncf %142 : vector<16x64xf32> to vector<16x64xbf16>
    %cst_54 = arith.constant dense<0.000000e+00> : vector<16x32xf32>
    %144 = tpu.matmul %143, %9, %cst_54 {dimension_numbers = #tpu.dot_dimension_numbers<[1], [0], [0], [1], [0, 0, 1, 1], [], []>} : vector<16x64xbf16>, vector<64x32xbf16>, vector<16x32xf32> -> vector<16x32xf32>
    %145 = vector.broadcast %17 : vector<1x32xf32> to vector<16x32xf32>
    %146 = arith.addf %144, %145 : vector<16x32xf32>
    %147 = arith.addf %136, %146 : vector<16x32xf32>
    %c1 = arith.constant 1 : index
    %c0_55 = arith.constant 0 : index
    %c0_56 = arith.constant 0 : index
    %148 = vector.load %arg2[%c1, %c0_55, %c0_56] : memref<2x64x128xbf16, #tpu.memory_space<vmem>>, vector<1x64x128xbf16>
    %149 = vector.shape_cast %148 : vector<1x64x128xbf16> to vector<64x128xbf16>
    %c1_57 = arith.constant 1 : index
    %c0_58 = arith.constant 0 : index
    %c0_59 = arith.constant 0 : index
    %150 = vector.load %arg3[%c1_57, %c0_58, %c0_59] : memref<2x32x32xbf16, #tpu.memory_space<vmem>>, vector<1x32x32xbf16>
    %151 = vector.shape_cast %150 : vector<1x32x32xbf16> to vector<32x32xbf16>
    %c1_60 = arith.constant 1 : index
    %c0_61 = arith.constant 0 : index
    %c0_62 = arith.constant 0 : index
    %152 = vector.load %arg4[%c1_60, %c0_61, %c0_62] : memref<2x32x64xbf16, #tpu.memory_space<vmem>>, vector<1x32x64xbf16>
    %153 = vector.shape_cast %152 : vector<1x32x64xbf16> to vector<32x64xbf16>
    %c1_63 = arith.constant 1 : index
    %c0_64 = arith.constant 0 : index
    %c0_65 = arith.constant 0 : index
    %154 = vector.load %arg5[%c1_63, %c0_64, %c0_65] : memref<2x64x32xbf16, #tpu.memory_space<vmem>>, vector<1x64x32xbf16>
    %155 = vector.shape_cast %154 : vector<1x64x32xbf16> to vector<64x32xbf16>
    %c1_66 = arith.constant 1 : index
    %c0_67 = arith.constant 0 : index
    %c0_68 = arith.constant 0 : index
    %156 = vector.load %arg6[%c1_66, %c0_67, %c0_68] : memref<2x1x128xf32, #tpu.memory_space<vmem>>, vector<1x1x128xf32>
    %157 = vector.shape_cast %156 : vector<1x1x128xf32> to vector<1x128xf32>
    %c1_69 = arith.constant 1 : index
    %c0_70 = arith.constant 0 : index
    %c0_71 = arith.constant 0 : index
    %158 = vector.load %arg7[%c1_69, %c0_70, %c0_71] : memref<2x1x32xf32, #tpu.memory_space<vmem>>, vector<1x1x32xf32>
    %159 = vector.shape_cast %158 : vector<1x1x32xf32> to vector<1x32xf32>
    %c1_72 = arith.constant 1 : index
    %c0_73 = arith.constant 0 : index
    %c0_74 = arith.constant 0 : index
    %160 = vector.load %arg8[%c1_72, %c0_73, %c0_74] : memref<2x1x64xf32, #tpu.memory_space<vmem>>, vector<1x1x64xf32>
    %161 = vector.shape_cast %160 : vector<1x1x64xf32> to vector<1x64xf32>
    %c1_75 = arith.constant 1 : index
    %c0_76 = arith.constant 0 : index
    %c0_77 = arith.constant 0 : index
    %162 = vector.load %arg9[%c1_75, %c0_76, %c0_77] : memref<2x1x32xf32, #tpu.memory_space<vmem>>, vector<1x1x32xf32>
    %163 = vector.shape_cast %162 : vector<1x1x32xf32> to vector<1x32xf32>
    %164 = tpu.concatenate %147, %1 in 1 : vector<16x32xf32>, vector<16x32xf32> -> vector<16x64xf32>
    %165 = arith.truncf %164 : vector<16x64xf32> to vector<16x64xbf16>
    %cst_78 = arith.constant dense<0.000000e+00> : vector<16x128xf32>
    %166 = tpu.matmul %165, %149, %cst_78 {dimension_numbers = #tpu.dot_dimension_numbers<[1], [0], [0], [1], [0, 0, 1, 1], [], []>} : vector<16x64xbf16>, vector<64x128xbf16>, vector<16x128xf32> -> vector<16x128xf32>
    %167 = vector.broadcast %157 : vector<1x128xf32> to vector<16x128xf32>
    %168 = arith.addf %166, %167 : vector<16x128xf32>
    %169 = vector.extract_strided_slice %168 {offsets = [0, 0], sizes = [16, 32], strides = [1, 1]} : vector<16x128xf32> to vector<16x32xf32>
    %170 = vector.shape_cast %169 : vector<16x32xf32> to vector<2x8x32xf32>
    %171 = vector.extract_strided_slice %168 {offsets = [0, 32], sizes = [16, 32], strides = [1, 1]} : vector<16x128xf32> to vector<16x32xf32>
    %172 = vector.shape_cast %171 : vector<16x32xf32> to vector<2x8x32xf32>
    %173 = vector.extract_strided_slice %168 {offsets = [0, 64], sizes = [16, 32], strides = [1, 1]} : vector<16x128xf32> to vector<16x32xf32>
    %174 = vector.shape_cast %173 : vector<16x32xf32> to vector<2x8x32xf32>
    %cst_79 = arith.constant 0.000000e+00 : f32
    %175 = vector.broadcast %cst_79 : f32 to vector<16x32xf32>
    %176 = vector.extract_strided_slice %170 {offsets = [0, 0, 0], sizes = [2, 8, 8], strides = [1, 1, 1]} : vector<2x8x32xf32> to vector<2x8x8xf32>
    %177 = arith.truncf %176 : vector<2x8x8xf32> to vector<2x8x8xbf16>
    %178 = vector.extract_strided_slice %172 {offsets = [0, 0, 0], sizes = [2, 8, 8], strides = [1, 1, 1]} : vector<2x8x32xf32> to vector<2x8x8xf32>
    %179 = arith.truncf %178 : vector<2x8x8xf32> to vector<2x8x8xbf16>
    %180 = vector.extract_strided_slice %174 {offsets = [0, 0, 0], sizes = [2, 8, 8], strides = [1, 1, 1]} : vector<2x8x32xf32> to vector<2x8x8xf32>
    %181 = arith.truncf %180 : vector<2x8x8xf32> to vector<2x8x8xbf16>
    "tpu.trace_start"() <{level = 10 : i32, message = "bqd,bkd->bqk"}> : () -> ()
    %cst_80 = arith.constant dense<0.000000e+00> : vector<2x8x8xf32>
    %182 = tpu.matmul %177, %179, %cst_80 {dimension_numbers = #tpu.dot_dimension_numbers<[2], [2], [1], [1], [0, 0, 0, 1, 1, 1], [0], [0]>} : vector<2x8x8xbf16>, vector<2x8x8xbf16>, vector<2x8x8xf32> -> vector<2x8x8xf32>
    "tpu.trace_stop"() : () -> ()
    %cst_81 = arith.constant 0.353553385 : f32
    %183 = vector.broadcast %cst_81 : f32 to vector<2x8x8xf32>
    %184 = arith.mulf %182, %183 : vector<2x8x8xf32>
    %cst_82 = arith.constant dense<0xFF800000> : vector<2x8xf32>
    %185 = vector.multi_reduction <maximumf>, %184, %cst_82 [2] : vector<2x8x8xf32> to vector<2x8xf32>
    %186 = vector.shape_cast %185 : vector<2x8xf32> to vector<2x8x1xf32>
    %187 = vector.broadcast %186 : vector<2x8x1xf32> to vector<2x8x8xf32>
    %188 = arith.subf %184, %187 : vector<2x8x8xf32>
    %189 = math.exp %188 : vector<2x8x8xf32>
    %cst_83 = arith.constant dense<0.000000e+00> : vector<2x8xf32>
    %190 = vector.multi_reduction <add>, %189, %cst_83 [2] : vector<2x8x8xf32> to vector<2x8xf32>
    %191 = vector.shape_cast %190 : vector<2x8xf32> to vector<2x8x1xf32>
    %192 = tpu.reciprocal %191 {approx = true} : vector<2x8x1xf32> -> vector<2x8x1xf32>
    %193 = vector.broadcast %192 : vector<2x8x1xf32> to vector<2x8x8xf32>
    %194 = arith.mulf %189, %193 : vector<2x8x8xf32>
    %195 = arith.truncf %194 : vector<2x8x8xf32> to vector<2x8x8xbf16>
    "tpu.trace_start"() <{level = 10 : i32, message = "bqk,bkd->bqd"}> : () -> ()
    %cst_84 = arith.constant dense<0.000000e+00> : vector<2x8x8xf32>
    %196 = tpu.matmul %195, %181, %cst_84 {dimension_numbers = #tpu.dot_dimension_numbers<[2], [1], [1], [2], [0, 0, 0, 1, 1, 2], [0], [0]>} : vector<2x8x8xbf16>, vector<2x8x8xbf16>, vector<2x8x8xf32> -> vector<2x8x8xf32>
    "tpu.trace_stop"() : () -> ()
    %197 = vector.shape_cast %196 : vector<2x8x8xf32> to vector<16x8xf32>
    %198 = arith.truncf %197 : vector<16x8xf32> to vector<16x8xbf16>
    %199 = vector.extract_strided_slice %151 {offsets = [0, 0], sizes = [8, 32], strides = [1, 1]} : vector<32x32xbf16> to vector<8x32xbf16>
    %cst_85 = arith.constant dense<0.000000e+00> : vector<16x32xf32>
    %200 = tpu.matmul %198, %199, %cst_85 {dimension_numbers = #tpu.dot_dimension_numbers<[1], [0], [0], [1], [0, 0, 1, 1], [], []>} : vector<16x8xbf16>, vector<8x32xbf16>, vector<16x32xf32> -> vector<16x32xf32>
    %201 = arith.addf %175, %200 : vector<16x32xf32>
    %202 = vector.extract_strided_slice %170 {offsets = [0, 0, 8], sizes = [2, 8, 8], strides = [1, 1, 1]} : vector<2x8x32xf32> to vector<2x8x8xf32>
    %203 = arith.truncf %202 : vector<2x8x8xf32> to vector<2x8x8xbf16>
    %204 = vector.extract_strided_slice %172 {offsets = [0, 0, 8], sizes = [2, 8, 8], strides = [1, 1, 1]} : vector<2x8x32xf32> to vector<2x8x8xf32>
    %205 = arith.truncf %204 : vector<2x8x8xf32> to vector<2x8x8xbf16>
    %206 = vector.extract_strided_slice %174 {offsets = [0, 0, 8], sizes = [2, 8, 8], strides = [1, 1, 1]} : vector<2x8x32xf32> to vector<2x8x8xf32>
    %207 = arith.truncf %206 : vector<2x8x8xf32> to vector<2x8x8xbf16>
    "tpu.trace_start"() <{level = 10 : i32, message = "bqd,bkd->bqk"}> : () -> ()
    %cst_86 = arith.constant dense<0.000000e+00> : vector<2x8x8xf32>
    %208 = tpu.matmul %203, %205, %cst_86 {dimension_numbers = #tpu.dot_dimension_numbers<[2], [2], [1], [1], [0, 0, 0, 1, 1, 1], [0], [0]>} : vector<2x8x8xbf16>, vector<2x8x8xbf16>, vector<2x8x8xf32> -> vector<2x8x8xf32>
    "tpu.trace_stop"() : () -> ()
    %cst_87 = arith.constant 0.353553385 : f32
    %209 = vector.broadcast %cst_87 : f32 to vector<2x8x8xf32>
    %210 = arith.mulf %208, %209 : vector<2x8x8xf32>
    %cst_88 = arith.constant dense<0xFF800000> : vector<2x8xf32>
    %211 = vector.multi_reduction <maximumf>, %210, %cst_88 [2] : vector<2x8x8xf32> to vector<2x8xf32>
    %212 = vector.shape_cast %211 : vector<2x8xf32> to vector<2x8x1xf32>
    %213 = vector.broadcast %212 : vector<2x8x1xf32> to vector<2x8x8xf32>
    %214 = arith.subf %210, %213 : vector<2x8x8xf32>
    %215 = math.exp %214 : vector<2x8x8xf32>
    %cst_89 = arith.constant dense<0.000000e+00> : vector<2x8xf32>
    %216 = vector.multi_reduction <add>, %215, %cst_89 [2] : vector<2x8x8xf32> to vector<2x8xf32>
    %217 = vector.shape_cast %216 : vector<2x8xf32> to vector<2x8x1xf32>
    %218 = tpu.reciprocal %217 {approx = true} : vector<2x8x1xf32> -> vector<2x8x1xf32>
    %219 = vector.broadcast %218 : vector<2x8x1xf32> to vector<2x8x8xf32>
    %220 = arith.mulf %215, %219 : vector<2x8x8xf32>
    %221 = arith.truncf %220 : vector<2x8x8xf32> to vector<2x8x8xbf16>
    "tpu.trace_start"() <{level = 10 : i32, message = "bqk,bkd->bqd"}> : () -> ()
    %cst_90 = arith.constant dense<0.000000e+00> : vector<2x8x8xf32>
    %222 = tpu.matmul %221, %207, %cst_90 {dimension_numbers = #tpu.dot_dimension_numbers<[2], [1], [1], [2], [0, 0, 0, 1, 1, 2], [0], [0]>} : vector<2x8x8xbf16>, vector<2x8x8xbf16>, vector<2x8x8xf32> -> vector<2x8x8xf32>
    "tpu.trace_stop"() : () -> ()
    %223 = vector.shape_cast %222 : vector<2x8x8xf32> to vector<16x8xf32>
    %224 = arith.truncf %223 : vector<16x8xf32> to vector<16x8xbf16>
    %225 = vector.extract_strided_slice %151 {offsets = [8, 0], sizes = [8, 32], strides = [1, 1]} : vector<32x32xbf16> to vector<8x32xbf16>
    %cst_91 = arith.constant dense<0.000000e+00> : vector<16x32xf32>
    %226 = tpu.matmul %224, %225, %cst_91 {dimension_numbers = #tpu.dot_dimension_numbers<[1], [0], [0], [1], [0, 0, 1, 1], [], []>} : vector<16x8xbf16>, vector<8x32xbf16>, vector<16x32xf32> -> vector<16x32xf32>
    %227 = arith.addf %201, %226 : vector<16x32xf32>
    %228 = vector.extract_strided_slice %170 {offsets = [0, 0, 16], sizes = [2, 8, 8], strides = [1, 1, 1]} : vector<2x8x32xf32> to vector<2x8x8xf32>
    %229 = arith.truncf %228 : vector<2x8x8xf32> to vector<2x8x8xbf16>
    %230 = vector.extract_strided_slice %172 {offsets = [0, 0, 16], sizes = [2, 8, 8], strides = [1, 1, 1]} : vector<2x8x32xf32> to vector<2x8x8xf32>
    %231 = arith.truncf %230 : vector<2x8x8xf32> to vector<2x8x8xbf16>
    %232 = vector.extract_strided_slice %174 {offsets = [0, 0, 16], sizes = [2, 8, 8], strides = [1, 1, 1]} : vector<2x8x32xf32> to vector<2x8x8xf32>
    %233 = arith.truncf %232 : vector<2x8x8xf32> to vector<2x8x8xbf16>
    "tpu.trace_start"() <{level = 10 : i32, message = "bqd,bkd->bqk"}> : () -> ()
    %cst_92 = arith.constant dense<0.000000e+00> : vector<2x8x8xf32>
    %234 = tpu.matmul %229, %231, %cst_92 {dimension_numbers = #tpu.dot_dimension_numbers<[2], [2], [1], [1], [0, 0, 0, 1, 1, 1], [0], [0]>} : vector<2x8x8xbf16>, vector<2x8x8xbf16>, vector<2x8x8xf32> -> vector<2x8x8xf32>
    "tpu.trace_stop"() : () -> ()
    %cst_93 = arith.constant 0.353553385 : f32
    %235 = vector.broadcast %cst_93 : f32 to vector<2x8x8xf32>
    %236 = arith.mulf %234, %235 : vector<2x8x8xf32>
    %cst_94 = arith.constant dense<0xFF800000> : vector<2x8xf32>
    %237 = vector.multi_reduction <maximumf>, %236, %cst_94 [2] : vector<2x8x8xf32> to vector<2x8xf32>
    %238 = vector.shape_cast %237 : vector<2x8xf32> to vector<2x8x1xf32>
    %239 = vector.broadcast %238 : vector<2x8x1xf32> to vector<2x8x8xf32>
    %240 = arith.subf %236, %239 : vector<2x8x8xf32>
    %241 = math.exp %240 : vector<2x8x8xf32>
    %cst_95 = arith.constant dense<0.000000e+00> : vector<2x8xf32>
    %242 = vector.multi_reduction <add>, %241, %cst_95 [2] : vector<2x8x8xf32> to vector<2x8xf32>
    %243 = vector.shape_cast %242 : vector<2x8xf32> to vector<2x8x1xf32>
    %244 = tpu.reciprocal %243 {approx = true} : vector<2x8x1xf32> -> vector<2x8x1xf32>
    %245 = vector.broadcast %244 : vector<2x8x1xf32> to vector<2x8x8xf32>
    %246 = arith.mulf %241, %245 : vector<2x8x8xf32>
    %247 = arith.truncf %246 : vector<2x8x8xf32> to vector<2x8x8xbf16>
    "tpu.trace_start"() <{level = 10 : i32, message = "bqk,bkd->bqd"}> : () -> ()
    %cst_96 = arith.constant dense<0.000000e+00> : vector<2x8x8xf32>
    %248 = tpu.matmul %247, %233, %cst_96 {dimension_numbers = #tpu.dot_dimension_numbers<[2], [1], [1], [2], [0, 0, 0, 1, 1, 2], [0], [0]>} : vector<2x8x8xbf16>, vector<2x8x8xbf16>, vector<2x8x8xf32> -> vector<2x8x8xf32>
    "tpu.trace_stop"() : () -> ()
    %249 = vector.shape_cast %248 : vector<2x8x8xf32> to vector<16x8xf32>
    %250 = arith.truncf %249 : vector<16x8xf32> to vector<16x8xbf16>
    %251 = vector.extract_strided_slice %151 {offsets = [16, 0], sizes = [8, 32], strides = [1, 1]} : vector<32x32xbf16> to vector<8x32xbf16>
    %cst_97 = arith.constant dense<0.000000e+00> : vector<16x32xf32>
    %252 = tpu.matmul %250, %251, %cst_97 {dimension_numbers = #tpu.dot_dimension_numbers<[1], [0], [0], [1], [0, 0, 1, 1], [], []>} : vector<16x8xbf16>, vector<8x32xbf16>, vector<16x32xf32> -> vector<16x32xf32>
    %253 = arith.addf %227, %252 : vector<16x32xf32>
    %254 = vector.extract_strided_slice %170 {offsets = [0, 0, 24], sizes = [2, 8, 8], strides = [1, 1, 1]} : vector<2x8x32xf32> to vector<2x8x8xf32>
    %255 = arith.truncf %254 : vector<2x8x8xf32> to vector<2x8x8xbf16>
    %256 = vector.extract_strided_slice %172 {offsets = [0, 0, 24], sizes = [2, 8, 8], strides = [1, 1, 1]} : vector<2x8x32xf32> to vector<2x8x8xf32>
    %257 = arith.truncf %256 : vector<2x8x8xf32> to vector<2x8x8xbf16>
    %258 = vector.extract_strided_slice %174 {offsets = [0, 0, 24], sizes = [2, 8, 8], strides = [1, 1, 1]} : vector<2x8x32xf32> to vector<2x8x8xf32>
    %259 = arith.truncf %258 : vector<2x8x8xf32> to vector<2x8x8xbf16>
    "tpu.trace_start"() <{level = 10 : i32, message = "bqd,bkd->bqk"}> : () -> ()
    %cst_98 = arith.constant dense<0.000000e+00> : vector<2x8x8xf32>
    %260 = tpu.matmul %255, %257, %cst_98 {dimension_numbers = #tpu.dot_dimension_numbers<[2], [2], [1], [1], [0, 0, 0, 1, 1, 1], [0], [0]>} : vector<2x8x8xbf16>, vector<2x8x8xbf16>, vector<2x8x8xf32> -> vector<2x8x8xf32>
    "tpu.trace_stop"() : () -> ()
    %cst_99 = arith.constant 0.353553385 : f32
    %261 = vector.broadcast %cst_99 : f32 to vector<2x8x8xf32>
    %262 = arith.mulf %260, %261 : vector<2x8x8xf32>
    %cst_100 = arith.constant dense<0xFF800000> : vector<2x8xf32>
    %263 = vector.multi_reduction <maximumf>, %262, %cst_100 [2] : vector<2x8x8xf32> to vector<2x8xf32>
    %264 = vector.shape_cast %263 : vector<2x8xf32> to vector<2x8x1xf32>
    %265 = vector.broadcast %264 : vector<2x8x1xf32> to vector<2x8x8xf32>
    %266 = arith.subf %262, %265 : vector<2x8x8xf32>
    %267 = math.exp %266 : vector<2x8x8xf32>
    %cst_101 = arith.constant dense<0.000000e+00> : vector<2x8xf32>
    %268 = vector.multi_reduction <add>, %267, %cst_101 [2] : vector<2x8x8xf32> to vector<2x8xf32>
    %269 = vector.shape_cast %268 : vector<2x8xf32> to vector<2x8x1xf32>
    %270 = tpu.reciprocal %269 {approx = true} : vector<2x8x1xf32> -> vector<2x8x1xf32>
    %271 = vector.broadcast %270 : vector<2x8x1xf32> to vector<2x8x8xf32>
    %272 = arith.mulf %267, %271 : vector<2x8x8xf32>
    %273 = arith.truncf %272 : vector<2x8x8xf32> to vector<2x8x8xbf16>
    "tpu.trace_start"() <{level = 10 : i32, message = "bqk,bkd->bqd"}> : () -> ()
    %cst_102 = arith.constant dense<0.000000e+00> : vector<2x8x8xf32>
    %274 = tpu.matmul %273, %259, %cst_102 {dimension_numbers = #tpu.dot_dimension_numbers<[2], [1], [1], [2], [0, 0, 0, 1, 1, 2], [0], [0]>} : vector<2x8x8xbf16>, vector<2x8x8xbf16>, vector<2x8x8xf32> -> vector<2x8x8xf32>
    "tpu.trace_stop"() : () -> ()
    %275 = vector.shape_cast %274 : vector<2x8x8xf32> to vector<16x8xf32>
    %276 = arith.truncf %275 : vector<16x8xf32> to vector<16x8xbf16>
    %277 = vector.extract_strided_slice %151 {offsets = [24, 0], sizes = [8, 32], strides = [1, 1]} : vector<32x32xbf16> to vector<8x32xbf16>
    %cst_103 = arith.constant dense<0.000000e+00> : vector<16x32xf32>
    %278 = tpu.matmul %276, %277, %cst_103 {dimension_numbers = #tpu.dot_dimension_numbers<[1], [0], [0], [1], [0, 0, 1, 1], [], []>} : vector<16x8xbf16>, vector<8x32xbf16>, vector<16x32xf32> -> vector<16x32xf32>
    %279 = arith.addf %253, %278 : vector<16x32xf32>
    %280 = arith.addf %147, %279 : vector<16x32xf32>
    %281 = vector.broadcast %159 : vector<1x32xf32> to vector<16x32xf32>
    %282 = arith.addf %280, %281 : vector<16x32xf32>
    %283 = arith.truncf %282 : vector<16x32xf32> to vector<16x32xbf16>
    %cst_104 = arith.constant dense<0.000000e+00> : vector<16x64xf32>
    %284 = tpu.matmul %283, %153, %cst_104 {dimension_numbers = #tpu.dot_dimension_numbers<[1], [0], [0], [1], [0, 0, 1, 1], [], []>} : vector<16x32xbf16>, vector<32x64xbf16>, vector<16x64xf32> -> vector<16x64xf32>
    %285 = vector.broadcast %161 : vector<1x64xf32> to vector<16x64xf32>
    %286 = arith.addf %284, %285 : vector<16x64xf32>
    %cst_105 = arith.constant 0.000000e+00 : f32
    %287 = vector.broadcast %cst_105 : f32 to vector<16x64xf32>
    %288 = arith.maximumf %286, %287 : vector<16x64xf32>
    %289 = arith.truncf %288 : vector<16x64xf32> to vector<16x64xbf16>
    %cst_106 = arith.constant dense<0.000000e+00> : vector<16x32xf32>
    %290 = tpu.matmul %289, %155, %cst_106 {dimension_numbers = #tpu.dot_dimension_numbers<[1], [0], [0], [1], [0, 0, 1, 1], [], []>} : vector<16x64xbf16>, vector<64x32xbf16>, vector<16x32xf32> -> vector<16x32xf32>
    %291 = vector.broadcast %163 : vector<1x32xf32> to vector<16x32xf32>
    %292 = arith.addf %290, %291 : vector<16x32xf32>
    %293 = arith.addf %282, %292 : vector<16x32xf32>
    %c0_107 = arith.constant 0 : index
    %c0_108 = arith.constant 0 : index
    %294 = vector.load %arg10[%c0_107, %c0_108] : memref<16x32xf32, #tpu.memory_space<vmem>>, vector<16x32xf32>
    tpu.vector_store %arg10[%c0_107, %c0_108], %293 {strides = array<i32>} : memref<16x32xf32, #tpu.memory_space<vmem>>, vector<16x32xf32>,
    return
  }
}

</mosaic_0001>

<llo_original>
// kernel: transformer_encoder.1
$region0: #{transformer_encoder.1}
  #allocation0 [shape = 'u32[]', space=smem, size = 0x4, offset = 0x4, fixed_abs, tag = 'smem constant byte address 0x4 - core index']
  #allocation1 [shape = 'u32[144,128]{1,0:T(1,128)}', space=vmem, size = 0x12000, scoped, tag = 'internal scratch']
  %s0 = inlined_call_operand.hbm [shape: f32[16,32], index: 0, kind: input, shape index: {}]
  %s1 = inlined_call_operand.hbm [shape: f32[16,32], index: 1, kind: input, shape index: {}]
  %s2 = inlined_call_operand.vmem [shape: bf16[2,64,128], index: 2, kind: input, shape index: {}]
  %s3 = inlined_call_operand.vmem [shape: bf16[2,32,32], index: 3, kind: input, shape index: {}]
  %s4 = inlined_call_operand.hbm [shape: bf16[2,32,64], index: 4, kind: input, shape index: {}]
  %s5 = inlined_call_operand.vmem [shape: bf16[2,64,32], index: 5, kind: input, shape index: {}]
  %s6 = inlined_call_operand.vmem [shape: f32[2,1,128], index: 6, kind: input, shape index: {}]
  %s7 = inlined_call_operand.hbm [shape: f32[2,1,32], index: 7, kind: input, shape index: {}]
  %s8 = inlined_call_operand.hbm [shape: f32[2,1,64], index: 8, kind: input, shape index: {}]
  %s9 = inlined_call_operand.hbm [shape: f32[2,1,32], index: 9, kind: input, shape index: {}]
  %s10 = inlined_call_operand.hbm [shape: f32[16,32], index: 10, kind: output, shape index: {}]
  %s11 = sld [smem:[#allocation0]]
  $region74: #{transformer_encoder.1} parent=0
    _
  %s13 = ssub.s32 1, %s11
  %s14 = scalar_select 0, %s13, %s11
  $region1: #{transformer_encoder.1} parent=0
    #allocation2 [shape = 'u8[8192]{0}', space=vmem, size = 0x2000, scoped, tag = 'input window, operand 0, single buffered']
    #allocation3 [shape = 's32[1]{0}', space=sflag, size = 0x4, scoped, tag = 'scoped memory for transformer_encoder.1']
    #allocation4 [shape = 's32[1]{0}', space=sflag, size = 0x4, scoped, tag = 'scoped memory for transformer_encoder.1']
    #allocation5 [shape = 'u8[8192]{0}', space=vmem, size = 0x2000, scoped, tag = 'input window, operand 1, single buffered']
    #allocation6 [shape = 's32[1]{0}', space=sflag, size = 0x4, scoped, tag = 'scoped memory for transformer_encoder.1']
    #allocation7 [shape = 'u8[16384]{0}', space=vmem, size = 0x4000, scoped, tag = 'input window, operand 4, single buffered']
    #allocation8 [shape = 'u8[1024]{0}', space=vmem, size = 0x400, scoped, tag = 'input window, operand 7, single buffered']
    #allocation9 [shape = 's32[1]{0}', space=sflag, size = 0x4, scoped, tag = 'scoped memory for transformer_encoder.1']
    #allocation10 [shape = 'u8[1024]{0}', space=vmem, size = 0x400, scoped, tag = 'input window, operand 8, single buffered']
    #allocation11 [shape = 'u8[1024]{0}', space=vmem, size = 0x400, scoped, tag = 'input window, operand 9, single buffered']
    #allocation12 [shape = 's32[1]{0}', space=sflag, size = 0x4, scoped, tag = 'scoped memory for transformer_encoder.1']
    #allocation13 [shape = 'u8[8192]{0}', space=vmem, size = 0x2000, scoped, tag = 'output window, operand 0, single buffered']
    %15 = vsyncpa [#allocation3], 0
    %16 = vsyncpa [#allocation6], 0
    %17 = vsyncpa [#allocation9], 0
    %18 = vsyncpa [#allocation12], 0
    %19 = vsyncpa [#allocation4], 0
    // Predicated region
    $region2: #{transformer_encoder.1} parent=1 // pred_check
      _
    $region3: #{transformer_encoder.1} parent=1 // pred_check_branch
      %21 = sbr.rel (0) target = $region5
    $region4: #{transformer_encoder.1} parent=1 // pred_region
      %s23 = ssub.s32 256, 256
      %24 = vsyncadd [#allocation3], %s23
      %s25 = sshll.u32 [#allocation2], 4
      %s26 = int_to_ptr.vmem [resolvable:$true] %s25
      %31 = dma.hbm_to_vmem [thread:$0]  %s0, 256, %s26, [#allocation3], 128, 128, 8
    $region5: #{transformer_encoder.1} parent=1 // pred_fallthru
      _
    // Predicated region
    $region6: #{transformer_encoder.1} parent=1 // pred_check
      _
    $region7: #{transformer_encoder.1} parent=1 // pred_check_branch
      %33 = sbr.rel (0) target = $region9
    $region8: #{transformer_encoder.1} parent=1 // pred_region
      %s35 = ssub.s32 256, 256
      %36 = vsyncadd [#allocation6], %s35
      %s37 = sshll.u32 [#allocation5], 4
      %s38 = int_to_ptr.vmem [resolvable:$true] %s37
      %43 = dma.hbm_to_vmem [thread:$0]  %s1, 256, %s38, [#allocation6], 128, 128, 8
    $region9: #{transformer_encoder.1} parent=1 // pred_fallthru
      _
    // Predicated region
    $region10: #{transformer_encoder.1} parent=1 // pred_check
      _
    $region11: #{transformer_encoder.1} parent=1 // pred_check_branch
      %45 = sbr.rel (0) target = $region13
    $region12: #{transformer_encoder.1} parent=1 // pred_region
      _
    $region13: #{transformer_encoder.1} parent=1 // pred_fallthru
      _
    // Predicated region
    $region14: #{transformer_encoder.1} parent=1 // pred_check
      _
    $region15: #{transformer_encoder.1} parent=1 // pred_check_branch
      %47 = sbr.rel (0) target = $region17
    $region16: #{transformer_encoder.1} parent=1 // pred_region
      _
    $region17: #{transformer_encoder.1} parent=1 // pred_fallthru
      _
    // Predicated region
    $region18: #{transformer_encoder.1} parent=1 // pred_check
      _
    $region19: #{transformer_encoder.1} parent=1 // pred_check_branch
      %49 = sbr.rel (0) target = $region21
    $region20: #{transformer_encoder.1} parent=1 // pred_region
      %s51 = ssub.s32 512, 512
      %52 = vsyncadd [#allocation6], %s51
      %s53 = sshll.u32 [#allocation7], 4
      %s54 = int_to_ptr.vmem [resolvable:$true] %s53
      %59 = dma.hbm_to_vmem [thread:$0]  %s4, 512, %s54, [#allocation6], 64, 64, 4
    $region21: #{transformer_encoder.1} parent=1 // pred_fallthru
      _
    // Predicated region
    $region22: #{transformer_encoder.1} parent=1 // pred_check
      _
    $region23: #{transformer_encoder.1} parent=1 // pred_check_branch
      %61 = sbr.rel (0) target = $region25
    $region24: #{transformer_encoder.1} parent=1 // pred_region
      _
    $region25: #{transformer_encoder.1} parent=1 // pred_fallthru
      _
    // Predicated region
    $region26: #{transformer_encoder.1} parent=1 // pred_check
      _
    $region27: #{transformer_encoder.1} parent=1 // pred_check_branch
      %63 = sbr.rel (0) target = $region29
    $region28: #{transformer_encoder.1} parent=1 // pred_region
      _
    $region29: #{transformer_encoder.1} parent=1 // pred_fallthru
      _
    // Predicated region
    $region30: #{transformer_encoder.1} parent=1 // pred_check
      _
    $region31: #{transformer_encoder.1} parent=1 // pred_check_branch
      %65 = sbr.rel (0) target = $region33
    $region32: #{transformer_encoder.1} parent=1 // pred_region
      %s67 = ssub.s32 32, 32
      %68 = vsyncadd [#allocation9], %s67
      %s69 = sshll.u32 [#allocation8], 4
      %s70 = int_to_ptr.vmem [resolvable:$true] %s69
      %75 = dma.hbm_to_vmem [thread:$0]  %s7, 32, %s70, [#allocation9], 16, 16, 1
    $region33: #{transformer_encoder.1} parent=1 // pred_fallthru
      _
    // Predicated region
    $region34: #{transformer_encoder.1} parent=1 // pred_check
      _
    $region35: #{transformer_encoder.1} parent=1 // pred_check_branch
      %77 = sbr.rel (0) target = $region37
    $region36: #{transformer_encoder.1} parent=1 // pred_region
      %s79 = ssub.s32 32, 32
      %80 = vsyncadd [#allocation9], %s79
      %s81 = sshll.u32 [#allocation10], 4
      %s82 = int_to_ptr.vmem [resolvable:$true] %s81
      %87 = dma.hbm_to_vmem [thread:$0]  %s8, 32, %s82, [#allocation9], 16, 16, 1
    $region37: #{transformer_encoder.1} parent=1 // pred_fallthru
      _
    // Predicated region
    $region38: #{transformer_encoder.1} parent=1 // pred_check
      _
    $region39: #{transformer_encoder.1} parent=1 // pred_check_branch
      %89 = sbr.rel (0) target = $region41
    $region40: #{transformer_encoder.1} parent=1 // pred_region
      %s91 = ssub.s32 32, 32
      %92 = vsyncadd [#allocation12], %s91
      %s93 = sshll.u32 [#allocation11], 4
      %s94 = int_to_ptr.vmem [resolvable:$true] %s93
      %99 = dma.hbm_to_vmem [thread:$0]  %s9, 32, %s94, [#allocation12], 16, 16, 1
    $region41: #{transformer_encoder.1} parent=1 // pred_fallthru
      _
    // Predicated region
    $region42: #{transformer_encoder.1} parent=1 // pred_check
      _
    $region43: #{transformer_encoder.1} parent=1 // pred_check_branch
      %101 = sbr.rel (0) target = $region45
    $region44: #{transformer_encoder.1} parent=1 // pred_region
      %102 = dma.done [#allocation3], 256
    $region45: #{transformer_encoder.1} parent=1 // pred_fallthru
      _
    // Predicated region
    $region46: #{transformer_encoder.1} parent=1 // pred_check
      _
    $region47: #{transformer_encoder.1} parent=1 // pred_check_branch
      %104 = sbr.rel (0) target = $region49
    $region48: #{transformer_encoder.1} parent=1 // pred_region
      %105 = dma.done [#allocation6], 256
    $region49: #{transformer_encoder.1} parent=1 // pred_fallthru
      _
    // Predicated region
    $region50: #{transformer_encoder.1} parent=1 // pred_check
      _
    $region51: #{transformer_encoder.1} parent=1 // pred_check_branch
      %107 = sbr.rel (0) target = $region53
    $region52: #{transformer_encoder.1} parent=1 // pred_region
      %108 = dma.done [#allocation6], 512
    $region53: #{transformer_encoder.1} parent=1 // pred_fallthru
      _
    // Predicated region
    $region54: #{transformer_encoder.1} parent=1 // pred_check
      _
    $region55: #{transformer_encoder.1} parent=1 // pred_check_branch
      %110 = sbr.rel (0) target = $region57
    $region56: #{transformer_encoder.1} parent=1 // pred_region
      %111 = dma.done [#allocation9], 32
    $region57: #{transformer_encoder.1} parent=1 // pred_fallthru
      _
    // Predicated region
    $region58: #{transformer_encoder.1} parent=1 // pred_check
      _
    $region59: #{transformer_encoder.1} parent=1 // pred_check_branch
      %113 = sbr.rel (0) target = $region61
    $region60: #{transformer_encoder.1} parent=1 // pred_region
      %114 = dma.done [#allocation9], 32
    $region61: #{transformer_encoder.1} parent=1 // pred_fallthru
      _
    // Predicated region
    $region62: #{transformer_encoder.1} parent=1 // pred_check
      _
    $region63: #{transformer_encoder.1} parent=1 // pred_check_branch
      %116 = sbr.rel (0) target = $region65
    $region64: #{transformer_encoder.1} parent=1 // pred_region
      %117 = dma.done [#allocation12], 32
    $region65: #{transformer_encoder.1} parent=1 // pred_fallthru
      _
    %v119 = vld [vmem:[#allocation2] sm:$0xff]
    %v120 = vld [vmem:[#allocation2 + $0x8] sm:$0xff]
    %v121 = vld [vmem:[#allocation5] sm:$0xff]
    %v122 = vld [vmem:[#allocation5 + $0x8] sm:$0xff]
    %v123 = vld [vmem:[%s2] sm:$0xf]
    %v124 = vld [vmem:[%s2 + $0x4] sm:$0xf]
    %v125 = vld [vmem:[%s2 + $0x8] sm:$0xf]
    %v126 = vld [vmem:[%s2 + $0xc] sm:$0xf]
    %v127 = vld [vmem:[%s2 + $0x10] sm:$0xf]
    %v128 = vld [vmem:[%s2 + $0x14] sm:$0xf]
    %v129 = vld [vmem:[%s2 + $0x18] sm:$0xf]
    %v130 = vld [vmem:[%s2 + $0x1c] sm:$0xf]
    %v131 = vld [vmem:[%s3] sm:$0xf]
    %v132 = vld [vmem:[%s3 + $0x4] sm:$0xf]
    %v133 = vld [vmem:[%s3 + $0x8] sm:$0xf]
    %v134 = vld [vmem:[%s3 + $0xc] sm:$0xf]
    %v135 = vld [vmem:[#allocation7] sm:$0xf]
    %v136 = vld [vmem:[#allocation7 + $0x4] sm:$0xf]
    %v137 = vld [vmem:[#allocation7 + $0x8] sm:$0xf]
    %v138 = vld [vmem:[#allocation7 + $0xc] sm:$0xf]
    %v139 = vld [vmem:[%s5] sm:$0xf]
    %v140 = vld [vmem:[%s5 + $0x4] sm:$0xf]
    %v141 = vld [vmem:[%s5 + $0x8] sm:$0xf]
    %v142 = vld [vmem:[%s5 + $0xc] sm:$0xf]
    %v143 = vld [vmem:[%s5 + $0x10] sm:$0xf]
    %v144 = vld [vmem:[%s5 + $0x14] sm:$0xf]
    %v145 = vld [vmem:[%s5 + $0x18] sm:$0xf]
    %v146 = vld [vmem:[%s5 + $0x1c] sm:$0xf]
    %v147 = vld [vmem:[%s6] sm:$0x1]
    %v148 = vld [vmem:[#allocation8] sm:$0x1]
    %v149 = vld [vmem:[#allocation10] sm:$0x1]
    %v150 = vld [vmem:[#allocation11] sm:$0x1]
    %153 = vrot.lane.b32.xlu0 %v121, 32
    %v154 = vpop.permute.xlu0 %153
    %155 = vrot.lane.b32.xlu0 %v122, 32
    %v156 = vpop.permute.xlu0 %155
    %vm159 = vcmask 261120
    %v160 = vsel %vm159, %v119, %v154
    %v161 = vsel %vm159, %v120, %v156
    %v162 = vpack.c.bf16 %v161, %v160
    %v164 = vlaneseq
    %v165 = vshrl.u32 %v164, 7
    %v166 = vsub.s32 0, %v165
    %v167 = vrot.slane %v147, %v166
    %v177 = vunpack.c.l.b16 %v123
    %v178 = vunpack.c.l.b16 %v124
    %v179 = vunpack.c.l.b16 %v125
    %v180 = vunpack.c.l.b16 %v126
    %v181 = vunpack.c.l.b16 %v127
    %v182 = vunpack.c.l.b16 %v128
    %v183 = vunpack.c.l.b16 %v129
    %v184 = vunpack.c.l.b16 %v130
    %v185 = vpack.c.b16 %v178, %v177
    %v186 = vpack.c.b16 %v180, %v179
    %v187 = vpack.c.b16 %v182, %v181
    %v188 = vpack.c.b16 %v184, %v183
    %vm193 = vcmask 523264
    %v195 = vsel %vm193, %v162, 0
    %197 = vmatprep.subr.bf16.mxu0 0
    %198 = vmatpush1.bf16.msra.mxu0 %v185
    %199 = vmatprep.subr.bf16.mxu0 0
    %200 = vmatpush1.bf16.msra.mxu0 %v186
    %201 = vmatprep.subr.bf16.mxu0 0
    %202 = vmatpush1.bf16.msra.mxu0 %v187
    %203 = vmatprep.subr.bf16.mxu0 0
    %204 = vmatpush1.bf16.msra.mxu0 %v188
    %205 = vmatprep.subr.bf16.mxu0 0
    %206 = vmatpush1.bf16.msra.mxu0 0
    %207 = vmatprep.subr.bf16.mxu0 0
    %208 = vmatpush1.bf16.msra.mxu0 0
    %209 = vmatprep.subr.bf16.mxu0 0
    %210 = vmatpush1.bf16.msra.mxu0 0
    %211 = vmatprep.subr.bf16.mxu0 0
    %212 = vmatpush1.bf16.msra.mxu0 0
    %213 = vmatprep.subr.bf16.mxu0 0
    %214 = vmatpush1.bf16.msra.mxu0 0
    %215 = vmatprep.subr.bf16.mxu0 0
    %216 = vmatpush1.bf16.msra.mxu0 0
    %217 = vmatprep.subr.bf16.mxu0 0
    %218 = vmatpush1.bf16.msra.mxu0 0
    %219 = vmatprep.subr.bf16.mxu0 0
    %220 = vmatpush1.bf16.msra.mxu0 0
    %221 = vmatprep.subr.bf16.mxu0 0
    %222 = vmatpush1.bf16.msra.mxu0 0
    %223 = vmatprep.subr.bf16.mxu0 0
    %224 = vmatpush1.bf16.msra.mxu0 0
    %225 = vmatprep.subr.bf16.mxu0 0
    %226 = vmatpush1.bf16.msra.mxu0 0
    %227 = vmatprep.subr.bf16.mxu0 0
    %228 = vmatpush1.bf16.msra.mxu0 0
    %229 = vmatprep.mubr.bf16.mxu0 0
    %230 = vmatmul.mubr.bf16.gmra.mrb[0].mxu0 %v195
    %v231 = vpop.f32.mrb[0].mxu0
    %v232 = vadd.f32 %v167, %v231
    %v233 = vpop.f32.mrb[0].mxu0
    %v234 = vpop.f32.mrb[0].mxu0
    %v235 = vadd.f32 %v167, %v234
    %v236 = vpop.f32.mrb[0].mxu0
    %237 = vdwg.mxu0
    %v238 = vpack.c.bf16 %v232, %v232
    %v239 = vpack.c.bf16 %v235, %v235
    %241 = vrot.lane.b32.xlu0 %v238, 96
    %v242 = vpop.permute.xlu0 %241
    %vm243 = vcmask 64512
    %v245 = vsel %vm243, %v238, 0
    %v248 = vsel %vm243, %v242, 0
    %250 = vmatprep.subr.bf16.mxu0 0
    %251 = vmatpush1.bf16.xpose.msra.mxu0 %v248
    %252 = vmatprep.subr.bf16.mxu0 0
    %253 = vmatpush1.bf16.xpose.msra.mxu0 0
    %254 = vmatprep.subr.bf16.mxu0 0
    %255 = vmatpush1.bf16.xpose.msra.mxu0 0
    %256 = vmatprep.subr.bf16.mxu0 0
    %257 = vmatpush1.bf16.xpose.msra.mxu0 0
    %258 = vmatprep.subr.bf16.mxu0 0
    %259 = vmatpush1.bf16.xpose.msra.mxu0 0
    %260 = vmatprep.subr.bf16.mxu0 0
    %261 = vmatpush1.bf16.xpose.msra.mxu0 0
    %262 = vmatprep.subr.bf16.mxu0 0
    %263 = vmatpush1.bf16.xpose.msra.mxu0 0
    %264 = vmatprep.subr.bf16.mxu0 0
    %265 = vmatpush1.bf16.xpose.msra.mxu0 0
    %266 = vmatprep.subr.bf16.mxu0 0
    %267 = vmatpush1.bf16.xpose.msra.mxu0 0
    %268 = vmatprep.subr.bf16.mxu0 0
    %269 = vmatpush1.bf16.xpose.msra.mxu0 0
    %270 = vmatprep.subr.bf16.mxu0 0
    %271 = vmatpush1.bf16.xpose.msra.mxu0 0
    %272 = vmatprep.subr.bf16.mxu0 0
    %273 = vmatpush1.bf16.xpose.msra.mxu0 0
    %274 = vmatprep.subr.bf16.mxu0 0
    %275 = vmatpush1.bf16.xpose.msra.mxu0 0
    %276 = vmatprep.subr.bf16.mxu0 0
    %277 = vmatpush1.bf16.xpose.msra.mxu0 0
    %278 = vmatprep.subr.bf16.mxu0 0
    %279 = vmatpush1.bf16.xpose.msra.mxu0 0
    %280 = vmatprep.subr.bf16.mxu0 0
    %281 = vmatpush1.bf16.xpose.msra.mxu0 0
    %282 = vmatprep.mubr.bf16.mxu0 0
    %283 = vmatmul.mubr.bf16.gmra.mrb[0].mxu0 %v245
    %v284 = vpop.f32.mrb[0].mxu0
    %v285 = vadd.f32 0.0, %v284
    %v286 = vpop.f32.mrb[0].mxu0
    %v287 = vpop.f32.mrb[0].mxu0
    %v288 = vpop.f32.mrb[0].mxu0
    %289 = vdwg.mxu0
    %291 = vrot.lane.b32.xlu0 %v239, 96
    %v292 = vpop.permute.xlu0 %291
    %v294 = vsel %vm243, %v239, 0
    %v297 = vsel %vm243, %v292, 0
    %299 = vmatprep.subr.bf16.mxu0 0
    %300 = vmatpush1.bf16.xpose.msra.mxu0 %v297
    %301 = vmatprep.subr.bf16.mxu0 0
    %302 = vmatpush1.bf16.xpose.msra.mxu0 0
    %303 = vmatprep.subr.bf16.mxu0 0
    %304 = vmatpush1.bf16.xpose.msra.mxu0 0
    %305 = vmatprep.subr.bf16.mxu0 0
    %306 = vmatpush1.bf16.xpose.msra.mxu0 0
    %307 = vmatprep.subr.bf16.mxu0 0
    %308 = vmatpush1.bf16.xpose.msra.mxu0 0
    %309 = vmatprep.subr.bf16.mxu0 0
    %310 = vmatpush1.bf16.xpose.msra.mxu0 0
    %311 = vmatprep.subr.bf16.mxu0 0
    %312 = vmatpush1.bf16.xpose.msra.mxu0 0
    %313 = vmatprep.subr.bf16.mxu0 0
    %314 = vmatpush1.bf16.xpose.msra.mxu0 0
    %315 = vmatprep.subr.bf16.mxu0 0
    %316 = vmatpush1.bf16.xpose.msra.mxu0 0
    %317 = vmatprep.subr.bf16.mxu0 0
    %318 = vmatpush1.bf16.xpose.msra.mxu0 0
    %319 = vmatprep.subr.bf16.mxu0 0
    %320 = vmatpush1.bf16.xpose.msra.mxu0 0
    %321 = vmatprep.subr.bf16.mxu0 0
    %322 = vmatpush1.bf16.xpose.msra.mxu0 0
    %323 = vmatprep.subr.bf16.mxu0 0
    %324 = vmatpush1.bf16.xpose.msra.mxu0 0
    %325 = vmatprep.subr.bf16.mxu0 0
    %326 = vmatpush1.bf16.xpose.msra.mxu0 0
    %327 = vmatprep.subr.bf16.mxu0 0
    %328 = vmatpush1.bf16.xpose.msra.mxu0 0
    %329 = vmatprep.subr.bf16.mxu0 0
    %330 = vmatpush1.bf16.xpose.msra.mxu0 0
    %331 = vmatprep.mubr.bf16.mxu0 0
    %332 = vmatmul.mubr.bf16.gmra.mrb[0].mxu0 %v294
    %v333 = vpop.f32.mrb[0].mxu0
    %v334 = vadd.f32 0.0, %v333
    %v335 = vpop.f32.mrb[0].mxu0
    %v336 = vpop.f32.mrb[0].mxu0
    %v337 = vpop.f32.mrb[0].mxu0
    %338 = vdwg.mxu0
    %v339 = vmul.f32 %v285, 0.35355338
    %v340 = vmul.f32 %v334, 0.35355338
    %v341 = vsel %vm243, %v339, -inf
    %342 = vmax.xlane.f32.xlu0 %v341
    %v343 = vpop.xlane.xlu0 %342
    %v344 = vsel %vm243, %v340, -inf
    %345 = vmax.xlane.f32.xlu0 %v344
    %v346 = vpop.xlane.xlu0 %345
    %v347 = vsub.f32 %v339, %v343
    %v348 = vsub.f32 %v340, %v346
    %v349 = vmul.f32 %v347, 1.442695
    %v350 = vpow.pop %v349
    %v351 = vmul.f32 %v348, 1.442695
    %v352 = vpow.pop %v351
    %v353 = vsel %vm243, %v350, 0.0
    %354 = vadd.xlane.f32.xlu0 %v353
    %v355 = vpop.xlane.xlu0 %354
    %v356 = vsel %vm243, %v352, 0.0
    %357 = vadd.xlane.f32.xlu0 %v356
    %v358 = vpop.xlane.xlu0 %357
    %v359 = vrcp.pop %v355
    %v360 = vrcp.pop %v358
    %v361 = vmul.f32 %v350, %v359
    %v362 = vmul.f32 %v352, %v360
    %v363 = vpack.c.bf16 %v361, %v361
    %v364 = vpack.c.bf16 %v362, %v362
    %365 = vrot.lane.b32.xlu0 %v238, 64
    %v366 = vpop.permute.xlu0 %365
    %v368 = vsel %vm243, %v363, 0
    %vm370 = vcmask 1043456
    %v372 = vsel %vm370, %v366, 0
    %374 = vmatprep.subr.bf16.mxu0 0
    %375 = vmatpush1.bf16.msra.mxu0 %v372
    %376 = vmatprep.subr.bf16.mxu0 0
    %377 = vmatpush1.bf16.msra.mxu0 0
    %378 = vmatprep.subr.bf16.mxu0 0
    %379 = vmatpush1.bf16.msra.mxu0 0
    %380 = vmatprep.subr.bf16.mxu0 0
    %381 = vmatpush1.bf16.msra.mxu0 0
    %382 = vmatprep.subr.bf16.mxu0 0
    %383 = vmatpush1.bf16.msra.mxu0 0
    %384 = vmatprep.subr.bf16.mxu0 0
    %385 = vmatpush1.bf16.msra.mxu0 0
    %386 = vmatprep.subr.bf16.mxu0 0
    %387 = vmatpush1.bf16.msra.mxu0 0
    %388 = vmatprep.subr.bf16.mxu0 0
    %389 = vmatpush1.bf16.msra.mxu0 0
    %390 = vmatprep.subr.bf16.mxu0 0
    %391 = vmatpush1.bf16.msra.mxu0 0
    %392 = vmatprep.subr.bf16.mxu0 0
    %393 = vmatpush1.bf16.msra.mxu0 0
    %394 = vmatprep.subr.bf16.mxu0 0
    %395 = vmatpush1.bf16.msra.mxu0 0
    %396 = vmatprep.subr.bf16.mxu0 0
    %397 = vmatpush1.bf16.msra.mxu0 0
    %398 = vmatprep.subr.bf16.mxu0 0
    %399 = vmatpush1.bf16.msra.mxu0 0
    %400 = vmatprep.subr.bf16.mxu0 0
    %401 = vmatpush1.bf16.msra.mxu0 0
    %402 = vmatprep.subr.bf16.mxu0 0
    %403 = vmatpush1.bf16.msra.mxu0 0
    %404 = vmatprep.subr.bf16.mxu0 0
    %405 = vmatpush1.bf16.msra.mxu0 0
    %406 = vmatprep.mubr.bf16.mxu0 0
    %407 = vmatmul.mubr.bf16.gmra.mrb[0].mxu0 %v368
    %v408 = vpop.f32.mrb[0].mxu0
    %v409 = vadd.f32 0.0, %v408
    %v410 = vpop.f32.mrb[0].mxu0
    %v411 = vpop.f32.mrb[0].mxu0
    %v412 = vpop.f32.mrb[0].mxu0
    %413 = vdwg.mxu0
    %414 = vrot.lane.b32.xlu0 %v239, 64
    %v415 = vpop.permute.xlu0 %414
    %v417 = vsel %vm243, %v364, 0
    %v420 = vsel %vm370, %v415, 0
    %422 = vmatprep.subr.bf16.mxu0 0
    %423 = vmatpush1.bf16.msra.mxu0 %v420
    %424 = vmatprep.subr.bf16.mxu0 0
    %425 = vmatpush1.bf16.msra.mxu0 0
    %426 = vmatprep.subr.bf16.mxu0 0
    %427 = vmatpush1.bf16.msra.mxu0 0
    %428 = vmatprep.subr.bf16.mxu0 0
    %429 = vmatpush1.bf16.msra.mxu0 0
    %430 = vmatprep.subr.bf16.mxu0 0
    %431 = vmatpush1.bf16.msra.mxu0 0
    %432 = vmatprep.subr.bf16.mxu0 0
    %433 = vmatpush1.bf16.msra.mxu0 0
    %434 = vmatprep.subr.bf16.mxu0 0
    %435 = vmatpush1.bf16.msra.mxu0 0
    %436 = vmatprep.subr.bf16.mxu0 0
    %437 = vmatpush1.bf16.msra.mxu0 0
    %438 = vmatprep.subr.bf16.mxu0 0
    %439 = vmatpush1.bf16.msra.mxu0 0
    %440 = vmatprep.subr.bf16.mxu0 0
    %441 = vmatpush1.bf16.msra.mxu0 0
    %442 = vmatprep.subr.bf16.mxu0 0
    %443 = vmatpush1.bf16.msra.mxu0 0
    %444 = vmatprep.subr.bf16.mxu0 0
    %445 = vmatpush1.bf16.msra.mxu0 0
    %446 = vmatprep.subr.bf16.mxu0 0
    %447 = vmatpush1.bf16.msra.mxu0 0
    %448 = vmatprep.subr.bf16.mxu0 0
    %449 = vmatpush1.bf16.msra.mxu0 0
    %450 = vmatprep.subr.bf16.mxu0 0
    %451 = vmatpush1.bf16.msra.mxu0 0
    %452 = vmatprep.subr.bf16.mxu0 0
    %453 = vmatpush1.bf16.msra.mxu0 0
    %454 = vmatprep.mubr.bf16.mxu0 0
    %455 = vmatmul.mubr.bf16.gmra.mrb[0].mxu0 %v417
    %v456 = vpop.f32.mrb[0].mxu0
    %v457 = vadd.f32 0.0, %v456
    %v458 = vpop.f32.mrb[0].mxu0
    %v459 = vpop.f32.mrb[0].mxu0
    %v460 = vpop.f32.mrb[0].mxu0
    %461 = vdwg.mxu0
    %v462 = vpack.c.bf16 %v457, %v409
    %463 = vrot.lane.b32.xlu0 %v238, 120
    %v464 = vpop.permute.xlu0 %463
    %465 = vrot.lane.b32.xlu0 %v238, 88
    %v466 = vpop.permute.xlu0 %465
    %v468 = vsel %vm243, %v464, 0
    %v471 = vsel %vm243, %v466, 0
    %473 = vmatprep.subr.bf16.mxu0 0
    %474 = vmatpush1.bf16.xpose.msra.mxu0 %v471
    %475 = vmatprep.subr.bf16.mxu0 0
    %476 = vmatpush1.bf16.xpose.msra.mxu0 0
    %477 = vmatprep.subr.bf16.mxu0 0
    %478 = vmatpush1.bf16.xpose.msra.mxu0 0
    %479 = vmatprep.subr.bf16.mxu0 0
    %480 = vmatpush1.bf16.xpose.msra.mxu0 0
    %481 = vmatprep.subr.bf16.mxu0 0
    %482 = vmatpush1.bf16.xpose.msra.mxu0 0
    %483 = vmatprep.subr.bf16.mxu0 0
    %484 = vmatpush1.bf16.xpose.msra.mxu0 0
    %485 = vmatprep.subr.bf16.mxu0 0
    %486 = vmatpush1.bf16.xpose.msra.mxu0 0
    %487 = vmatprep.subr.bf16.mxu0 0
    %488 = vmatpush1.bf16.xpose.msra.mxu0 0
    %489 = vmatprep.subr.bf16.mxu0 0
    %490 = vmatpush1.bf16.xpose.msra.mxu0 0
    %491 = vmatprep.subr.bf16.mxu0 0
    %492 = vmatpush1.bf16.xpose.msra.mxu0 0
    %493 = vmatprep.subr.bf16.mxu0 0
    %494 = vmatpush1.bf16.xpose.msra.mxu0 0
    %495 = vmatprep.subr.bf16.mxu0 0
    %496 = vmatpush1.bf16.xpose.msra.mxu0 0
    %497 = vmatprep.subr.bf16.mxu0 0
    %498 = vmatpush1.bf16.xpose.msra.mxu0 0
    %499 = vmatprep.subr.bf16.mxu0 0
    %500 = vmatpush1.bf16.xpose.msra.mxu0 0
    %501 = vmatprep.subr.bf16.mxu0 0
    %502 = vmatpush1.bf16.xpose.msra.mxu0 0
    %503 = vmatprep.subr.bf16.mxu0 0
    %504 = vmatpush1.bf16.xpose.msra.mxu0 0
    %505 = vmatprep.mubr.bf16.mxu0 0
    %506 = vmatmul.mubr.bf16.gmra.mrb[0].mxu0 %v468
    %v507 = vpop.f32.mrb[0].mxu0
    %v508 = vadd.f32 0.0, %v507
    %v509 = vpop.f32.mrb[0].mxu0
    %v510 = vpop.f32.mrb[0].mxu0
    %v511 = vpop.f32.mrb[0].mxu0
    %512 = vdwg.mxu0
    %513 = vrot.lane.b32.xlu0 %v239, 120
    %v514 = vpop.permute.xlu0 %513
    %515 = vrot.lane.b32.xlu0 %v239, 88
    %v516 = vpop.permute.xlu0 %515
    %v518 = vsel %vm243, %v514, 0
    %v521 = vsel %vm243, %v516, 0
    %523 = vmatprep.subr.bf16.mxu0 0
    %524 = vmatpush1.bf16.xpose.msra.mxu0 %v521
    %525 = vmatprep.subr.bf16.mxu0 0
    %526 = vmatpush1.bf16.xpose.msra.mxu0 0
    %527 = vmatprep.subr.bf16.mxu0 0
    %528 = vmatpush1.bf16.xpose.msra.mxu0 0
    %529 = vmatprep.subr.bf16.mxu0 0
    %530 = vmatpush1.bf16.xpose.msra.mxu0 0
    %531 = vmatprep.subr.bf16.mxu0 0
    %532 = vmatpush1.bf16.xpose.msra.mxu0 0
    %533 = vmatprep.subr.bf16.mxu0 0
    %534 = vmatpush1.bf16.xpose.msra.mxu0 0
    %535 = vmatprep.subr.bf16.mxu0 0
    %536 = vmatpush1.bf16.xpose.msra.mxu0 0
    %537 = vmatprep.subr.bf16.mxu0 0
    %538 = vmatpush1.bf16.xpose.msra.mxu0 0
    %539 = vmatprep.subr.bf16.mxu0 0
    %540 = vmatpush1.bf16.xpose.msra.mxu0 0
    %541 = vmatprep.subr.bf16.mxu0 0
    %542 = vmatpush1.bf16.xpose.msra.mxu0 0
    %543 = vmatprep.subr.bf16.mxu0 0
    %544 = vmatpush1.bf16.xpose.msra.mxu0 0
    %545 = vmatprep.subr.bf16.mxu0 0
    %546 = vmatpush1.bf16.xpose.msra.mxu0 0
    %547 = vmatprep.subr.bf16.mxu0 0
    %548 = vmatpush1.bf16.xpose.msra.mxu0 0
    %549 = vmatprep.subr.bf16.mxu0 0
    %550 = vmatpush1.bf16.xpose.msra.mxu0 0
    %551 = vmatprep.subr.bf16.mxu0 0
    %552 = vmatpush1.bf16.xpose.msra.mxu0 0
    %553 = vmatprep.subr.bf16.mxu0 0
    %554 = vmatpush1.bf16.xpose.msra.mxu0 0
    %555 = vmatprep.mubr.bf16.mxu0 0
    %556 = vmatmul.mubr.bf16.gmra.mrb[0].mxu0 %v518
    %v557 = vpop.f32.mrb[0].mxu0
    %v558 = vadd.f32 0.0, %v557
    %v559 = vpop.f32.mrb[0].mxu0
    %v560 = vpop.f32.mrb[0].mxu0
    %v561 = vpop.f32.mrb[0].mxu0
    %562 = vdwg.mxu0
    %v563 = vmul.f32 %v508, 0.35355338
    %v564 = vmul.f32 %v558, 0.35355338
    %v565 = vsel %vm243, %v563, -inf
    %566 = vmax.xlane.f32.xlu0 %v565
    %v567 = vpop.xlane.xlu0 %566
    %v568 = vsel %vm243, %v564, -inf
    %569 = vmax.xlane.f32.xlu0 %v568
    %v570 = vpop.xlane.xlu0 %569
    %v571 = vsub.f32 %v563, %v567
    %v572 = vsub.f32 %v564, %v570
    %v573 = vmul.f32 %v571, 1.442695
    %v574 = vpow.pop %v573
    %v575 = vmul.f32 %v572, 1.442695
    %v576 = vpow.pop %v575
    %v577 = vsel %vm243, %v574, 0.0
    %578 = vadd.xlane.f32.xlu0 %v577
    %v579 = vpop.xlane.xlu0 %578
    %v580 = vsel %vm243, %v576, 0.0
    %581 = vadd.xlane.f32.xlu0 %v580
    %v582 = vpop.xlane.xlu0 %581
    %v583 = vrcp.pop %v579
    %v584 = vrcp.pop %v582
    %v585 = vmul.f32 %v574, %v583
    %v586 = vmul.f32 %v576, %v584
    %v587 = vpack.c.bf16 %v585, %v585
    %v588 = vpack.c.bf16 %v586, %v586
    %589 = vrot.lane.b32.xlu0 %v238, 56
    %v590 = vpop.permute.xlu0 %589
    %v592 = vsel %vm243, %v587, 0
    %v595 = vsel %vm370, %v590, 0
    %597 = vmatprep.subr.bf16.mxu0 0
    %598 = vmatpush1.bf16.msra.mxu0 %v595
    %599 = vmatprep.subr.bf16.mxu0 0
    %600 = vmatpush1.bf16.msra.mxu0 0
    %601 = vmatprep.subr.bf16.mxu0 0
    %602 = vmatpush1.bf16.msra.mxu0 0
    %603 = vmatprep.subr.bf16.mxu0 0
    %604 = vmatpush1.bf16.msra.mxu0 0
    %605 = vmatprep.subr.bf16.mxu0 0
    %606 = vmatpush1.bf16.msra.mxu0 0
    %607 = vmatprep.subr.bf16.mxu0 0
    %608 = vmatpush1.bf16.msra.mxu0 0
    %609 = vmatprep.subr.bf16.mxu0 0
    %610 = vmatpush1.bf16.msra.mxu0 0
    %611 = vmatprep.subr.bf16.mxu0 0
    %612 = vmatpush1.bf16.msra.mxu0 0
    %613 = vmatprep.subr.bf16.mxu0 0
    %614 = vmatpush1.bf16.msra.mxu0 0
    %615 = vmatprep.subr.bf16.mxu0 0
    %616 = vmatpush1.bf16.msra.mxu0 0
    %617 = vmatprep.subr.bf16.mxu0 0
    %618 = vmatpush1.bf16.msra.mxu0 0
    %619 = vmatprep.subr.bf16.mxu0 0
    %620 = vmatpush1.bf16.msra.mxu0 0
    %621 = vmatprep.subr.bf16.mxu0 0
    %622 = vmatpush1.bf16.msra.mxu0 0
    %623 = vmatprep.subr.bf16.mxu0 0
    %624 = vmatpush1.bf16.msra.mxu0 0
    %625 = vmatprep.subr.bf16.mxu0 0
    %626 = vmatpush1.bf16.msra.mxu0 0
    %627 = vmatprep.subr.bf16.mxu0 0
    %628 = vmatpush1.bf16.msra.mxu0 0
    %629 = vmatprep.mubr.bf16.mxu0 0
    %630 = vmatmul.mubr.bf16.gmra.mrb[0].mxu0 %v592
    %v631 = vpop.f32.mrb[0].mxu0
    %v632 = vadd.f32 0.0, %v631
    %v633 = vpop.f32.mrb[0].mxu0
    %v634 = vpop.f32.mrb[0].mxu0
    %v635 = vpop.f32.mrb[0].mxu0
    %636 = vdwg.mxu0
    %637 = vrot.lane.b32.xlu0 %v239, 56
    %v638 = vpop.permute.xlu0 %637
    %v640 = vsel %vm243, %v588, 0
    %v643 = vsel %vm370, %v638, 0
    %645 = vmatprep.subr.bf16.mxu0 0
    %646 = vmatpush1.bf16.msra.mxu0 %v643
    %647 = vmatprep.subr.bf16.mxu0 0
    %648 = vmatpush1.bf16.msra.mxu0 0
    %649 = vmatprep.subr.bf16.mxu0 0
    %650 = vmatpush1.bf16.msra.mxu0 0
    %651 = vmatprep.subr.bf16.mxu0 0
    %652 = vmatpush1.bf16.msra.mxu0 0
    %653 = vmatprep.subr.bf16.mxu0 0
    %654 = vmatpush1.bf16.msra.mxu0 0
    %655 = vmatprep.subr.bf16.mxu0 0
    %656 = vmatpush1.bf16.msra.mxu0 0
    %657 = vmatprep.subr.bf16.mxu0 0
    %658 = vmatpush1.bf16.msra.mxu0 0
    %659 = vmatprep.subr.bf16.mxu0 0
    %660 = vmatpush1.bf16.msra.mxu0 0
    %661 = vmatprep.subr.bf16.mxu0 0
    %662 = vmatpush1.bf16.msra.mxu0 0
    %663 = vmatprep.subr.bf16.mxu0 0
    %664 = vmatpush1.bf16.msra.mxu0 0
    %665 = vmatprep.subr.bf16.mxu0 0
    %666 = vmatpush1.bf16.msra.mxu0 0
    %667 = vmatprep.subr.bf16.mxu0 0
    %668 = vmatpush1.bf16.msra.mxu0 0
    %669 = vmatprep.subr.bf16.mxu0 0
    %670 = vmatpush1.bf16.msra.mxu0 0
    %671 = vmatprep.subr.bf16.mxu0 0
    %672 = vmatpush1.bf16.msra.mxu0 0
    %673 = vmatprep.subr.bf16.mxu0 0
    %674 = vmatpush1.bf16.msra.mxu0 0
    %675 = vmatprep.subr.bf16.mxu0 0
    %676 = vmatpush1.bf16.msra.mxu0 0
    %677 = vmatprep.mubr.bf16.mxu0 0
    %678 = vmatmul.mubr.bf16.gmra.mrb[0].mxu0 %v640
    %v679 = vpop.f32.mrb[0].mxu0
    %v680 = vadd.f32 0.0, %v679
    %v681 = vpop.f32.mrb[0].mxu0
    %v682 = vpop.f32.mrb[0].mxu0
    %v683 = vpop.f32.mrb[0].mxu0
    %684 = vdwg.mxu0
    %v685 = vpack.c.bf16 %v680, %v632
    %v687 = vsel %vm243, %v685, 0
    %v690 = vsel %vm370, %v132, 0
    %692 = vmatprep.subr.bf16.mxu0 0
    %693 = vmatpush1.bf16.msra.mxu0 %v690
    %694 = vmatprep.subr.bf16.mxu0 0
    %695 = vmatpush1.bf16.msra.mxu0 0
    %696 = vmatprep.subr.bf16.mxu0 0
    %697 = vmatpush1.bf16.msra.mxu0 0
    %698 = vmatprep.subr.bf16.mxu0 0
    %699 = vmatpush1.bf16.msra.mxu0 0
    %700 = vmatprep.subr.bf16.mxu0 0
    %701 = vmatpush1.bf16.msra.mxu0 0
    %702 = vmatprep.subr.bf16.mxu0 0
    %703 = vmatpush1.bf16.msra.mxu0 0
    %704 = vmatprep.subr.bf16.mxu0 0
    %705 = vmatpush1.bf16.msra.mxu0 0
    %706 = vmatprep.subr.bf16.mxu0 0
    %707 = vmatpush1.bf16.msra.mxu0 0
    %708 = vmatprep.subr.bf16.mxu0 0
    %709 = vmatpush1.bf16.msra.mxu0 0
    %710 = vmatprep.subr.bf16.mxu0 0
    %711 = vmatpush1.bf16.msra.mxu0 0
    %712 = vmatprep.subr.bf16.mxu0 0
    %713 = vmatpush1.bf16.msra.mxu0 0
    %714 = vmatprep.subr.bf16.mxu0 0
    %715 = vmatpush1.bf16.msra.mxu0 0
    %716 = vmatprep.subr.bf16.mxu0 0
    %717 = vmatpush1.bf16.msra.mxu0 0
    %718 = vmatprep.subr.bf16.mxu0 0
    %719 = vmatpush1.bf16.msra.mxu0 0
    %720 = vmatprep.subr.bf16.mxu0 0
    %721 = vmatpush1.bf16.msra.mxu0 0
    %722 = vmatprep.subr.bf16.mxu0 0
    %723 = vmatpush1.bf16.msra.mxu0 0
    %724 = vmatprep.mubr.bf16.mxu0 0
    %725 = vmatmul.mubr.bf16.gmra.mrb[0].mxu0 %v687
    %v726 = vpop.f32.mrb[0].mxu0
    %v727 = vadd.f32 0.0, %v726
    %v728 = vpop.f32.mrb[0].mxu0
    %v729 = vpop.f32.mrb[0].mxu0
    %v730 = vadd.f32 0.0, %v729
    %v731 = vpop.f32.mrb[0].mxu0
    %732 = vdwg.mxu0
    %v734 = vsel %vm243, %v462, 0
    %v737 = vsel %vm370, %v131, 0
    %739 = vmatprep.subr.bf16.mxu0 0
    %740 = vmatpush1.bf16.msra.mxu0 %v737
    %741 = vmatprep.subr.bf16.mxu0 0
    %742 = vmatpush1.bf16.msra.mxu0 0
    %743 = vmatprep.subr.bf16.mxu0 0
    %744 = vmatpush1.bf16.msra.mxu0 0
    %745 = vmatprep.subr.bf16.mxu0 0
    %746 = vmatpush1.bf16.msra.mxu0 0
    %747 = vmatprep.subr.bf16.mxu0 0
    %748 = vmatpush1.bf16.msra.mxu0 0
    %749 = vmatprep.subr.bf16.mxu0 0
    %750 = vmatpush1.bf16.msra.mxu0 0
    %751 = vmatprep.subr.bf16.mxu0 0
    %752 = vmatpush1.bf16.msra.mxu0 0
    %753 = vmatprep.subr.bf16.mxu0 0
    %754 = vmatpush1.bf16.msra.mxu0 0
    %755 = vmatprep.subr.bf16.mxu0 0
    %756 = vmatpush1.bf16.msra.mxu0 0
    %757 = vmatprep.subr.bf16.mxu0 0
    %758 = vmatpush1.bf16.msra.mxu0 0
    %759 = vmatprep.subr.bf16.mxu0 0
    %760 = vmatpush1.bf16.msra.mxu0 0
    %761 = vmatprep.subr.bf16.mxu0 0
    %762 = vmatpush1.bf16.msra.mxu0 0
    %763 = vmatprep.subr.bf16.mxu0 0
    %764 = vmatpush1.bf16.msra.mxu0 0
    %765 = vmatprep.subr.bf16.mxu0 0
    %766 = vmatpush1.bf16.msra.mxu0 0
    %767 = vmatprep.subr.bf16.mxu0 0
    %768 = vmatpush1.bf16.msra.mxu0 0
    %769 = vmatprep.subr.bf16.mxu0 0
    %770 = vmatpush1.bf16.msra.mxu0 0
    %771 = vmatprep.mubr.bf16.mxu0 0
    %772 = vmatmul.mubr.bf16.gmra.mrb[0].mxu0 %v734
    %v773 = vpop.f32.mrb[0].mxu0
    %v774 = vadd.f32 %v727, %v773
    %v775 = vpop.f32.mrb[0].mxu0
    %v776 = vpop.f32.mrb[0].mxu0
    %v777 = vadd.f32 %v730, %v776
    %v778 = vpop.f32.mrb[0].mxu0
    %779 = vdwg.mxu0
    %780 = vrot.lane.b32.xlu0 %v238, 112
    %v781 = vpop.permute.xlu0 %780
    %782 = vrot.lane.b32.xlu0 %v238, 80
    %v783 = vpop.permute.xlu0 %782
    %v785 = vsel %vm243, %v781, 0
    %v788 = vsel %vm243, %v783, 0
    %790 = vmatprep.subr.bf16.mxu0 0
    %791 = vmatpush1.bf16.xpose.msra.mxu0 %v788
    %792 = vmatprep.subr.bf16.mxu0 0
    %793 = vmatpush1.bf16.xpose.msra.mxu0 0
    %794 = vmatprep.subr.bf16.mxu0 0
    %795 = vmatpush1.bf16.xpose.msra.mxu0 0
    %796 = vmatprep.subr.bf16.mxu0 0
    %797 = vmatpush1.bf16.xpose.msra.mxu0 0
    %798 = vmatprep.subr.bf16.mxu0 0
    %799 = vmatpush1.bf16.xpose.msra.mxu0 0
    %800 = vmatprep.subr.bf16.mxu0 0
    %801 = vmatpush1.bf16.xpose.msra.mxu0 0
    %802 = vmatprep.subr.bf16.mxu0 0
    %803 = vmatpush1.bf16.xpose.msra.mxu0 0
    %804 = vmatprep.subr.bf16.mxu0 0
    %805 = vmatpush1.bf16.xpose.msra.mxu0 0
    %806 = vmatprep.subr.bf16.mxu0 0
    %807 = vmatpush1.bf16.xpose.msra.mxu0 0
    %808 = vmatprep.subr.bf16.mxu0 0
    %809 = vmatpush1.bf16.xpose.msra.mxu0 0
    %810 = vmatprep.subr.bf16.mxu0 0
    %811 = vmatpush1.bf16.xpose.msra.mxu0 0
    %812 = vmatprep.subr.bf16.mxu0 0
    %813 = vmatpush1.bf16.xpose.msra.mxu0 0
    %814 = vmatprep.subr.bf16.mxu0 0
    %815 = vmatpush1.bf16.xpose.msra.mxu0 0
    %816 = vmatprep.subr.bf16.mxu0 0
    %817 = vmatpush1.bf16.xpose.msra.mxu0 0
    %818 = vmatprep.subr.bf16.mxu0 0
    %819 = vmatpush1.bf16.xpose.msra.mxu0 0
    %820 = vmatprep.subr.bf16.mxu0 0
    %821 = vmatpush1.bf16.xpose.msra.mxu0 0
    %822 = vmatprep.mubr.bf16.mxu0 0
    %823 = vmatmul.mubr.bf16.gmra.mrb[0].mxu0 %v785
    %v824 = vpop.f32.mrb[0].mxu0
    %v825 = vadd.f32 0.0, %v824
    %v826 = vpop.f32.mrb[0].mxu0
    %v827 = vpop.f32.mrb[0].mxu0
    %v828 = vpop.f32.mrb[0].mxu0
    %829 = vdwg.mxu0
    %830 = vrot.lane.b32.xlu0 %v239, 112
    %v831 = vpop.permute.xlu0 %830
    %832 = vrot.lane.b32.xlu0 %v239, 80
    %v833 = vpop.permute.xlu0 %832
    %v835 = vsel %vm243, %v831, 0
    %v838 = vsel %vm243, %v833, 0
    %840 = vmatprep.subr.bf16.mxu0 0
    %841 = vmatpush1.bf16.xpose.msra.mxu0 %v838
    %842 = vmatprep.subr.bf16.mxu0 0
    %843 = vmatpush1.bf16.xpose.msra.mxu0 0
    %844 = vmatprep.subr.bf16.mxu0 0
    %845 = vmatpush1.bf16.xpose.msra.mxu0 0
    %846 = vmatprep.subr.bf16.mxu0 0
    %847 = vmatpush1.bf16.xpose.msra.mxu0 0
    %848 = vmatprep.subr.bf16.mxu0 0
    %849 = vmatpush1.bf16.xpose.msra.mxu0 0
    %850 = vmatprep.subr.bf16.mxu0 0
    %851 = vmatpush1.bf16.xpose.msra.mxu0 0
    %852 = vmatprep.subr.bf16.mxu0 0
    %853 = vmatpush1.bf16.xpose.msra.mxu0 0
    %854 = vmatprep.subr.bf16.mxu0 0
    %855 = vmatpush1.bf16.xpose.msra.mxu0 0
    %856 = vmatprep.subr.bf16.mxu0 0
    %857 = vmatpush1.bf16.xpose.msra.mxu0 0
    %858 = vmatprep.subr.bf16.mxu0 0
    %859 = vmatpush1.bf16.xpose.msra.mxu0 0
    %860 = vmatprep.subr.bf16.mxu0 0
    %861 = vmatpush1.bf16.xpose.msra.mxu0 0
    %862 = vmatprep.subr.bf16.mxu0 0
    %863 = vmatpush1.bf16.xpose.msra.mxu0 0
    %864 = vmatprep.subr.bf16.mxu0 0
    %865 = vmatpush1.bf16.xpose.msra.mxu0 0
    %866 = vmatprep.subr.bf16.mxu0 0
    %867 = vmatpush1.bf16.xpose.msra.mxu0 0
    %868 = vmatprep.subr.bf16.mxu0 0
    %869 = vmatpush1.bf16.xpose.msra.mxu0 0
    %870 = vmatprep.subr.bf16.mxu0 0
    %871 = vmatpush1.bf16.xpose.msra.mxu0 0
    %872 = vmatprep.mubr.bf16.mxu0 0
    %873 = vmatmul.mubr.bf16.gmra.mrb[0].mxu0 %v835
    %v874 = vpop.f32.mrb[0].mxu0
    %v875 = vadd.f32 0.0, %v874
    %v876 = vpop.f32.mrb[0].mxu0
    %v877 = vpop.f32.mrb[0].mxu0
    %v878 = vpop.f32.mrb[0].mxu0
    %879 = vdwg.mxu0
    %v880 = vmul.f32 %v825, 0.35355338
    %v881 = vmul.f32 %v875, 0.35355338
    %v882 = vsel %vm243, %v880, -inf
    %883 = vmax.xlane.f32.xlu0 %v882
    %v884 = vpop.xlane.xlu0 %883
    %v885 = vsel %vm243, %v881, -inf
    %886 = vmax.xlane.f32.xlu0 %v885
    %v887 = vpop.xlane.xlu0 %886
    %v888 = vsub.f32 %v880, %v884
    %v889 = vsub.f32 %v881, %v887
    %v890 = vmul.f32 %v888, 1.442695
    %v891 = vpow.pop %v890
    %v892 = vmul.f32 %v889, 1.442695
    %v893 = vpow.pop %v892
    %v894 = vsel %vm243, %v891, 0.0
    %895 = vadd.xlane.f32.xlu0 %v894
    %v896 = vpop.xlane.xlu0 %895
    %v897 = vsel %vm243, %v893, 0.0
    %898 = vadd.xlane.f32.xlu0 %v897
    %v899 = vpop.xlane.xlu0 %898
    %v900 = vrcp.pop %v896
    %v901 = vrcp.pop %v899
    %v902 = vmul.f32 %v891, %v900
    %v903 = vmul.f32 %v893, %v901
    %v904 = vpack.c.bf16 %v902, %v902
    %v905 = vpack.c.bf16 %v903, %v903
    %906 = vrot.lane.b32.xlu0 %v238, 48
    %v907 = vpop.permute.xlu0 %906
    %v909 = vsel %vm243, %v904, 0
    %v912 = vsel %vm370, %v907, 0
    %914 = vmatprep.subr.bf16.mxu0 0
    %915 = vmatpush1.bf16.msra.mxu0 %v912
    %916 = vmatprep.subr.bf16.mxu0 0
    %917 = vmatpush1.bf16.msra.mxu0 0
    %918 = vmatprep.subr.bf16.mxu0 0
    %919 = vmatpush1.bf16.msra.mxu0 0
    %920 = vmatprep.subr.bf16.mxu0 0
    %921 = vmatpush1.bf16.msra.mxu0 0
    %922 = vmatprep.subr.bf16.mxu0 0
    %923 = vmatpush1.bf16.msra.mxu0 0
    %924 = vmatprep.subr.bf16.mxu0 0
    %925 = vmatpush1.bf16.msra.mxu0 0
    %926 = vmatprep.subr.bf16.mxu0 0
    %927 = vmatpush1.bf16.msra.mxu0 0
    %928 = vmatprep.subr.bf16.mxu0 0
    %929 = vmatpush1.bf16.msra.mxu0 0
    %930 = vmatprep.subr.bf16.mxu0 0
    %931 = vmatpush1.bf16.msra.mxu0 0
    %932 = vmatprep.subr.bf16.mxu0 0
    %933 = vmatpush1.bf16.msra.mxu0 0
    %934 = vmatprep.subr.bf16.mxu0 0
    %935 = vmatpush1.bf16.msra.mxu0 0
    %936 = vmatprep.subr.bf16.mxu0 0
    %937 = vmatpush1.bf16.msra.mxu0 0
    %938 = vmatprep.subr.bf16.mxu0 0
    %939 = vmatpush1.bf16.msra.mxu0 0
    %940 = vmatprep.subr.bf16.mxu0 0
    %941 = vmatpush1.bf16.msra.mxu0 0
    %942 = vmatprep.subr.bf16.mxu0 0
    %943 = vmatpush1.bf16.msra.mxu0 0
    %944 = vmatprep.subr.bf16.mxu0 0
    %945 = vmatpush1.bf16.msra.mxu0 0
    %946 = vmatprep.mubr.bf16.mxu0 0
    %947 = vmatmul.mubr.bf16.gmra.mrb[0].mxu0 %v909
    %v948 = vpop.f32.mrb[0].mxu0
    %v949 = vadd.f32 0.0, %v948
    %v950 = vpop.f32.mrb[0].mxu0
    %v951 = vpop.f32.mrb[0].mxu0
    %v952 = vpop.f32.mrb[0].mxu0
    %953 = vdwg.mxu0
    %954 = vrot.lane.b32.xlu0 %v239, 48
    %v955 = vpop.permute.xlu0 %954
    %v957 = vsel %vm243, %v905, 0
    %v960 = vsel %vm370, %v955, 0
    %962 = vmatprep.subr.bf16.mxu0 0
    %963 = vmatpush1.bf16.msra.mxu0 %v960
    %964 = vmatprep.subr.bf16.mxu0 0
    %965 = vmatpush1.bf16.msra.mxu0 0
    %966 = vmatprep.subr.bf16.mxu0 0
    %967 = vmatpush1.bf16.msra.mxu0 0
    %968 = vmatprep.subr.bf16.mxu0 0
    %969 = vmatpush1.bf16.msra.mxu0 0
    %970 = vmatprep.subr.bf16.mxu0 0
    %971 = vmatpush1.bf16.msra.mxu0 0
    %972 = vmatprep.subr.bf16.mxu0 0
    %973 = vmatpush1.bf16.msra.mxu0 0
    %974 = vmatprep.subr.bf16.mxu0 0
    %975 = vmatpush1.bf16.msra.mxu0 0
    %976 = vmatprep.subr.bf16.mxu0 0
    %977 = vmatpush1.bf16.msra.mxu0 0
    %978 = vmatprep.subr.bf16.mxu0 0
    %979 = vmatpush1.bf16.msra.mxu0 0
    %980 = vmatprep.subr.bf16.mxu0 0
    %981 = vmatpush1.bf16.msra.mxu0 0
    %982 = vmatprep.subr.bf16.mxu0 0
    %983 = vmatpush1.bf16.msra.mxu0 0
    %984 = vmatprep.subr.bf16.mxu0 0
    %985 = vmatpush1.bf16.msra.mxu0 0
    %986 = vmatprep.subr.bf16.mxu0 0
    %987 = vmatpush1.bf16.msra.mxu0 0
    %988 = vmatprep.subr.bf16.mxu0 0
    %989 = vmatpush1.bf16.msra.mxu0 0
    %990 = vmatprep.subr.bf16.mxu0 0
    %991 = vmatpush1.bf16.msra.mxu0 0
    %992 = vmatprep.subr.bf16.mxu0 0
    %993 = vmatpush1.bf16.msra.mxu0 0
    %994 = vmatprep.mubr.bf16.mxu0 0
    %995 = vmatmul.mubr.bf16.gmra.mrb[0].mxu0 %v957
    %v996 = vpop.f32.mrb[0].mxu0
    %v997 = vadd.f32 0.0, %v996
    %v998 = vpop.f32.mrb[0].mxu0
    %v999 = vpop.f32.mrb[0].mxu0
    %v1000 = vpop.f32.mrb[0].mxu0
    %1001 = vdwg.mxu0
    %v1002 = vpack.c.bf16 %v997, %v949
    %v1004 = vsel %vm243, %v1002, 0
    %v1007 = vsel %vm370, %v133, 0
    %1009 = vmatprep.subr.bf16.mxu0 0
    %1010 = vmatpush1.bf16.msra.mxu0 %v1007
    %1011 = vmatprep.subr.bf16.mxu0 0
    %1012 = vmatpush1.bf16.msra.mxu0 0
    %1013 = vmatprep.subr.bf16.mxu0 0
    %1014 = vmatpush1.bf16.msra.mxu0 0
    %1015 = vmatprep.subr.bf16.mxu0 0
    %1016 = vmatpush1.bf16.msra.mxu0 0
    %1017 = vmatprep.subr.bf16.mxu0 0
    %1018 = vmatpush1.bf16.msra.mxu0 0
    %1019 = vmatprep.subr.bf16.mxu0 0
    %1020 = vmatpush1.bf16.msra.mxu0 0
    %1021 = vmatprep.subr.bf16.mxu0 0
    %1022 = vmatpush1.bf16.msra.mxu0 0
    %1023 = vmatprep.subr.bf16.mxu0 0
    %1024 = vmatpush1.bf16.msra.mxu0 0
    %1025 = vmatprep.subr.bf16.mxu0 0
    %1026 = vmatpush1.bf16.msra.mxu0 0
    %1027 = vmatprep.subr.bf16.mxu0 0
    %1028 = vmatpush1.bf16.msra.mxu0 0
    %1029 = vmatprep.subr.bf16.mxu0 0
    %1030 = vmatpush1.bf16.msra.mxu0 0
    %1031 = vmatprep.subr.bf16.mxu0 0
    %1032 = vmatpush1.bf16.msra.mxu0 0
    %1033 = vmatprep.subr.bf16.mxu0 0
    %1034 = vmatpush1.bf16.msra.mxu0 0
    %1035 = vmatprep.subr.bf16.mxu0 0
    %1036 = vmatpush1.bf16.msra.mxu0 0
    %1037 = vmatprep.subr.bf16.mxu0 0
    %1038 = vmatpush1.bf16.msra.mxu0 0
    %1039 = vmatprep.subr.bf16.mxu0 0
    %1040 = vmatpush1.bf16.msra.mxu0 0
    %1041 = vmatprep.mubr.bf16.mxu0 0
    %1042 = vmatmul.mubr.bf16.gmra.mrb[0].mxu0 %v1004
    %v1043 = vpop.f32.mrb[0].mxu0
    %v1044 = vadd.f32 0.0, %v1043
    %v1045 = vpop.f32.mrb[0].mxu0
    %v1046 = vpop.f32.mrb[0].mxu0
    %v1047 = vadd.f32 0.0, %v1046
    %v1048 = vpop.f32.mrb[0].mxu0
    %1049 = vdwg.mxu0
    %v1050 = vadd.f32 %v774, %v1044
    %v1051 = vadd.f32 %v777, %v1047
    %1052 = vrot.lane.b32.xlu0 %v238, 104
    %v1053 = vpop.permute.xlu0 %1052
    %1054 = vrot.lane.b32.xlu0 %v238, 72
    %v1055 = vpop.permute.xlu0 %1054
    %v1057 = vsel %vm243, %v1053, 0
    %v1060 = vsel %vm243, %v1055, 0
    %1062 = vmatprep.subr.bf16.mxu0 0
    %1063 = vmatpush1.bf16.xpose.msra.mxu0 %v1060
    %1064 = vmatprep.subr.bf16.mxu0 0
    %1065 = vmatpush1.bf16.xpose.msra.mxu0 0
    %1066 = vmatprep.subr.bf16.mxu0 0
    %1067 = vmatpush1.bf16.xpose.msra.mxu0 0
    %1068 = vmatprep.subr.bf16.mxu0 0
    %1069 = vmatpush1.bf16.xpose.msra.mxu0 0
    %1070 = vmatprep.subr.bf16.mxu0 0
    %1071 = vmatpush1.bf16.xpose.msra.mxu0 0
    %1072 = vmatprep.subr.bf16.mxu0 0
    %1073 = vmatpush1.bf16.xpose.msra.mxu0 0
    %1074 = vmatprep.subr.bf16.mxu0 0
    %1075 = vmatpush1.bf16.xpose.msra.mxu0 0
    %1076 = vmatprep.subr.bf16.mxu0 0
    %1077 = vmatpush1.bf16.xpose.msra.mxu0 0
    %1078 = vmatprep.subr.bf16.mxu0 0
    %1079 = vmatpush1.bf16.xpose.msra.mxu0 0
    %1080 = vmatprep.subr.bf16.mxu0 0
    %1081 = vmatpush1.bf16.xpose.msra.mxu0 0
    %1082 = vmatprep.subr.bf16.mxu0 0
    %1083 = vmatpush1.bf16.xpose.msra.mxu0 0
    %1084 = vmatprep.subr.bf16.mxu0 0
    %1085 = vmatpush1.bf16.xpose.msra.mxu0 0
    %1086 = vmatprep.subr.bf16.mxu0 0
    %1087 = vmatpush1.bf16.xpose.msra.mxu0 0
    %1088 = vmatprep.subr.bf16.mxu0 0
    %1089 = vmatpush1.bf16.xpose.msra.mxu0 0
    %1090 = vmatprep.subr.bf16.mxu0 0
    %1091 = vmatpush1.bf16.xpose.msra.mxu0 0
    %1092 = vmatprep.subr.bf16.mxu0 0
    %1093 = vmatpush1.bf16.xpose.msra.mxu0 0
    %1094 = vmatprep.mubr.bf16.mxu0 0
    %1095 = vmatmul.mubr.bf16.gmra.mrb[0].mxu0 %v1057
    %v1096 = vpop.f32.mrb[0].mxu0
    %v1097 = vadd.f32 0.0, %v1096
    %v1098 = vpop.f32.mrb[0].mxu0
    %v1099 = vpop.f32.mrb[0].mxu0
    %v1100 = vpop.f32.mrb[0].mxu0
    %1101 = vdwg.mxu0
    %1102 = vrot.lane.b32.xlu0 %v239, 104
    %v1103 = vpop.permute.xlu0 %1102
    %1104 = vrot.lane.b32.xlu0 %v239, 72
    %v1105 = vpop.permute.xlu0 %1104
    %v1107 = vsel %vm243, %v1103, 0
    %v1110 = vsel %vm243, %v1105, 0
    %1112 = vmatprep.subr.bf16.mxu0 0
    %1113 = vmatpush1.bf16.xpose.msra.mxu0 %v1110
    %1114 = vmatprep.subr.bf16.mxu0 0
    %1115 = vmatpush1.bf16.xpose.msra.mxu0 0
    %1116 = vmatprep.subr.bf16.mxu0 0
    %1117 = vmatpush1.bf16.xpose.msra.mxu0 0
    %1118 = vmatprep.subr.bf16.mxu0 0
    %1119 = vmatpush1.bf16.xpose.msra.mxu0 0
    %1120 = vmatprep.subr.bf16.mxu0 0
    %1121 = vmatpush1.bf16.xpose.msra.mxu0 0
    %1122 = vmatprep.subr.bf16.mxu0 0
    %1123 = vmatpush1.bf16.xpose.msra.mxu0 0
    %1124 = vmatprep.subr.bf16.mxu0 0
    %1125 = vmatpush1.bf16.xpose.msra.mxu0 0
    %1126 = vmatprep.subr.bf16.mxu0 0
    %1127 = vmatpush1.bf16.xpose.msra.mxu0 0
    %1128 = vmatprep.subr.bf16.mxu0 0
    %1129 = vmatpush1.bf16.xpose.msra.mxu0 0
    %1130 = vmatprep.subr.bf16.mxu0 0
    %1131 = vmatpush1.bf16.xpose.msra.mxu0 0
    %1132 = vmatprep.subr.bf16.mxu0 0
    %1133 = vmatpush1.bf16.xpose.msra.mxu0 0
    %1134 = vmatprep.subr.bf16.mxu0 0
    %1135 = vmatpush1.bf16.xpose.msra.mxu0 0
    %1136 = vmatprep.subr.bf16.mxu0 0
    %1137 = vmatpush1.bf16.xpose.msra.mxu0 0
    %1138 = vmatprep.subr.bf16.mxu0 0
    %1139 = vmatpush1.bf16.xpose.msra.mxu0 0
    %1140 = vmatprep.subr.bf16.mxu0 0
    %1141 = vmatpush1.bf16.xpose.msra.mxu0 0
    %1142 = vmatprep.subr.bf16.mxu0 0
    %1143 = vmatpush1.bf16.xpose.msra.mxu0 0
    %1144 = vmatprep.mubr.bf16.mxu0 0
    %1145 = vmatmul.mubr.bf16.gmra.mrb[0].mxu0 %v1107
    %v1146 = vpop.f32.mrb[0].mxu0
    %v1147 = vadd.f32 0.0, %v1146
    %v1148 = vpop.f32.mrb[0].mxu0
    %v1149 = vpop.f32.mrb[0].mxu0
    %v1150 = vpop.f32.mrb[0].mxu0
    %1151 = vdwg.mxu0
    %v1152 = vmul.f32 %v1097, 0.35355338
    %v1153 = vmul.f32 %v1147, 0.35355338
    %v1154 = vsel %vm243, %v1152, -inf
    %1155 = vmax.xlane.f32.xlu0 %v1154
    %v1156 = vpop.xlane.xlu0 %1155
    %v1157 = vsel %vm243, %v1153, -inf
    %1158 = vmax.xlane.f32.xlu0 %v1157
    %v1159 = vpop.xlane.xlu0 %1158
    %v1160 = vsub.f32 %v1152, %v1156
    %v1161 = vsub.f32 %v1153, %v1159
    %v1162 = vmul.f32 %v1160, 1.442695
    %v1163 = vpow.pop %v1162
    %v1164 = vmul.f32 %v1161, 1.442695
    %v1165 = vpow.pop %v1164
    %v1166 = vsel %vm243, %v1163, 0.0
    %1167 = vadd.xlane.f32.xlu0 %v1166
    %v1168 = vpop.xlane.xlu0 %1167
    %v1169 = vsel %vm243, %v1165, 0.0
    %1170 = vadd.xlane.f32.xlu0 %v1169
    %v1171 = vpop.xlane.xlu0 %1170
    %v1172 = vrcp.pop %v1168
    %v1173 = vrcp.pop %v1171
    %v1174 = vmul.f32 %v1163, %v1172
    %v1175 = vmul.f32 %v1165, %v1173
    %v1176 = vpack.c.bf16 %v1174, %v1174
    %v1177 = vpack.c.bf16 %v1175, %v1175
    %1178 = vrot.lane.b32.xlu0 %v238, 40
    %v1179 = vpop.permute.xlu0 %1178
    %v1181 = vsel %vm243, %v1176, 0
    %v1184 = vsel %vm370, %v1179, 0
    %1186 = vmatprep.subr.bf16.mxu0 0
    %1187 = vmatpush1.bf16.msra.mxu0 %v1184
    %1188 = vmatprep.subr.bf16.mxu0 0
    %1189 = vmatpush1.bf16.msra.mxu0 0
    %1190 = vmatprep.subr.bf16.mxu0 0
    %1191 = vmatpush1.bf16.msra.mxu0 0
    %1192 = vmatprep.subr.bf16.mxu0 0
    %1193 = vmatpush1.bf16.msra.mxu0 0
    %1194 = vmatprep.subr.bf16.mxu0 0
    %1195 = vmatpush1.bf16.msra.mxu0 0
    %1196 = vmatprep.subr.bf16.mxu0 0
    %1197 = vmatpush1.bf16.msra.mxu0 0
    %1198 = vmatprep.subr.bf16.mxu0 0
    %1199 = vmatpush1.bf16.msra.mxu0 0
    %1200 = vmatprep.subr.bf16.mxu0 0
    %1201 = vmatpush1.bf16.msra.mxu0 0
    %1202 = vmatprep.subr.bf16.mxu0 0
    %1203 = vmatpush1.bf16.msra.mxu0 0
    %1204 = vmatprep.subr.bf16.mxu0 0
    %1205 = vmatpush1.bf16.msra.mxu0 0
    %1206 = vmatprep.subr.bf16.mxu0 0
    %1207 = vmatpush1.bf16.msra.mxu0 0
    %1208 = vmatprep.subr.bf16.mxu0 0
    %1209 = vmatpush1.bf16.msra.mxu0 0
    %1210 = vmatprep.subr.bf16.mxu0 0
    %1211 = vmatpush1.bf16.msra.mxu0 0
    %1212 = vmatprep.subr.bf16.mxu0 0
    %1213 = vmatpush1.bf16.msra.mxu0 0
    %1214 = vmatprep.subr.bf16.mxu0 0
    %1215 = vmatpush1.bf16.msra.mxu0 0
    %1216 = vmatprep.subr.bf16.mxu0 0
    %1217 = vmatpush1.bf16.msra.mxu0 0
    %1218 = vmatprep.mubr.bf16.mxu0 0
    %1219 = vmatmul.mubr.bf16.gmra.mrb[0].mxu0 %v1181
    %v1220 = vpop.f32.mrb[0].mxu0
    %v1221 = vadd.f32 0.0, %v1220
    %v1222 = vpop.f32.mrb[0].mxu0
    %v1223 = vpop.f32.mrb[0].mxu0
    %v1224 = vpop.f32.mrb[0].mxu0
    %1225 = vdwg.mxu0
    %1226 = vrot.lane.b32.xlu0 %v239, 40
    %v1227 = vpop.permute.xlu0 %1226
    %v1229 = vsel %vm243, %v1177, 0
    %v1232 = vsel %vm370, %v1227, 0
    %1234 = vmatprep.subr.bf16.mxu0 0
    %1235 = vmatpush1.bf16.msra.mxu0 %v1232
    %1236 = vmatprep.subr.bf16.mxu0 0
    %1237 = vmatpush1.bf16.msra.mxu0 0
    %1238 = vmatprep.subr.bf16.mxu0 0
    %1239 = vmatpush1.bf16.msra.mxu0 0
    %1240 = vmatprep.subr.bf16.mxu0 0
    %1241 = vmatpush1.bf16.msra.mxu0 0
    %1242 = vmatprep.subr.bf16.mxu0 0
    %1243 = vmatpush1.bf16.msra.mxu0 0
    %1244 = vmatprep.subr.bf16.mxu0 0
    %1245 = vmatpush1.bf16.msra.mxu0 0
    %1246 = vmatprep.subr.bf16.mxu0 0
    %1247 = vmatpush1.bf16.msra.mxu0 0
    %1248 = vmatprep.subr.bf16.mxu0 0
    %1249 = vmatpush1.bf16.msra.mxu0 0
    %1250 = vmatprep.subr.bf16.mxu0 0
    %1251 = vmatpush1.bf16.msra.mxu0 0
    %1252 = vmatprep.subr.bf16.mxu0 0
    %1253 = vmatpush1.bf16.msra.mxu0 0
    %1254 = vmatprep.subr.bf16.mxu0 0
    %1255 = vmatpush1.bf16.msra.mxu0 0
    %1256 = vmatprep.subr.bf16.mxu0 0
    %1257 = vmatpush1.bf16.msra.mxu0 0
    %1258 = vmatprep.subr.bf16.mxu0 0
    %1259 = vmatpush1.bf16.msra.mxu0 0
    %1260 = vmatprep.subr.bf16.mxu0 0
    %1261 = vmatpush1.bf16.msra.mxu0 0
    %1262 = vmatprep.subr.bf16.mxu0 0
    %1263 = vmatpush1.bf16.msra.mxu0 0
    %1264 = vmatprep.subr.bf16.mxu0 0
    %1265 = vmatpush1.bf16.msra.mxu0 0
    %1266 = vmatprep.mubr.bf16.mxu0 0
    %1267 = vmatmul.mubr.bf16.gmra.mrb[0].mxu0 %v1229
    %v1268 = vpop.f32.mrb[0].mxu0
    %v1269 = vadd.f32 0.0, %v1268
    %v1270 = vpop.f32.mrb[0].mxu0
    %v1271 = vpop.f32.mrb[0].mxu0
    %v1272 = vpop.f32.mrb[0].mxu0
    %1273 = vdwg.mxu0
    %v1274 = vpack.c.bf16 %v1269, %v1221
    %v1276 = vsel %vm243, %v1274, 0
    %v1279 = vsel %vm370, %v134, 0
    %1281 = vmatprep.subr.bf16.mxu0 0
    %1282 = vmatpush1.bf16.msra.mxu0 %v1279
    %1283 = vmatprep.subr.bf16.mxu0 0
    %1284 = vmatpush1.bf16.msra.mxu0 0
    %1285 = vmatprep.subr.bf16.mxu0 0
    %1286 = vmatpush1.bf16.msra.mxu0 0
    %1287 = vmatprep.subr.bf16.mxu0 0
    %1288 = vmatpush1.bf16.msra.mxu0 0
    %1289 = vmatprep.subr.bf16.mxu0 0
    %1290 = vmatpush1.bf16.msra.mxu0 0
    %1291 = vmatprep.subr.bf16.mxu0 0
    %1292 = vmatpush1.bf16.msra.mxu0 0
    %1293 = vmatprep.subr.bf16.mxu0 0
    %1294 = vmatpush1.bf16.msra.mxu0 0
    %1295 = vmatprep.subr.bf16.mxu0 0
    %1296 = vmatpush1.bf16.msra.mxu0 0
    %1297 = vmatprep.subr.bf16.mxu0 0
    %1298 = vmatpush1.bf16.msra.mxu0 0
    %1299 = vmatprep.subr.bf16.mxu0 0
    %1300 = vmatpush1.bf16.msra.mxu0 0
    %1301 = vmatprep.subr.bf16.mxu0 0
    %1302 = vmatpush1.bf16.msra.mxu0 0
    %1303 = vmatprep.subr.bf16.mxu0 0
    %1304 = vmatpush1.bf16.msra.mxu0 0
    %1305 = vmatprep.subr.bf16.mxu0 0
    %1306 = vmatpush1.bf16.msra.mxu0 0
    %1307 = vmatprep.subr.bf16.mxu0 0
    %1308 = vmatpush1.bf16.msra.mxu0 0
    %1309 = vmatprep.subr.bf16.mxu0 0
    %1310 = vmatpush1.bf16.msra.mxu0 0
    %1311 = vmatprep.subr.bf16.mxu0 0
    %1312 = vmatpush1.bf16.msra.mxu0 0
    %1313 = vmatprep.mubr.bf16.mxu0 0
    %1314 = vmatmul.mubr.bf16.gmra.mrb[0].mxu0 %v1276
    %v1315 = vpop.f32.mrb[0].mxu0
    %v1316 = vadd.f32 0.0, %v1315
    %v1317 = vpop.f32.mrb[0].mxu0
    %v1318 = vpop.f32.mrb[0].mxu0
    %v1319 = vadd.f32 0.0, %v1318
    %v1320 = vpop.f32.mrb[0].mxu0
    %1321 = vdwg.mxu0
    %v1322 = vadd.f32 %v1050, %v1316
    %v1323 = vadd.f32 %v1051, %v1319
    %v1324 = vadd.f32 %v119, %v1322
    %v1325 = vadd.f32 %v120, %v1323
    %v1327 = vlaneseq
    %v1328 = vshrl.u32 %v1327, 7
    %v1329 = vsub.s32 0, %v1328
    %v1330 = vrot.slane %v148, %v1329
    %v1332 = vadd.f32 %v1324, %v1330
    %v1333 = vadd.f32 %v1325, %v1330
    %v1334 = vpack.c.bf16 %v1333, %v1332
    %v1336 = vlaneseq
    %v1337 = vshrl.u32 %v1336, 7
    %v1338 = vsub.s32 0, %v1337
    %v1339 = vrot.slane %v149, %v1338
    %v1345 = vunpack.c.l.b16 %v135
    %v1346 = vunpack.c.l.b16 %v136
    %v1347 = vunpack.c.l.b16 %v137
    %v1348 = vunpack.c.l.b16 %v138
    %v1349 = vpack.c.b16 %v1346, %v1345
    %v1350 = vpack.c.b16 %v1348, %v1347
    %v1354 = vsel %vm159, %v1334, 0
    %1356 = vmatprep.subr.bf16.mxu0 0
    %1357 = vmatpush1.bf16.msra.mxu0 %v1349
    %1358 = vmatprep.subr.bf16.mxu0 0
    %1359 = vmatpush1.bf16.msra.mxu0 %v1350
    %1360 = vmatprep.subr.bf16.mxu0 0
    %1361 = vmatpush1.bf16.msra.mxu0 0
    %1362 = vmatprep.subr.bf16.mxu0 0
    %1363 = vmatpush1.bf16.msra.mxu0 0
    %1364 = vmatprep.subr.bf16.mxu0 0
    %1365 = vmatpush1.bf16.msra.mxu0 0
    %1366 = vmatprep.subr.bf16.mxu0 0
    %1367 = vmatpush1.bf16.msra.mxu0 0
    %1368 = vmatprep.subr.bf16.mxu0 0
    %1369 = vmatpush1.bf16.msra.mxu0 0
    %1370 = vmatprep.subr.bf16.mxu0 0
    %1371 = vmatpush1.bf16.msra.mxu0 0
    %1372 = vmatprep.subr.bf16.mxu0 0
    %1373 = vmatpush1.bf16.msra.mxu0 0
    %1374 = vmatprep.subr.bf16.mxu0 0
    %1375 = vmatpush1.bf16.msra.mxu0 0
    %1376 = vmatprep.subr.bf16.mxu0 0
    %1377 = vmatpush1.bf16.msra.mxu0 0
    %1378 = vmatprep.subr.bf16.mxu0 0
    %1379 = vmatpush1.bf16.msra.mxu0 0
    %1380 = vmatprep.subr.bf16.mxu0 0
    %1381 = vmatpush1.bf16.msra.mxu0 0
    %1382 = vmatprep.subr.bf16.mxu0 0
    %1383 = vmatpush1.bf16.msra.mxu0 0
    %1384 = vmatprep.subr.bf16.mxu0 0
    %1385 = vmatpush1.bf16.msra.mxu0 0
    %1386 = vmatprep.subr.bf16.mxu0 0
    %1387 = vmatpush1.bf16.msra.mxu0 0
    %1388 = vmatprep.mubr.bf16.mxu0 0
    %1389 = vmatmul.mubr.bf16.gmra.mrb[0].mxu0 %v1354
    %v1390 = vpop.f32.mrb[0].mxu0
    %v1391 = vadd.f32 %v1339, %v1390
    %v1392 = vpop.f32.mrb[0].mxu0
    %v1393 = vpop.f32.mrb[0].mxu0
    %v1394 = vadd.f32 %v1339, %v1393
    %v1395 = vpop.f32.mrb[0].mxu0
    %1396 = vdwg.mxu0
    %v1397 = vmax.f32 %v1391, 0.0
    %v1398 = vmax.f32 %v1394, 0.0
    %v1399 = vpack.c.bf16 %v1398, %v1397
    %v1401 = vlaneseq
    %v1402 = vshrl.u32 %v1401, 7
    %v1403 = vsub.s32 0, %v1402
    %v1404 = vrot.slane %v150, %v1403
    %v1414 = vunpack.c.l.b16 %v139
    %v1415 = vunpack.c.l.b16 %v140
    %v1416 = vunpack.c.l.b16 %v141
    %v1417 = vunpack.c.l.b16 %v142
    %v1418 = vunpack.c.l.b16 %v143
    %v1419 = vunpack.c.l.b16 %v144
    %v1420 = vunpack.c.l.b16 %v145
    %v1421 = vunpack.c.l.b16 %v146
    %v1422 = vpack.c.b16 %v1415, %v1414
    %v1423 = vpack.c.b16 %v1417, %v1416
    %v1424 = vpack.c.b16 %v1419, %v1418
    %v1425 = vpack.c.b16 %v1421, %v1420
    %v1431 = vsel %vm193, %v1399, 0
    %1433 = vmatprep.subr.bf16.mxu0 0
    %1434 = vmatpush1.bf16.msra.mxu0 %v1422
    %1435 = vmatprep.subr.bf16.mxu0 0
    %1436 = vmatpush1.bf16.msra.mxu0 %v1423
    %1437 = vmatprep.subr.bf16.mxu0 0
    %1438 = vmatpush1.bf16.msra.mxu0 %v1424
    %1439 = vmatprep.subr.bf16.mxu0 0
    %1440 = vmatpush1.bf16.msra.mxu0 %v1425
    %1441 = vmatprep.subr.bf16.mxu0 0
    %1442 = vmatpush1.bf16.msra.mxu0 0
    %1443 = vmatprep.subr.bf16.mxu0 0
    %1444 = vmatpush1.bf16.msra.mxu0 0
    %1445 = vmatprep.subr.bf16.mxu0 0
    %1446 = vmatpush1.bf16.msra.mxu0 0
    %1447 = vmatprep.subr.bf16.mxu0 0
    %1448 = vmatpush1.bf16.msra.mxu0 0
    %1449 = vmatprep.subr.bf16.mxu0 0
    %1450 = vmatpush1.bf16.msra.mxu0 0
    %1451 = vmatprep.subr.bf16.mxu0 0
    %1452 = vmatpush1.bf16.msra.mxu0 0
    %1453 = vmatprep.subr.bf16.mxu0 0
    %1454 = vmatpush1.bf16.msra.mxu0 0
    %1455 = vmatprep.subr.bf16.mxu0 0
    %1456 = vmatpush1.bf16.msra.mxu0 0
    %1457 = vmatprep.subr.bf16.mxu0 0
    %1458 = vmatpush1.bf16.msra.mxu0 0
    %1459 = vmatprep.subr.bf16.mxu0 0
    %1460 = vmatpush1.bf16.msra.mxu0 0
    %1461 = vmatprep.subr.bf16.mxu0 0
    %1462 = vmatpush1.bf16.msra.mxu0 0
    %1463 = vmatprep.subr.bf16.mxu0 0
    %1464 = vmatpush1.bf16.msra.mxu0 0
    %1465 = vmatprep.mubr.bf16.mxu0 0
    %1466 = vmatmul.mubr.bf16.gmra.mrb[0].mxu0 %v1431
    %v1467 = vpop.f32.mrb[0].mxu0
    %v1468 = vadd.f32 %v1404, %v1467
    %v1469 = vpop.f32.mrb[0].mxu0
    %v1470 = vpop.f32.mrb[0].mxu0
    %v1471 = vadd.f32 %v1404, %v1470
    %v1472 = vpop.f32.mrb[0].mxu0
    %1473 = vdwg.mxu0
    %v1474 = vadd.f32 %v1332, %v1468
    %v1475 = vadd.f32 %v1333, %v1471
    %s1476 = scalar_lea.vmem %s2, 32
    %v1477 = vld [vmem:[%s1476] sm:$0xf]
    %v1478 = vld [vmem:[%s1476 + $0x4] sm:$0xf]
    %v1479 = vld [vmem:[%s1476 + $0x8] sm:$0xf]
    %v1480 = vld [vmem:[%s1476 + $0xc] sm:$0xf]
    %v1481 = vld [vmem:[%s1476 + $0x10] sm:$0xf]
    %v1482 = vld [vmem:[%s1476 + $0x14] sm:$0xf]
    %v1483 = vld [vmem:[%s1476 + $0x18] sm:$0xf]
    %v1484 = vld [vmem:[%s1476 + $0x1c] sm:$0xf]
    %s1485 = scalar_lea.vmem %s3, 16
    %v1486 = vld [vmem:[%s1485] sm:$0xf]
    %v1487 = vld [vmem:[%s1485 + $0x4] sm:$0xf]
    %v1488 = vld [vmem:[%s1485 + $0x8] sm:$0xf]
    %v1489 = vld [vmem:[%s1485 + $0xc] sm:$0xf]
    %s1490 = scalar_lea.vmem [#allocation7], 16
    %v1491 = vld [vmem:[%s1490] sm:$0xf]
    %v1492 = vld [vmem:[%s1490 + $0x4] sm:$0xf]
    %v1493 = vld [vmem:[%s1490 + $0x8] sm:$0xf]
    %v1494 = vld [vmem:[%s1490 + $0xc] sm:$0xf]
    %s1495 = scalar_lea.vmem %s5, 32
    %v1496 = vld [vmem:[%s1495] sm:$0xf]
    %v1497 = vld [vmem:[%s1495 + $0x4] sm:$0xf]
    %v1498 = vld [vmem:[%s1495 + $0x8] sm:$0xf]
    %v1499 = vld [vmem:[%s1495 + $0xc] sm:$0xf]
    %v1500 = vld [vmem:[%s1495 + $0x10] sm:$0xf]
    %v1501 = vld [vmem:[%s1495 + $0x14] sm:$0xf]
    %v1502 = vld [vmem:[%s1495 + $0x18] sm:$0xf]
    %v1503 = vld [vmem:[%s1495 + $0x1c] sm:$0xf]
    %s1504 = scalar_lea.vmem %s6, 1
    %v1505 = vld [vmem:[%s1504] sm:$0x1]
    %s1506 = scalar_lea.vmem [#allocation8], 1
    %v1507 = vld [vmem:[%s1506] sm:$0x1]
    %s1508 = scalar_lea.vmem [#allocation10], 1
    %v1509 = vld [vmem:[%s1508] sm:$0x1]
    %s1510 = scalar_lea.vmem [#allocation11], 1
    %v1511 = vld [vmem:[%s1510] sm:$0x1]
    %v1512 = vsel %vm159, %v1474, %v154
    %v1513 = vsel %vm159, %v1475, %v156
    %v1514 = vpack.c.bf16 %v1513, %v1512
    %v1516 = vlaneseq
    %v1517 = vshrl.u32 %v1516, 7
    %v1518 = vsub.s32 0, %v1517
    %v1519 = vrot.slane %v1505, %v1518
    %v1529 = vunpack.c.l.b16 %v1477
    %v1530 = vunpack.c.l.b16 %v1478
    %v1531 = vunpack.c.l.b16 %v1479
    %v1532 = vunpack.c.l.b16 %v1480
    %v1533 = vunpack.c.l.b16 %v1481
    %v1534 = vunpack.c.l.b16 %v1482
    %v1535 = vunpack.c.l.b16 %v1483
    %v1536 = vunpack.c.l.b16 %v1484
    %v1537 = vpack.c.b16 %v1530, %v1529
    %v1538 = vpack.c.b16 %v1532, %v1531
    %v1539 = vpack.c.b16 %v1534, %v1533
    %v1540 = vpack.c.b16 %v1536, %v1535
    %v1546 = vsel %vm193, %v1514, 0
    %1548 = vmatprep.subr.bf16.mxu0 0
    %1549 = vmatpush1.bf16.msra.mxu0 %v1537
    %1550 = vmatprep.subr.bf16.mxu0 0
    %1551 = vmatpush1.bf16.msra.mxu0 %v1538
    %1552 = vmatprep.subr.bf16.mxu0 0
    %1553 = vmatpush1.bf16.msra.mxu0 %v1539
    %1554 = vmatprep.subr.bf16.mxu0 0
    %1555 = vmatpush1.bf16.msra.mxu0 %v1540
    %1556 = vmatprep.subr.bf16.mxu0 0
    %1557 = vmatpush1.bf16.msra.mxu0 0
    %1558 = vmatprep.subr.bf16.mxu0 0
    %1559 = vmatpush1.bf16.msra.mxu0 0
    %1560 = vmatprep.subr.bf16.mxu0 0
    %1561 = vmatpush1.bf16.msra.mxu0 0
    %1562 = vmatprep.subr.bf16.mxu0 0
    %1563 = vmatpush1.bf16.msra.mxu0 0
    %1564 = vmatprep.subr.bf16.mxu0 0
    %1565 = vmatpush1.bf16.msra.mxu0 0
    %1566 = vmatprep.subr.bf16.mxu0 0
    %1567 = vmatpush1.bf16.msra.mxu0 0
    %1568 = vmatprep.subr.bf16.mxu0 0
    %1569 = vmatpush1.bf16.msra.mxu0 0
    %1570 = vmatprep.subr.bf16.mxu0 0
    %1571 = vmatpush1.bf16.msra.mxu0 0
    %1572 = vmatprep.subr.bf16.mxu0 0
    %1573 = vmatpush1.bf16.msra.mxu0 0
    %1574 = vmatprep.subr.bf16.mxu0 0
    %1575 = vmatpush1.bf16.msra.mxu0 0
    %1576 = vmatprep.subr.bf16.mxu0 0
    %1577 = vmatpush1.bf16.msra.mxu0 0
    %1578 = vmatprep.subr.bf16.mxu0 0
    %1579 = vmatpush1.bf16.msra.mxu0 0
    %1580 = vmatprep.mubr.bf16.mxu0 0
    %1581 = vmatmul.mubr.bf16.gmra.mrb[0].mxu0 %v1546
    %v1582 = vpop.f32.mrb[0].mxu0
    %v1583 = vadd.f32 %v1519, %v1582
    %v1584 = vpop.f32.mrb[0].mxu0
    %v1585 = vpop.f32.mrb[0].mxu0
    %v1586 = vadd.f32 %v1519, %v1585
    %v1587 = vpop.f32.mrb[0].mxu0
    %1588 = vdwg.mxu0
    %v1589 = vpack.c.bf16 %v1583, %v1583
    %v1590 = vpack.c.bf16 %v1586, %v1586
    %1592 = vrot.lane.b32.xlu0 %v1589, 96
    %v1593 = vpop.permute.xlu0 %1592
    %v1595 = vsel %vm243, %v1589, 0
    %v1598 = vsel %vm243, %v1593, 0
    %1600 = vmatprep.subr.bf16.mxu0 0
    %1601 = vmatpush1.bf16.xpose.msra.mxu0 %v1598
    %1602 = vmatprep.subr.bf16.mxu0 0
    %1603 = vmatpush1.bf16.xpose.msra.mxu0 0
    %1604 = vmatprep.subr.bf16.mxu0 0
    %1605 = vmatpush1.bf16.xpose.msra.mxu0 0
    %1606 = vmatprep.subr.bf16.mxu0 0
    %1607 = vmatpush1.bf16.xpose.msra.mxu0 0
    %1608 = vmatprep.subr.bf16.mxu0 0
    %1609 = vmatpush1.bf16.xpose.msra.mxu0 0
    %1610 = vmatprep.subr.bf16.mxu0 0
    %1611 = vmatpush1.bf16.xpose.msra.mxu0 0
    %1612 = vmatprep.subr.bf16.mxu0 0
    %1613 = vmatpush1.bf16.xpose.msra.mxu0 0
    %1614 = vmatprep.subr.bf16.mxu0 0
    %1615 = vmatpush1.bf16.xpose.msra.mxu0 0
    %1616 = vmatprep.subr.bf16.mxu0 0
    %1617 = vmatpush1.bf16.xpose.msra.mxu0 0
    %1618 = vmatprep.subr.bf16.mxu0 0
    %1619 = vmatpush1.bf16.xpose.msra.mxu0 0
    %1620 = vmatprep.subr.bf16.mxu0 0
    %1621 = vmatpush1.bf16.xpose.msra.mxu0 0
    %1622 = vmatprep.subr.bf16.mxu0 0
    %1623 = vmatpush1.bf16.xpose.msra.mxu0 0
    %1624 = vmatprep.subr.bf16.mxu0 0
    %1625 = vmatpush1.bf16.xpose.msra.mxu0 0
    %1626 = vmatprep.subr.bf16.mxu0 0
    %1627 = vmatpush1.bf16.xpose.msra.mxu0 0
    %1628 = vmatprep.subr.bf16.mxu0 0
    %1629 = vmatpush1.bf16.xpose.msra.mxu0 0
    %1630 = vmatprep.subr.bf16.mxu0 0
    %1631 = vmatpush1.bf16.xpose.msra.mxu0 0
    %1632 = vmatprep.mubr.bf16.mxu0 0
    %1633 = vmatmul.mubr.bf16.gmra.mrb[0].mxu0 %v1595
    %v1634 = vpop.f32.mrb[0].mxu0
    %v1635 = vadd.f32 0.0, %v1634
    %v1636 = vpop.f32.mrb[0].mxu0
    %v1637 = vpop.f32.mrb[0].mxu0
    %v1638 = vpop.f32.mrb[0].mxu0
    %1639 = vdwg.mxu0
    %1641 = vrot.lane.b32.xlu0 %v1590, 96
    %v1642 = vpop.permute.xlu0 %1641
    %v1644 = vsel %vm243, %v1590, 0
    %v1647 = vsel %vm243, %v1642, 0
    %1649 = vmatprep.subr.bf16.mxu0 0
    %1650 = vmatpush1.bf16.xpose.msra.mxu0 %v1647
    %1651 = vmatprep.subr.bf16.mxu0 0
    %1652 = vmatpush1.bf16.xpose.msra.mxu0 0
    %1653 = vmatprep.subr.bf16.mxu0 0
    %1654 = vmatpush1.bf16.xpose.msra.mxu0 0
    %1655 = vmatprep.subr.bf16.mxu0 0
    %1656 = vmatpush1.bf16.xpose.msra.mxu0 0
    %1657 = vmatprep.subr.bf16.mxu0 0
    %1658 = vmatpush1.bf16.xpose.msra.mxu0 0
    %1659 = vmatprep.subr.bf16.mxu0 0
    %1660 = vmatpush1.bf16.xpose.msra.mxu0 0
    %1661 = vmatprep.subr.bf16.mxu0 0
    %1662 = vmatpush1.bf16.xpose.msra.mxu0 0
    %1663 = vmatprep.subr.bf16.mxu0 0
    %1664 = vmatpush1.bf16.xpose.msra.mxu0 0
    %1665 = vmatprep.subr.bf16.mxu0 0
    %1666 = vmatpush1.bf16.xpose.msra.mxu0 0
    %1667 = vmatprep.subr.bf16.mxu0 0
    %1668 = vmatpush1.bf16.xpose.msra.mxu0 0
    %1669 = vmatprep.subr.bf16.mxu0 0
    %1670 = vmatpush1.bf16.xpose.msra.mxu0 0
    %1671 = vmatprep.subr.bf16.mxu0 0
    %1672 = vmatpush1.bf16.xpose.msra.mxu0 0
    %1673 = vmatprep.subr.bf16.mxu0 0
    %1674 = vmatpush1.bf16.xpose.msra.mxu0 0
    %1675 = vmatprep.subr.bf16.mxu0 0
    %1676 = vmatpush1.bf16.xpose.msra.mxu0 0
    %1677 = vmatprep.subr.bf16.mxu0 0
    %1678 = vmatpush1.bf16.xpose.msra.mxu0 0
    %1679 = vmatprep.subr.bf16.mxu0 0
    %1680 = vmatpush1.bf16.xpose.msra.mxu0 0
    %1681 = vmatprep.mubr.bf16.mxu0 0
    %1682 = vmatmul.mubr.bf16.gmra.mrb[0].mxu0 %v1644
    %v1683 = vpop.f32.mrb[0].mxu0
    %v1684 = vadd.f32 0.0, %v1683
    %v1685 = vpop.f32.mrb[0].mxu0
    %v1686 = vpop.f32.mrb[0].mxu0
    %v1687 = vpop.f32.mrb[0].mxu0
    %1688 = vdwg.mxu0
    %v1689 = vmul.f32 %v1635, 0.35355338
    %v1690 = vmul.f32 %v1684, 0.35355338
    %v1691 = vsel %vm243, %v1689, -inf
    %1692 = vmax.xlane.f32.xlu0 %v1691
    %v1693 = vpop.xlane.xlu0 %1692
    %v1694 = vsel %vm243, %v1690, -inf
    %1695 = vmax.xlane.f32.xlu0 %v1694
    %v1696 = vpop.xlane.xlu0 %1695
    %v1697 = vsub.f32 %v1689, %v1693
    %v1698 = vsub.f32 %v1690, %v1696
    %v1699 = vmul.f32 %v1697, 1.442695
    %v1700 = vpow.pop %v1699
    %v1701 = vmul.f32 %v1698, 1.442695
    %v1702 = vpow.pop %v1701
    %v1703 = vsel %vm243, %v1700, 0.0
    %1704 = vadd.xlane.f32.xlu0 %v1703
    %v1705 = vpop.xlane.xlu0 %1704
    %v1706 = vsel %vm243, %v1702, 0.0
    %1707 = vadd.xlane.f32.xlu0 %v1706
    %v1708 = vpop.xlane.xlu0 %1707
    %v1709 = vrcp.pop %v1705
    %v1710 = vrcp.pop %v1708
    %v1711 = vmul.f32 %v1700, %v1709
    %v1712 = vmul.f32 %v1702, %v1710
    %v1713 = vpack.c.bf16 %v1711, %v1711
    %v1714 = vpack.c.bf16 %v1712, %v1712
    %1715 = vrot.lane.b32.xlu0 %v1589, 64
    %v1716 = vpop.permute.xlu0 %1715
    %v1718 = vsel %vm243, %v1713, 0
    %v1721 = vsel %vm370, %v1716, 0
    %1723 = vmatprep.subr.bf16.mxu0 0
    %1724 = vmatpush1.bf16.msra.mxu0 %v1721
    %1725 = vmatprep.subr.bf16.mxu0 0
    %1726 = vmatpush1.bf16.msra.mxu0 0
    %1727 = vmatprep.subr.bf16.mxu0 0
    %1728 = vmatpush1.bf16.msra.mxu0 0
    %1729 = vmatprep.subr.bf16.mxu0 0
    %1730 = vmatpush1.bf16.msra.mxu0 0
    %1731 = vmatprep.subr.bf16.mxu0 0
    %1732 = vmatpush1.bf16.msra.mxu0 0
    %1733 = vmatprep.subr.bf16.mxu0 0
    %1734 = vmatpush1.bf16.msra.mxu0 0
    %1735 = vmatprep.subr.bf16.mxu0 0
    %1736 = vmatpush1.bf16.msra.mxu0 0
    %1737 = vmatprep.subr.bf16.mxu0 0
    %1738 = vmatpush1.bf16.msra.mxu0 0
    %1739 = vmatprep.subr.bf16.mxu0 0
    %1740 = vmatpush1.bf16.msra.mxu0 0
    %1741 = vmatprep.subr.bf16.mxu0 0
    %1742 = vmatpush1.bf16.msra.mxu0 0
    %1743 = vmatprep.subr.bf16.mxu0 0
    %1744 = vmatpush1.bf16.msra.mxu0 0
    %1745 = vmatprep.subr.bf16.mxu0 0
    %1746 = vmatpush1.bf16.msra.mxu0 0
    %1747 = vmatprep.subr.bf16.mxu0 0
    %1748 = vmatpush1.bf16.msra.mxu0 0
    %1749 = vmatprep.subr.bf16.mxu0 0
    %1750 = vmatpush1.bf16.msra.mxu0 0
    %1751 = vmatprep.subr.bf16.mxu0 0
    %1752 = vmatpush1.bf16.msra.mxu0 0
    %1753 = vmatprep.subr.bf16.mxu0 0
    %1754 = vmatpush1.bf16.msra.mxu0 0
    %1755 = vmatprep.mubr.bf16.mxu0 0
    %1756 = vmatmul.mubr.bf16.gmra.mrb[0].mxu0 %v1718
    %v1757 = vpop.f32.mrb[0].mxu0
    %v1758 = vadd.f32 0.0, %v1757
    %v1759 = vpop.f32.mrb[0].mxu0
    %v1760 = vpop.f32.mrb[0].mxu0
    %v1761 = vpop.f32.mrb[0].mxu0
    %1762 = vdwg.mxu0
    %1763 = vrot.lane.b32.xlu0 %v1590, 64
    %v1764 = vpop.permute.xlu0 %1763
    %v1766 = vsel %vm243, %v1714, 0
    %v1769 = vsel %vm370, %v1764, 0
    %1771 = vmatprep.subr.bf16.mxu0 0
    %1772 = vmatpush1.bf16.msra.mxu0 %v1769
    %1773 = vmatprep.subr.bf16.mxu0 0
    %1774 = vmatpush1.bf16.msra.mxu0 0
    %1775 = vmatprep.subr.bf16.mxu0 0
    %1776 = vmatpush1.bf16.msra.mxu0 0
    %1777 = vmatprep.subr.bf16.mxu0 0
    %1778 = vmatpush1.bf16.msra.mxu0 0
    %1779 = vmatprep.subr.bf16.mxu0 0
    %1780 = vmatpush1.bf16.msra.mxu0 0
    %1781 = vmatprep.subr.bf16.mxu0 0
    %1782 = vmatpush1.bf16.msra.mxu0 0
    %1783 = vmatprep.subr.bf16.mxu0 0
    %1784 = vmatpush1.bf16.msra.mxu0 0
    %1785 = vmatprep.subr.bf16.mxu0 0
    %1786 = vmatpush1.bf16.msra.mxu0 0
    %1787 = vmatprep.subr.bf16.mxu0 0
    %1788 = vmatpush1.bf16.msra.mxu0 0
    %1789 = vmatprep.subr.bf16.mxu0 0
    %1790 = vmatpush1.bf16.msra.mxu0 0
    %1791 = vmatprep.subr.bf16.mxu0 0
    %1792 = vmatpush1.bf16.msra.mxu0 0
    %1793 = vmatprep.subr.bf16.mxu0 0
    %1794 = vmatpush1.bf16.msra.mxu0 0
    %1795 = vmatprep.subr.bf16.mxu0 0
    %1796 = vmatpush1.bf16.msra.mxu0 0
    %1797 = vmatprep.subr.bf16.mxu0 0
    %1798 = vmatpush1.bf16.msra.mxu0 0
    %1799 = vmatprep.subr.bf16.mxu0 0
    %1800 = vmatpush1.bf16.msra.mxu0 0
    %1801 = vmatprep.subr.bf16.mxu0 0
    %1802 = vmatpush1.bf16.msra.mxu0 0
    %1803 = vmatprep.mubr.bf16.mxu0 0
    %1804 = vmatmul.mubr.bf16.gmra.mrb[0].mxu0 %v1766
    %v1805 = vpop.f32.mrb[0].mxu0
    %v1806 = vadd.f32 0.0, %v1805
    %v1807 = vpop.f32.mrb[0].mxu0
    %v1808 = vpop.f32.mrb[0].mxu0
    %v1809 = vpop.f32.mrb[0].mxu0
    %1810 = vdwg.mxu0
    %v1811 = vpack.c.bf16 %v1806, %v1758
    %1812 = vrot.lane.b32.xlu0 %v1589, 120
    %v1813 = vpop.permute.xlu0 %1812
    %1814 = vrot.lane.b32.xlu0 %v1589, 88
    %v1815 = vpop.permute.xlu0 %1814
    %v1817 = vsel %vm243, %v1813, 0
    %v1820 = vsel %vm243, %v1815, 0
    %1822 = vmatprep.subr.bf16.mxu0 0
    %1823 = vmatpush1.bf16.xpose.msra.mxu0 %v1820
    %1824 = vmatprep.subr.bf16.mxu0 0
    %1825 = vmatpush1.bf16.xpose.msra.mxu0 0
    %1826 = vmatprep.subr.bf16.mxu0 0
    %1827 = vmatpush1.bf16.xpose.msra.mxu0 0
    %1828 = vmatprep.subr.bf16.mxu0 0
    %1829 = vmatpush1.bf16.xpose.msra.mxu0 0
    %1830 = vmatprep.subr.bf16.mxu0 0
    %1831 = vmatpush1.bf16.xpose.msra.mxu0 0
    %1832 = vmatprep.subr.bf16.mxu0 0
    %1833 = vmatpush1.bf16.xpose.msra.mxu0 0
    %1834 = vmatprep.subr.bf16.mxu0 0
    %1835 = vmatpush1.bf16.xpose.msra.mxu0 0
    %1836 = vmatprep.subr.bf16.mxu0 0
    %1837 = vmatpush1.bf16.xpose.msra.mxu0 0
    %1838 = vmatprep.subr.bf16.mxu0 0
    %1839 = vmatpush1.bf16.xpose.msra.mxu0 0
    %1840 = vmatprep.subr.bf16.mxu0 0
    %1841 = vmatpush1.bf16.xpose.msra.mxu0 0
    %1842 = vmatprep.subr.bf16.mxu0 0
    %1843 = vmatpush1.bf16.xpose.msra.mxu0 0
    %1844 = vmatprep.subr.bf16.mxu0 0
    %1845 = vmatpush1.bf16.xpose.msra.mxu0 0
    %1846 = vmatprep.subr.bf16.mxu0 0
    %1847 = vmatpush1.bf16.xpose.msra.mxu0 0
    %1848 = vmatprep.subr.bf16.mxu0 0
    %1849 = vmatpush1.bf16.xpose.msra.mxu0 0
    %1850 = vmatprep.subr.bf16.mxu0 0
    %1851 = vmatpush1.bf16.xpose.msra.mxu0 0
    %1852 = vmatprep.subr.bf16.mxu0 0
    %1853 = vmatpush1.bf16.xpose.msra.mxu0 0
    %1854 = vmatprep.mubr.bf16.mxu0 0
    %1855 = vmatmul.mubr.bf16.gmra.mrb[0].mxu0 %v1817
    %v1856 = vpop.f32.mrb[0].mxu0
    %v1857 = vadd.f32 0.0, %v1856
    %v1858 = vpop.f32.mrb[0].mxu0
    %v1859 = vpop.f32.mrb[0].mxu0
    %v1860 = vpop.f32.mrb[0].mxu0
    %1861 = vdwg.mxu0
    %1862 = vrot.lane.b32.xlu0 %v1590, 120
    %v1863 = vpop.permute.xlu0 %1862
    %1864 = vrot.lane.b32.xlu0 %v1590, 88
    %v1865 = vpop.permute.xlu0 %1864
    %v1867 = vsel %vm243, %v1863, 0
    %v1870 = vsel %vm243, %v1865, 0
    %1872 = vmatprep.subr.bf16.mxu0 0
    %1873 = vmatpush1.bf16.xpose.msra.mxu0 %v1870
    %1874 = vmatprep.subr.bf16.mxu0 0
    %1875 = vmatpush1.bf16.xpose.msra.mxu0 0
    %1876 = vmatprep.subr.bf16.mxu0 0
    %1877 = vmatpush1.bf16.xpose.msra.mxu0 0
    %1878 = vmatprep.subr.bf16.mxu0 0
    %1879 = vmatpush1.bf16.xpose.msra.mxu0 0
    %1880 = vmatprep.subr.bf16.mxu0 0
    %1881 = vmatpush1.bf16.xpose.msra.mxu0 0
    %1882 = vmatprep.subr.bf16.mxu0 0
    %1883 = vmatpush1.bf16.xpose.msra.mxu0 0
    %1884 = vmatprep.subr.bf16.mxu0 0
    %1885 = vmatpush1.bf16.xpose.msra.mxu0 0
    %1886 = vmatprep.subr.bf16.mxu0 0
    %1887 = vmatpush1.bf16.xpose.msra.mxu0 0
    %1888 = vmatprep.subr.bf16.mxu0 0
    %1889 = vmatpush1.bf16.xpose.msra.mxu0 0
    %1890 = vmatprep.subr.bf16.mxu0 0
    %1891 = vmatpush1.bf16.xpose.msra.mxu0 0
    %1892 = vmatprep.subr.bf16.mxu0 0
    %1893 = vmatpush1.bf16.xpose.msra.mxu0 0
    %1894 = vmatprep.subr.bf16.mxu0 0
    %1895 = vmatpush1.bf16.xpose.msra.mxu0 0
    %1896 = vmatprep.subr.bf16.mxu0 0
    %1897 = vmatpush1.bf16.xpose.msra.mxu0 0
    %1898 = vmatprep.subr.bf16.mxu0 0
    %1899 = vmatpush1.bf16.xpose.msra.mxu0 0
    %1900 = vmatprep.subr.bf16.mxu0 0
    %1901 = vmatpush1.bf16.xpose.msra.mxu0 0
    %1902 = vmatprep.subr.bf16.mxu0 0
    %1903 = vmatpush1.bf16.xpose.msra.mxu0 0
    %1904 = vmatprep.mubr.bf16.mxu0 0
    %1905 = vmatmul.mubr.bf16.gmra.mrb[0].mxu0 %v1867
    %v1906 = vpop.f32.mrb[0].mxu0
    %v1907 = vadd.f32 0.0, %v1906
    %v1908 = vpop.f32.mrb[0].mxu0
    %v1909 = vpop.f32.mrb[0].mxu0
    %v1910 = vpop.f32.mrb[0].mxu0
    %1911 = vdwg.mxu0
    %v1912 = vmul.f32 %v1857, 0.35355338
    %v1913 = vmul.f32 %v1907, 0.35355338
    %v1914 = vsel %vm243, %v1912, -inf
    %1915 = vmax.xlane.f32.xlu0 %v1914
    %v1916 = vpop.xlane.xlu0 %1915
    %v1917 = vsel %vm243, %v1913, -inf
    %1918 = vmax.xlane.f32.xlu0 %v1917
    %v1919 = vpop.xlane.xlu0 %1918
    %v1920 = vsub.f32 %v1912, %v1916
    %v1921 = vsub.f32 %v1913, %v1919
    %v1922 = vmul.f32 %v1920, 1.442695
    %v1923 = vpow.pop %v1922
    %v1924 = vmul.f32 %v1921, 1.442695
    %v1925 = vpow.pop %v1924
    %v1926 = vsel %vm243, %v1923, 0.0
    %1927 = vadd.xlane.f32.xlu0 %v1926
    %v1928 = vpop.xlane.xlu0 %1927
    %v1929 = vsel %vm243, %v1925, 0.0
    %1930 = vadd.xlane.f32.xlu0 %v1929
    %v1931 = vpop.xlane.xlu0 %1930
    %v1932 = vrcp.pop %v1928
    %v1933 = vrcp.pop %v1931
    %v1934 = vmul.f32 %v1923, %v1932
    %v1935 = vmul.f32 %v1925, %v1933
    %v1936 = vpack.c.bf16 %v1934, %v1934
    %v1937 = vpack.c.bf16 %v1935, %v1935
    %1938 = vrot.lane.b32.xlu0 %v1589, 56
    %v1939 = vpop.permute.xlu0 %1938
    %v1941 = vsel %vm243, %v1936, 0
    %v1944 = vsel %vm370, %v1939, 0
    %1946 = vmatprep.subr.bf16.mxu0 0
    %1947 = vmatpush1.bf16.msra.mxu0 %v1944
    %1948 = vmatprep.subr.bf16.mxu0 0
    %1949 = vmatpush1.bf16.msra.mxu0 0
    %1950 = vmatprep.subr.bf16.mxu0 0
    %1951 = vmatpush1.bf16.msra.mxu0 0
    %1952 = vmatprep.subr.bf16.mxu0 0
    %1953 = vmatpush1.bf16.msra.mxu0 0
    %1954 = vmatprep.subr.bf16.mxu0 0
    %1955 = vmatpush1.bf16.msra.mxu0 0
    %1956 = vmatprep.subr.bf16.mxu0 0
    %1957 = vmatpush1.bf16.msra.mxu0 0
    %1958 = vmatprep.subr.bf16.mxu0 0
    %1959 = vmatpush1.bf16.msra.mxu0 0
    %1960 = vmatprep.subr.bf16.mxu0 0
    %1961 = vmatpush1.bf16.msra.mxu0 0
    %1962 = vmatprep.subr.bf16.mxu0 0
    %1963 = vmatpush1.bf16.msra.mxu0 0
    %1964 = vmatprep.subr.bf16.mxu0 0
    %1965 = vmatpush1.bf16.msra.mxu0 0
    %1966 = vmatprep.subr.bf16.mxu0 0
    %1967 = vmatpush1.bf16.msra.mxu0 0
    %1968 = vmatprep.subr.bf16.mxu0 0
    %1969 = vmatpush1.bf16.msra.mxu0 0
    %1970 = vmatprep.subr.bf16.mxu0 0
    %1971 = vmatpush1.bf16.msra.mxu0 0
    %1972 = vmatprep.subr.bf16.mxu0 0
    %1973 = vmatpush1.bf16.msra.mxu0 0
    %1974 = vmatprep.subr.bf16.mxu0 0
    %1975 = vmatpush1.bf16.msra.mxu0 0
    %1976 = vmatprep.subr.bf16.mxu0 0
    %1977 = vmatpush1.bf16.msra.mxu0 0
    %1978 = vmatprep.mubr.bf16.mxu0 0
    %1979 = vmatmul.mubr.bf16.gmra.mrb[0].mxu0 %v1941
    %v1980 = vpop.f32.mrb[0].mxu0
    %v1981 = vadd.f32 0.0, %v1980
    %v1982 = vpop.f32.mrb[0].mxu0
    %v1983 = vpop.f32.mrb[0].mxu0
    %v1984 = vpop.f32.mrb[0].mxu0
    %1985 = vdwg.mxu0
    %1986 = vrot.lane.b32.xlu0 %v1590, 56
    %v1987 = vpop.permute.xlu0 %1986
    %v1989 = vsel %vm243, %v1937, 0
    %v1992 = vsel %vm370, %v1987, 0
    %1994 = vmatprep.subr.bf16.mxu0 0
    %1995 = vmatpush1.bf16.msra.mxu0 %v1992
    %1996 = vmatprep.subr.bf16.mxu0 0
    %1997 = vmatpush1.bf16.msra.mxu0 0
    %1998 = vmatprep.subr.bf16.mxu0 0
    %1999 = vmatpush1.bf16.msra.mxu0 0
    %2000 = vmatprep.subr.bf16.mxu0 0
    %2001 = vmatpush1.bf16.msra.mxu0 0
    %2002 = vmatprep.subr.bf16.mxu0 0
    %2003 = vmatpush1.bf16.msra.mxu0 0
    %2004 = vmatprep.subr.bf16.mxu0 0
    %2005 = vmatpush1.bf16.msra.mxu0 0
    %2006 = vmatprep.subr.bf16.mxu0 0
    %2007 = vmatpush1.bf16.msra.mxu0 0
    %2008 = vmatprep.subr.bf16.mxu0 0
    %2009 = vmatpush1.bf16.msra.mxu0 0
    %2010 = vmatprep.subr.bf16.mxu0 0
    %2011 = vmatpush1.bf16.msra.mxu0 0
    %2012 = vmatprep.subr.bf16.mxu0 0
    %2013 = vmatpush1.bf16.msra.mxu0 0
    %2014 = vmatprep.subr.bf16.mxu0 0
    %2015 = vmatpush1.bf16.msra.mxu0 0
    %2016 = vmatprep.subr.bf16.mxu0 0
    %2017 = vmatpush1.bf16.msra.mxu0 0
    %2018 = vmatprep.subr.bf16.mxu0 0
    %2019 = vmatpush1.bf16.msra.mxu0 0
    %2020 = vmatprep.subr.bf16.mxu0 0
    %2021 = vmatpush1.bf16.msra.mxu0 0
    %2022 = vmatprep.subr.bf16.mxu0 0
    %2023 = vmatpush1.bf16.msra.mxu0 0
    %2024 = vmatprep.subr.bf16.mxu0 0
    %2025 = vmatpush1.bf16.msra.mxu0 0
    %2026 = vmatprep.mubr.bf16.mxu0 0
    %2027 = vmatmul.mubr.bf16.gmra.mrb[0].mxu0 %v1989
    %v2028 = vpop.f32.mrb[0].mxu0
    %v2029 = vadd.f32 0.0, %v2028
    %v2030 = vpop.f32.mrb[0].mxu0
    %v2031 = vpop.f32.mrb[0].mxu0
    %v2032 = vpop.f32.mrb[0].mxu0
    %2033 = vdwg.mxu0
    %v2034 = vpack.c.bf16 %v2029, %v1981
    %v2036 = vsel %vm243, %v2034, 0
    %v2039 = vsel %vm370, %v1487, 0
    %2041 = vmatprep.subr.bf16.mxu0 0
    %2042 = vmatpush1.bf16.msra.mxu0 %v2039
    %2043 = vmatprep.subr.bf16.mxu0 0
    %2044 = vmatpush1.bf16.msra.mxu0 0
    %2045 = vmatprep.subr.bf16.mxu0 0
    %2046 = vmatpush1.bf16.msra.mxu0 0
    %2047 = vmatprep.subr.bf16.mxu0 0
    %2048 = vmatpush1.bf16.msra.mxu0 0
    %2049 = vmatprep.subr.bf16.mxu0 0
    %2050 = vmatpush1.bf16.msra.mxu0 0
    %2051 = vmatprep.subr.bf16.mxu0 0
    %2052 = vmatpush1.bf16.msra.mxu0 0
    %2053 = vmatprep.subr.bf16.mxu0 0
    %2054 = vmatpush1.bf16.msra.mxu0 0
    %2055 = vmatprep.subr.bf16.mxu0 0
    %2056 = vmatpush1.bf16.msra.mxu0 0
    %2057 = vmatprep.subr.bf16.mxu0 0
    %2058 = vmatpush1.bf16.msra.mxu0 0
    %2059 = vmatprep.subr.bf16.mxu0 0
    %2060 = vmatpush1.bf16.msra.mxu0 0
    %2061 = vmatprep.subr.bf16.mxu0 0
    %2062 = vmatpush1.bf16.msra.mxu0 0
    %2063 = vmatprep.subr.bf16.mxu0 0
    %2064 = vmatpush1.bf16.msra.mxu0 0
    %2065 = vmatprep.subr.bf16.mxu0 0
    %2066 = vmatpush1.bf16.msra.mxu0 0
    %2067 = vmatprep.subr.bf16.mxu0 0
    %2068 = vmatpush1.bf16.msra.mxu0 0
    %2069 = vmatprep.subr.bf16.mxu0 0
    %2070 = vmatpush1.bf16.msra.mxu0 0
    %2071 = vmatprep.subr.bf16.mxu0 0
    %2072 = vmatpush1.bf16.msra.mxu0 0
    %2073 = vmatprep.mubr.bf16.mxu0 0
    %2074 = vmatmul.mubr.bf16.gmra.mrb[0].mxu0 %v2036
    %v2075 = vpop.f32.mrb[0].mxu0
    %v2076 = vadd.f32 0.0, %v2075
    %v2077 = vpop.f32.mrb[0].mxu0
    %v2078 = vpop.f32.mrb[0].mxu0
    %v2079 = vadd.f32 0.0, %v2078
    %v2080 = vpop.f32.mrb[0].mxu0
    %2081 = vdwg.mxu0
    %v2083 = vsel %vm243, %v1811, 0
    %v2086 = vsel %vm370, %v1486, 0
    %2088 = vmatprep.subr.bf16.mxu0 0
    %2089 = vmatpush1.bf16.msra.mxu0 %v2086
    %2090 = vmatprep.subr.bf16.mxu0 0
    %2091 = vmatpush1.bf16.msra.mxu0 0
    %2092 = vmatprep.subr.bf16.mxu0 0
    %2093 = vmatpush1.bf16.msra.mxu0 0
    %2094 = vmatprep.subr.bf16.mxu0 0
    %2095 = vmatpush1.bf16.msra.mxu0 0
    %2096 = vmatprep.subr.bf16.mxu0 0
    %2097 = vmatpush1.bf16.msra.mxu0 0
    %2098 = vmatprep.subr.bf16.mxu0 0
    %2099 = vmatpush1.bf16.msra.mxu0 0
    %2100 = vmatprep.subr.bf16.mxu0 0
    %2101 = vmatpush1.bf16.msra.mxu0 0
    %2102 = vmatprep.subr.bf16.mxu0 0
    %2103 = vmatpush1.bf16.msra.mxu0 0
    %2104 = vmatprep.subr.bf16.mxu0 0
    %2105 = vmatpush1.bf16.msra.mxu0 0
    %2106 = vmatprep.subr.bf16.mxu0 0
    %2107 = vmatpush1.bf16.msra.mxu0 0
    %2108 = vmatprep.subr.bf16.mxu0 0
    %2109 = vmatpush1.bf16.msra.mxu0 0
    %2110 = vmatprep.subr.bf16.mxu0 0
    %2111 = vmatpush1.bf16.msra.mxu0 0
    %2112 = vmatprep.subr.bf16.mxu0 0
    %2113 = vmatpush1.bf16.msra.mxu0 0
    %2114 = vmatprep.subr.bf16.mxu0 0
    %2115 = vmatpush1.bf16.msra.mxu0 0
    %2116 = vmatprep.subr.bf16.mxu0 0
    %2117 = vmatpush1.bf16.msra.mxu0 0
    %2118 = vmatprep.subr.bf16.mxu0 0
    %2119 = vmatpush1.bf16.msra.mxu0 0
    %2120 = vmatprep.mubr.bf16.mxu0 0
    %2121 = vmatmul.mubr.bf16.gmra.mrb[0].mxu0 %v2083
    %v2122 = vpop.f32.mrb[0].mxu0
    %v2123 = vadd.f32 %v2076, %v2122
    %v2124 = vpop.f32.mrb[0].mxu0
    %v2125 = vpop.f32.mrb[0].mxu0
    %v2126 = vadd.f32 %v2079, %v2125
    %v2127 = vpop.f32.mrb[0].mxu0
    %2128 = vdwg.mxu0
    %2129 = vrot.lane.b32.xlu0 %v1589, 112
    %v2130 = vpop.permute.xlu0 %2129
    %2131 = vrot.lane.b32.xlu0 %v1589, 80
    %v2132 = vpop.permute.xlu0 %2131
    %v2134 = vsel %vm243, %v2130, 0
    %v2137 = vsel %vm243, %v2132, 0
    %2139 = vmatprep.subr.bf16.mxu0 0
    %2140 = vmatpush1.bf16.xpose.msra.mxu0 %v2137
    %2141 = vmatprep.subr.bf16.mxu0 0
    %2142 = vmatpush1.bf16.xpose.msra.mxu0 0
    %2143 = vmatprep.subr.bf16.mxu0 0
    %2144 = vmatpush1.bf16.xpose.msra.mxu0 0
    %2145 = vmatprep.subr.bf16.mxu0 0
    %2146 = vmatpush1.bf16.xpose.msra.mxu0 0
    %2147 = vmatprep.subr.bf16.mxu0 0
    %2148 = vmatpush1.bf16.xpose.msra.mxu0 0
    %2149 = vmatprep.subr.bf16.mxu0 0
    %2150 = vmatpush1.bf16.xpose.msra.mxu0 0
    %2151 = vmatprep.subr.bf16.mxu0 0
    %2152 = vmatpush1.bf16.xpose.msra.mxu0 0
    %2153 = vmatprep.subr.bf16.mxu0 0
    %2154 = vmatpush1.bf16.xpose.msra.mxu0 0
    %2155 = vmatprep.subr.bf16.mxu0 0
    %2156 = vmatpush1.bf16.xpose.msra.mxu0 0
    %2157 = vmatprep.subr.bf16.mxu0 0
    %2158 = vmatpush1.bf16.xpose.msra.mxu0 0
    %2159 = vmatprep.subr.bf16.mxu0 0
    %2160 = vmatpush1.bf16.xpose.msra.mxu0 0
    %2161 = vmatprep.subr.bf16.mxu0 0
    %2162 = vmatpush1.bf16.xpose.msra.mxu0 0
    %2163 = vmatprep.subr.bf16.mxu0 0
    %2164 = vmatpush1.bf16.xpose.msra.mxu0 0
    %2165 = vmatprep.subr.bf16.mxu0 0
    %2166 = vmatpush1.bf16.xpose.msra.mxu0 0
    %2167 = vmatprep.subr.bf16.mxu0 0
    %2168 = vmatpush1.bf16.xpose.msra.mxu0 0
    %2169 = vmatprep.subr.bf16.mxu0 0
    %2170 = vmatpush1.bf16.xpose.msra.mxu0 0
    %2171 = vmatprep.mubr.bf16.mxu0 0
    %2172 = vmatmul.mubr.bf16.gmra.mrb[0].mxu0 %v2134
    %v2173 = vpop.f32.mrb[0].mxu0
    %v2174 = vadd.f32 0.0, %v2173
    %v2175 = vpop.f32.mrb[0].mxu0
    %v2176 = vpop.f32.mrb[0].mxu0
    %v2177 = vpop.f32.mrb[0].mxu0
    %2178 = vdwg.mxu0
    %2179 = vrot.lane.b32.xlu0 %v1590, 112
    %v2180 = vpop.permute.xlu0 %2179
    %2181 = vrot.lane.b32.xlu0 %v1590, 80
    %v2182 = vpop.permute.xlu0 %2181
    %v2184 = vsel %vm243, %v2180, 0
    %v2187 = vsel %vm243, %v2182, 0
    %2189 = vmatprep.subr.bf16.mxu0 0
    %2190 = vmatpush1.bf16.xpose.msra.mxu0 %v2187
    %2191 = vmatprep.subr.bf16.mxu0 0
    %2192 = vmatpush1.bf16.xpose.msra.mxu0 0
    %2193 = vmatprep.subr.bf16.mxu0 0
    %2194 = vmatpush1.bf16.xpose.msra.mxu0 0
    %2195 = vmatprep.subr.bf16.mxu0 0
    %2196 = vmatpush1.bf16.xpose.msra.mxu0 0
    %2197 = vmatprep.subr.bf16.mxu0 0
    %2198 = vmatpush1.bf16.xpose.msra.mxu0 0
    %2199 = vmatprep.subr.bf16.mxu0 0
    %2200 = vmatpush1.bf16.xpose.msra.mxu0 0
    %2201 = vmatprep.subr.bf16.mxu0 0
    %2202 = vmatpush1.bf16.xpose.msra.mxu0 0
    %2203 = vmatprep.subr.bf16.mxu0 0
    %2204 = vmatpush1.bf16.xpose.msra.mxu0 0
    %2205 = vmatprep.subr.bf16.mxu0 0
    %2206 = vmatpush1.bf16.xpose.msra.mxu0 0
    %2207 = vmatprep.subr.bf16.mxu0 0
    %2208 = vmatpush1.bf16.xpose.msra.mxu0 0
    %2209 = vmatprep.subr.bf16.mxu0 0
    %2210 = vmatpush1.bf16.xpose.msra.mxu0 0
    %2211 = vmatprep.subr.bf16.mxu0 0
    %2212 = vmatpush1.bf16.xpose.msra.mxu0 0
    %2213 = vmatprep.subr.bf16.mxu0 0
    %2214 = vmatpush1.bf16.xpose.msra.mxu0 0
    %2215 = vmatprep.subr.bf16.mxu0 0
    %2216 = vmatpush1.bf16.xpose.msra.mxu0 0
    %2217 = vmatprep.subr.bf16.mxu0 0
    %2218 = vmatpush1.bf16.xpose.msra.mxu0 0
    %2219 = vmatprep.subr.bf16.mxu0 0
    %2220 = vmatpush1.bf16.xpose.msra.mxu0 0
    %2221 = vmatprep.mubr.bf16.mxu0 0
    %2222 = vmatmul.mubr.bf16.gmra.mrb[0].mxu0 %v2184
    %v2223 = vpop.f32.mrb[0].mxu0
    %v2224 = vadd.f32 0.0, %v2223
    %v2225 = vpop.f32.mrb[0].mxu0
    %v2226 = vpop.f32.mrb[0].mxu0
    %v2227 = vpop.f32.mrb[0].mxu0
    %2228 = vdwg.mxu0
    %v2229 = vmul.f32 %v2174, 0.35355338
    %v2230 = vmul.f32 %v2224, 0.35355338
    %v2231 = vsel %vm243, %v2229, -inf
    %2232 = vmax.xlane.f32.xlu0 %v2231
    %v2233 = vpop.xlane.xlu0 %2232
    %v2234 = vsel %vm243, %v2230, -inf
    %2235 = vmax.xlane.f32.xlu0 %v2234
    %v2236 = vpop.xlane.xlu0 %2235
    %v2237 = vsub.f32 %v2229, %v2233
    %v2238 = vsub.f32 %v2230, %v2236
    %v2239 = vmul.f32 %v2237, 1.442695
    %v2240 = vpow.pop %v2239
    %v2241 = vmul.f32 %v2238, 1.442695
    %v2242 = vpow.pop %v2241
    %v2243 = vsel %vm243, %v2240, 0.0
    %2244 = vadd.xlane.f32.xlu0 %v2243
    %v2245 = vpop.xlane.xlu0 %2244
    %v2246 = vsel %vm243, %v2242, 0.0
    %2247 = vadd.xlane.f32.xlu0 %v2246
    %v2248 = vpop.xlane.xlu0 %2247
    %v2249 = vrcp.pop %v2245
    %v2250 = vrcp.pop %v2248
    %v2251 = vmul.f32 %v2240, %v2249
    %v2252 = vmul.f32 %v2242, %v2250
    %v2253 = vpack.c.bf16 %v2251, %v2251
    %v2254 = vpack.c.bf16 %v2252, %v2252
    %2255 = vrot.lane.b32.xlu0 %v1589, 48
    %v2256 = vpop.permute.xlu0 %2255
    %v2258 = vsel %vm243, %v2253, 0
    %v2261 = vsel %vm370, %v2256, 0
    %2263 = vmatprep.subr.bf16.mxu0 0
    %2264 = vmatpush1.bf16.msra.mxu0 %v2261
    %2265 = vmatprep.subr.bf16.mxu0 0
    %2266 = vmatpush1.bf16.msra.mxu0 0
    %2267 = vmatprep.subr.bf16.mxu0 0
    %2268 = vmatpush1.bf16.msra.mxu0 0
    %2269 = vmatprep.subr.bf16.mxu0 0
    %2270 = vmatpush1.bf16.msra.mxu0 0
    %2271 = vmatprep.subr.bf16.mxu0 0
    %2272 = vmatpush1.bf16.msra.mxu0 0
    %2273 = vmatprep.subr.bf16.mxu0 0
    %2274 = vmatpush1.bf16.msra.mxu0 0
    %2275 = vmatprep.subr.bf16.mxu0 0
    %2276 = vmatpush1.bf16.msra.mxu0 0
    %2277 = vmatprep.subr.bf16.mxu0 0
    %2278 = vmatpush1.bf16.msra.mxu0 0
    %2279 = vmatprep.subr.bf16.mxu0 0
    %2280 = vmatpush1.bf16.msra.mxu0 0
    %2281 = vmatprep.subr.bf16.mxu0 0
    %2282 = vmatpush1.bf16.msra.mxu0 0
    %2283 = vmatprep.subr.bf16.mxu0 0
    %2284 = vmatpush1.bf16.msra.mxu0 0
    %2285 = vmatprep.subr.bf16.mxu0 0
    %2286 = vmatpush1.bf16.msra.mxu0 0
    %2287 = vmatprep.subr.bf16.mxu0 0
    %2288 = vmatpush1.bf16.msra.mxu0 0
    %2289 = vmatprep.subr.bf16.mxu0 0
    %2290 = vmatpush1.bf16.msra.mxu0 0
    %2291 = vmatprep.subr.bf16.mxu0 0
    %2292 = vmatpush1.bf16.msra.mxu0 0
    %2293 = vmatprep.subr.bf16.mxu0 0
    %2294 = vmatpush1.bf16.msra.mxu0 0
    %2295 = vmatprep.mubr.bf16.mxu0 0
    %2296 = vmatmul.mubr.bf16.gmra.mrb[0].mxu0 %v2258
    %v2297 = vpop.f32.mrb[0].mxu0
    %v2298 = vadd.f32 0.0, %v2297
    %v2299 = vpop.f32.mrb[0].mxu0
    %v2300 = vpop.f32.mrb[0].mxu0
    %v2301 = vpop.f32.mrb[0].mxu0
    %2302 = vdwg.mxu0
    %2303 = vrot.lane.b32.xlu0 %v1590, 48
    %v2304 = vpop.permute.xlu0 %2303
    %v2306 = vsel %vm243, %v2254, 0
    %v2309 = vsel %vm370, %v2304, 0
    %2311 = vmatprep.subr.bf16.mxu0 0
    %2312 = vmatpush1.bf16.msra.mxu0 %v2309
    %2313 = vmatprep.subr.bf16.mxu0 0
    %2314 = vmatpush1.bf16.msra.mxu0 0
    %2315 = vmatprep.subr.bf16.mxu0 0
    %2316 = vmatpush1.bf16.msra.mxu0 0
    %2317 = vmatprep.subr.bf16.mxu0 0
    %2318 = vmatpush1.bf16.msra.mxu0 0
    %2319 = vmatprep.subr.bf16.mxu0 0
    %2320 = vmatpush1.bf16.msra.mxu0 0
    %2321 = vmatprep.subr.bf16.mxu0 0
    %2322 = vmatpush1.bf16.msra.mxu0 0
    %2323 = vmatprep.subr.bf16.mxu0 0
    %2324 = vmatpush1.bf16.msra.mxu0 0
    %2325 = vmatprep.subr.bf16.mxu0 0
    %2326 = vmatpush1.bf16.msra.mxu0 0
    %2327 = vmatprep.subr.bf16.mxu0 0
    %2328 = vmatpush1.bf16.msra.mxu0 0
    %2329 = vmatprep.subr.bf16.mxu0 0
    %2330 = vmatpush1.bf16.msra.mxu0 0
    %2331 = vmatprep.subr.bf16.mxu0 0
    %2332 = vmatpush1.bf16.msra.mxu0 0
    %2333 = vmatprep.subr.bf16.mxu0 0
    %2334 = vmatpush1.bf16.msra.mxu0 0
    %2335 = vmatprep.subr.bf16.mxu0 0
    %2336 = vmatpush1.bf16.msra.mxu0 0
    %2337 = vmatprep.subr.bf16.mxu0 0
    %2338 = vmatpush1.bf16.msra.mxu0 0
    %2339 = vmatprep.subr.bf16.mxu0 0
    %2340 = vmatpush1.bf16.msra.mxu0 0
    %2341 = vmatprep.subr.bf16.mxu0 0
    %2342 = vmatpush1.bf16.msra.mxu0 0
    %2343 = vmatprep.mubr.bf16.mxu0 0
    %2344 = vmatmul.mubr.bf16.gmra.mrb[0].mxu0 %v2306
    %v2345 = vpop.f32.mrb[0].mxu0
    %v2346 = vadd.f32 0.0, %v2345
    %v2347 = vpop.f32.mrb[0].mxu0
    %v2348 = vpop.f32.mrb[0].mxu0
    %v2349 = vpop.f32.mrb[0].mxu0
    %2350 = vdwg.mxu0
    %v2351 = vpack.c.bf16 %v2346, %v2298
    %v2353 = vsel %vm243, %v2351, 0
    %v2356 = vsel %vm370, %v1488, 0
    %2358 = vmatprep.subr.bf16.mxu0 0
    %2359 = vmatpush1.bf16.msra.mxu0 %v2356
    %2360 = vmatprep.subr.bf16.mxu0 0
    %2361 = vmatpush1.bf16.msra.mxu0 0
    %2362 = vmatprep.subr.bf16.mxu0 0
    %2363 = vmatpush1.bf16.msra.mxu0 0
    %2364 = vmatprep.subr.bf16.mxu0 0
    %2365 = vmatpush1.bf16.msra.mxu0 0
    %2366 = vmatprep.subr.bf16.mxu0 0
    %2367 = vmatpush1.bf16.msra.mxu0 0
    %2368 = vmatprep.subr.bf16.mxu0 0
    %2369 = vmatpush1.bf16.msra.mxu0 0
    %2370 = vmatprep.subr.bf16.mxu0 0
    %2371 = vmatpush1.bf16.msra.mxu0 0
    %2372 = vmatprep.subr.bf16.mxu0 0
    %2373 = vmatpush1.bf16.msra.mxu0 0
    %2374 = vmatprep.subr.bf16.mxu0 0
    %2375 = vmatpush1.bf16.msra.mxu0 0
    %2376 = vmatprep.subr.bf16.mxu0 0
    %2377 = vmatpush1.bf16.msra.mxu0 0
    %2378 = vmatprep.subr.bf16.mxu0 0
    %2379 = vmatpush1.bf16.msra.mxu0 0
    %2380 = vmatprep.subr.bf16.mxu0 0
    %2381 = vmatpush1.bf16.msra.mxu0 0
    %2382 = vmatprep.subr.bf16.mxu0 0
    %2383 = vmatpush1.bf16.msra.mxu0 0
    %2384 = vmatprep.subr.bf16.mxu0 0
    %2385 = vmatpush1.bf16.msra.mxu0 0
    %2386 = vmatprep.subr.bf16.mxu0 0
    %2387 = vmatpush1.bf16.msra.mxu0 0
    %2388 = vmatprep.subr.bf16.mxu0 0
    %2389 = vmatpush1.bf16.msra.mxu0 0
    %2390 = vmatprep.mubr.bf16.mxu0 0
    %2391 = vmatmul.mubr.bf16.gmra.mrb[0].mxu0 %v2353
    %v2392 = vpop.f32.mrb[0].mxu0
    %v2393 = vadd.f32 0.0, %v2392
    %v2394 = vpop.f32.mrb[0].mxu0
    %v2395 = vpop.f32.mrb[0].mxu0
    %v2396 = vadd.f32 0.0, %v2395
    %v2397 = vpop.f32.mrb[0].mxu0
    %2398 = vdwg.mxu0
    %v2399 = vadd.f32 %v2123, %v2393
    %v2400 = vadd.f32 %v2126, %v2396
    %2401 = vrot.lane.b32.xlu0 %v1589, 104
    %v2402 = vpop.permute.xlu0 %2401
    %2403 = vrot.lane.b32.xlu0 %v1589, 72
    %v2404 = vpop.permute.xlu0 %2403
    %v2406 = vsel %vm243, %v2402, 0
    %v2409 = vsel %vm243, %v2404, 0
    %2411 = vmatprep.subr.bf16.mxu0 0
    %2412 = vmatpush1.bf16.xpose.msra.mxu0 %v2409
    %2413 = vmatprep.subr.bf16.mxu0 0
    %2414 = vmatpush1.bf16.xpose.msra.mxu0 0
    %2415 = vmatprep.subr.bf16.mxu0 0
    %2416 = vmatpush1.bf16.xpose.msra.mxu0 0
    %2417 = vmatprep.subr.bf16.mxu0 0
    %2418 = vmatpush1.bf16.xpose.msra.mxu0 0
    %2419 = vmatprep.subr.bf16.mxu0 0
    %2420 = vmatpush1.bf16.xpose.msra.mxu0 0
    %2421 = vmatprep.subr.bf16.mxu0 0
    %2422 = vmatpush1.bf16.xpose.msra.mxu0 0
    %2423 = vmatprep.subr.bf16.mxu0 0
    %2424 = vmatpush1.bf16.xpose.msra.mxu0 0
    %2425 = vmatprep.subr.bf16.mxu0 0
    %2426 = vmatpush1.bf16.xpose.msra.mxu0 0
    %2427 = vmatprep.subr.bf16.mxu0 0
    %2428 = vmatpush1.bf16.xpose.msra.mxu0 0
    %2429 = vmatprep.subr.bf16.mxu0 0
    %2430 = vmatpush1.bf16.xpose.msra.mxu0 0
    %2431 = vmatprep.subr.bf16.mxu0 0
    %2432 = vmatpush1.bf16.xpose.msra.mxu0 0
    %2433 = vmatprep.subr.bf16.mxu0 0
    %2434 = vmatpush1.bf16.xpose.msra.mxu0 0
    %2435 = vmatprep.subr.bf16.mxu0 0
    %2436 = vmatpush1.bf16.xpose.msra.mxu0 0
    %2437 = vmatprep.subr.bf16.mxu0 0
    %2438 = vmatpush1.bf16.xpose.msra.mxu0 0
    %2439 = vmatprep.subr.bf16.mxu0 0
    %2440 = vmatpush1.bf16.xpose.msra.mxu0 0
    %2441 = vmatprep.subr.bf16.mxu0 0
    %2442 = vmatpush1.bf16.xpose.msra.mxu0 0
    %2443 = vmatprep.mubr.bf16.mxu0 0
    %2444 = vmatmul.mubr.bf16.gmra.mrb[0].mxu0 %v2406
    %v2445 = vpop.f32.mrb[0].mxu0
    %v2446 = vadd.f32 0.0, %v2445
    %v2447 = vpop.f32.mrb[0].mxu0
    %v2448 = vpop.f32.mrb[0].mxu0
    %v2449 = vpop.f32.mrb[0].mxu0
    %2450 = vdwg.mxu0
    %2451 = vrot.lane.b32.xlu0 %v1590, 104
    %v2452 = vpop.permute.xlu0 %2451
    %2453 = vrot.lane.b32.xlu0 %v1590, 72
    %v2454 = vpop.permute.xlu0 %2453
    %v2456 = vsel %vm243, %v2452, 0
    %v2459 = vsel %vm243, %v2454, 0
    %2461 = vmatprep.subr.bf16.mxu0 0
    %2462 = vmatpush1.bf16.xpose.msra.mxu0 %v2459
    %2463 = vmatprep.subr.bf16.mxu0 0
    %2464 = vmatpush1.bf16.xpose.msra.mxu0 0
    %2465 = vmatprep.subr.bf16.mxu0 0
    %2466 = vmatpush1.bf16.xpose.msra.mxu0 0
    %2467 = vmatprep.subr.bf16.mxu0 0
    %2468 = vmatpush1.bf16.xpose.msra.mxu0 0
    %2469 = vmatprep.subr.bf16.mxu0 0
    %2470 = vmatpush1.bf16.xpose.msra.mxu0 0
    %2471 = vmatprep.subr.bf16.mxu0 0
    %2472 = vmatpush1.bf16.xpose.msra.mxu0 0
    %2473 = vmatprep.subr.bf16.mxu0 0
    %2474 = vmatpush1.bf16.xpose.msra.mxu0 0
    %2475 = vmatprep.subr.bf16.mxu0 0
    %2476 = vmatpush1.bf16.xpose.msra.mxu0 0
    %2477 = vmatprep.subr.bf16.mxu0 0
    %2478 = vmatpush1.bf16.xpose.msra.mxu0 0
    %2479 = vmatprep.subr.bf16.mxu0 0
    %2480 = vmatpush1.bf16.xpose.msra.mxu0 0
    %2481 = vmatprep.subr.bf16.mxu0 0
    %2482 = vmatpush1.bf16.xpose.msra.mxu0 0
    %2483 = vmatprep.subr.bf16.mxu0 0
    %2484 = vmatpush1.bf16.xpose.msra.mxu0 0
    %2485 = vmatprep.subr.bf16.mxu0 0
    %2486 = vmatpush1.bf16.xpose.msra.mxu0 0
    %2487 = vmatprep.subr.bf16.mxu0 0
    %2488 = vmatpush1.bf16.xpose.msra.mxu0 0
    %2489 = vmatprep.subr.bf16.mxu0 0
    %2490 = vmatpush1.bf16.xpose.msra.mxu0 0
    %2491 = vmatprep.subr.bf16.mxu0 0
    %2492 = vmatpush1.bf16.xpose.msra.mxu0 0
    %2493 = vmatprep.mubr.bf16.mxu0 0
    %2494 = vmatmul.mubr.bf16.gmra.mrb[0].mxu0 %v2456
    %v2495 = vpop.f32.mrb[0].mxu0
    %v2496 = vadd.f32 0.0, %v2495
    %v2497 = vpop.f32.mrb[0].mxu0
    %v2498 = vpop.f32.mrb[0].mxu0
    %v2499 = vpop.f32.mrb[0].mxu0
    %2500 = vdwg.mxu0
    %v2501 = vmul.f32 %v2446, 0.35355338
    %v2502 = vmul.f32 %v2496, 0.35355338
    %v2503 = vsel %vm243, %v2501, -inf
    %2504 = vmax.xlane.f32.xlu0 %v2503
    %v2505 = vpop.xlane.xlu0 %2504
    %v2506 = vsel %vm243, %v2502, -inf
    %2507 = vmax.xlane.f32.xlu0 %v2506
    %v2508 = vpop.xlane.xlu0 %2507
    %v2509 = vsub.f32 %v2501, %v2505
    %v2510 = vsub.f32 %v2502, %v2508
    %v2511 = vmul.f32 %v2509, 1.442695
    %v2512 = vpow.pop %v2511
    %v2513 = vmul.f32 %v2510, 1.442695
    %v2514 = vpow.pop %v2513
    %v2515 = vsel %vm243, %v2512, 0.0
    %2516 = vadd.xlane.f32.xlu0 %v2515
    %v2517 = vpop.xlane.xlu0 %2516
    %v2518 = vsel %vm243, %v2514, 0.0
    %2519 = vadd.xlane.f32.xlu0 %v2518
    %v2520 = vpop.xlane.xlu0 %2519
    %v2521 = vrcp.pop %v2517
    %v2522 = vrcp.pop %v2520
    %v2523 = vmul.f32 %v2512, %v2521
    %v2524 = vmul.f32 %v2514, %v2522
    %v2525 = vpack.c.bf16 %v2523, %v2523
    %v2526 = vpack.c.bf16 %v2524, %v2524
    %2527 = vrot.lane.b32.xlu0 %v1589, 40
    %v2528 = vpop.permute.xlu0 %2527
    %v2530 = vsel %vm243, %v2525, 0
    %v2533 = vsel %vm370, %v2528, 0
    %2535 = vmatprep.subr.bf16.mxu0 0
    %2536 = vmatpush1.bf16.msra.mxu0 %v2533
    %2537 = vmatprep.subr.bf16.mxu0 0
    %2538 = vmatpush1.bf16.msra.mxu0 0
    %2539 = vmatprep.subr.bf16.mxu0 0
    %2540 = vmatpush1.bf16.msra.mxu0 0
    %2541 = vmatprep.subr.bf16.mxu0 0
    %2542 = vmatpush1.bf16.msra.mxu0 0
    %2543 = vmatprep.subr.bf16.mxu0 0
    %2544 = vmatpush1.bf16.msra.mxu0 0
    %2545 = vmatprep.subr.bf16.mxu0 0
    %2546 = vmatpush1.bf16.msra.mxu0 0
    %2547 = vmatprep.subr.bf16.mxu0 0
    %2548 = vmatpush1.bf16.msra.mxu0 0
    %2549 = vmatprep.subr.bf16.mxu0 0
    %2550 = vmatpush1.bf16.msra.mxu0 0
    %2551 = vmatprep.subr.bf16.mxu0 0
    %2552 = vmatpush1.bf16.msra.mxu0 0
    %2553 = vmatprep.subr.bf16.mxu0 0
    %2554 = vmatpush1.bf16.msra.mxu0 0
    %2555 = vmatprep.subr.bf16.mxu0 0
    %2556 = vmatpush1.bf16.msra.mxu0 0
    %2557 = vmatprep.subr.bf16.mxu0 0
    %2558 = vmatpush1.bf16.msra.mxu0 0
    %2559 = vmatprep.subr.bf16.mxu0 0
    %2560 = vmatpush1.bf16.msra.mxu0 0
    %2561 = vmatprep.subr.bf16.mxu0 0
    %2562 = vmatpush1.bf16.msra.mxu0 0
    %2563 = vmatprep.subr.bf16.mxu0 0
    %2564 = vmatpush1.bf16.msra.mxu0 0
    %2565 = vmatprep.subr.bf16.mxu0 0
    %2566 = vmatpush1.bf16.msra.mxu0 0
    %2567 = vmatprep.mubr.bf16.mxu0 0
    %2568 = vmatmul.mubr.bf16.gmra.mrb[0].mxu0 %v2530
    %v2569 = vpop.f32.mrb[0].mxu0
    %v2570 = vadd.f32 0.0, %v2569
    %v2571 = vpop.f32.mrb[0].mxu0
    %v2572 = vpop.f32.mrb[0].mxu0
    %v2573 = vpop.f32.mrb[0].mxu0
    %2574 = vdwg.mxu0
    %2575 = vrot.lane.b32.xlu0 %v1590, 40
    %v2576 = vpop.permute.xlu0 %2575
    %v2578 = vsel %vm243, %v2526, 0
    %v2581 = vsel %vm370, %v2576, 0
    %2583 = vmatprep.subr.bf16.mxu0 0
    %2584 = vmatpush1.bf16.msra.mxu0 %v2581
    %2585 = vmatprep.subr.bf16.mxu0 0
    %2586 = vmatpush1.bf16.msra.mxu0 0
    %2587 = vmatprep.subr.bf16.mxu0 0
    %2588 = vmatpush1.bf16.msra.mxu0 0
    %2589 = vmatprep.subr.bf16.mxu0 0
    %2590 = vmatpush1.bf16.msra.mxu0 0
    %2591 = vmatprep.subr.bf16.mxu0 0
    %2592 = vmatpush1.bf16.msra.mxu0 0
    %2593 = vmatprep.subr.bf16.mxu0 0
    %2594 = vmatpush1.bf16.msra.mxu0 0
    %2595 = vmatprep.subr.bf16.mxu0 0
    %2596 = vmatpush1.bf16.msra.mxu0 0
    %2597 = vmatprep.subr.bf16.mxu0 0
    %2598 = vmatpush1.bf16.msra.mxu0 0
    %2599 = vmatprep.subr.bf16.mxu0 0
    %2600 = vmatpush1.bf16.msra.mxu0 0
    %2601 = vmatprep.subr.bf16.mxu0 0
    %2602 = vmatpush1.bf16.msra.mxu0 0
    %2603 = vmatprep.subr.bf16.mxu0 0
    %2604 = vmatpush1.bf16.msra.mxu0 0
    %2605 = vmatprep.subr.bf16.mxu0 0
    %2606 = vmatpush1.bf16.msra.mxu0 0
    %2607 = vmatprep.subr.bf16.mxu0 0
    %2608 = vmatpush1.bf16.msra.mxu0 0
    %2609 = vmatprep.subr.bf16.mxu0 0
    %2610 = vmatpush1.bf16.msra.mxu0 0
    %2611 = vmatprep.subr.bf16.mxu0 0
    %2612 = vmatpush1.bf16.msra.mxu0 0
    %2613 = vmatprep.subr.bf16.mxu0 0
    %2614 = vmatpush1.bf16.msra.mxu0 0
    %2615 = vmatprep.mubr.bf16.mxu0 0
    %2616 = vmatmul.mubr.bf16.gmra.mrb[0].mxu0 %v2578
    %v2617 = vpop.f32.mrb[0].mxu0
    %v2618 = vadd.f32 0.0, %v2617
    %v2619 = vpop.f32.mrb[0].mxu0
    %v2620 = vpop.f32.mrb[0].mxu0
    %v2621 = vpop.f32.mrb[0].mxu0
    %2622 = vdwg.mxu0
    %v2623 = vpack.c.bf16 %v2618, %v2570
    %v2625 = vsel %vm243, %v2623, 0
    %v2628 = vsel %vm370, %v1489, 0
    %2630 = vmatprep.subr.bf16.mxu0 0
    %2631 = vmatpush1.bf16.msra.mxu0 %v2628
    %2632 = vmatprep.subr.bf16.mxu0 0
    %2633 = vmatpush1.bf16.msra.mxu0 0
    %2634 = vmatprep.subr.bf16.mxu0 0
    %2635 = vmatpush1.bf16.msra.mxu0 0
    %2636 = vmatprep.subr.bf16.mxu0 0
    %2637 = vmatpush1.bf16.msra.mxu0 0
    %2638 = vmatprep.subr.bf16.mxu0 0
    %2639 = vmatpush1.bf16.msra.mxu0 0
    %2640 = vmatprep.subr.bf16.mxu0 0
    %2641 = vmatpush1.bf16.msra.mxu0 0
    %2642 = vmatprep.subr.bf16.mxu0 0
    %2643 = vmatpush1.bf16.msra.mxu0 0
    %2644 = vmatprep.subr.bf16.mxu0 0
    %2645 = vmatpush1.bf16.msra.mxu0 0
    %2646 = vmatprep.subr.bf16.mxu0 0
    %2647 = vmatpush1.bf16.msra.mxu0 0
    %2648 = vmatprep.subr.bf16.mxu0 0
    %2649 = vmatpush1.bf16.msra.mxu0 0
    %2650 = vmatprep.subr.bf16.mxu0 0
    %2651 = vmatpush1.bf16.msra.mxu0 0
    %2652 = vmatprep.subr.bf16.mxu0 0
    %2653 = vmatpush1.bf16.msra.mxu0 0
    %2654 = vmatprep.subr.bf16.mxu0 0
    %2655 = vmatpush1.bf16.msra.mxu0 0
    %2656 = vmatprep.subr.bf16.mxu0 0
    %2657 = vmatpush1.bf16.msra.mxu0 0
    %2658 = vmatprep.subr.bf16.mxu0 0
    %2659 = vmatpush1.bf16.msra.mxu0 0
    %2660 = vmatprep.subr.bf16.mxu0 0
    %2661 = vmatpush1.bf16.msra.mxu0 0
    %2662 = vmatprep.mubr.bf16.mxu0 0
    %2663 = vmatmul.mubr.bf16.gmra.mrb[0].mxu0 %v2625
    %v2664 = vpop.f32.mrb[0].mxu0
    %v2665 = vadd.f32 0.0, %v2664
    %v2666 = vpop.f32.mrb[0].mxu0
    %v2667 = vpop.f32.mrb[0].mxu0
    %v2668 = vadd.f32 0.0, %v2667
    %v2669 = vpop.f32.mrb[0].mxu0
    %2670 = vdwg.mxu0
    %v2671 = vadd.f32 %v2399, %v2665
    %v2672 = vadd.f32 %v2400, %v2668
    %v2673 = vadd.f32 %v1474, %v2671
    %v2674 = vadd.f32 %v1475, %v2672
    %v2676 = vlaneseq
    %v2677 = vshrl.u32 %v2676, 7
    %v2678 = vsub.s32 0, %v2677
    %v2679 = vrot.slane %v1507, %v2678
    %v2681 = vadd.f32 %v2673, %v2679
    %v2682 = vadd.f32 %v2674, %v2679
    %v2683 = vpack.c.bf16 %v2682, %v2681
    %v2685 = vlaneseq
    %v2686 = vshrl.u32 %v2685, 7
    %v2687 = vsub.s32 0, %v2686
    %v2688 = vrot.slane %v1509, %v2687
    %v2694 = vunpack.c.l.b16 %v1491
    %v2695 = vunpack.c.l.b16 %v1492
    %v2696 = vunpack.c.l.b16 %v1493
    %v2697 = vunpack.c.l.b16 %v1494
    %v2698 = vpack.c.b16 %v2695, %v2694
    %v2699 = vpack.c.b16 %v2697, %v2696
    %v2703 = vsel %vm159, %v2683, 0
    %2705 = vmatprep.subr.bf16.mxu0 0
    %2706 = vmatpush1.bf16.msra.mxu0 %v2698
    %2707 = vmatprep.subr.bf16.mxu0 0
    %2708 = vmatpush1.bf16.msra.mxu0 %v2699
    %2709 = vmatprep.subr.bf16.mxu0 0
    %2710 = vmatpush1.bf16.msra.mxu0 0
    %2711 = vmatprep.subr.bf16.mxu0 0
    %2712 = vmatpush1.bf16.msra.mxu0 0
    %2713 = vmatprep.subr.bf16.mxu0 0
    %2714 = vmatpush1.bf16.msra.mxu0 0
    %2715 = vmatprep.subr.bf16.mxu0 0
    %2716 = vmatpush1.bf16.msra.mxu0 0
    %2717 = vmatprep.subr.bf16.mxu0 0
    %2718 = vmatpush1.bf16.msra.mxu0 0
    %2719 = vmatprep.subr.bf16.mxu0 0
    %2720 = vmatpush1.bf16.msra.mxu0 0
    %2721 = vmatprep.subr.bf16.mxu0 0
    %2722 = vmatpush1.bf16.msra.mxu0 0
    %2723 = vmatprep.subr.bf16.mxu0 0
    %2724 = vmatpush1.bf16.msra.mxu0 0
    %2725 = vmatprep.subr.bf16.mxu0 0
    %2726 = vmatpush1.bf16.msra.mxu0 0
    %2727 = vmatprep.subr.bf16.mxu0 0
    %2728 = vmatpush1.bf16.msra.mxu0 0
    %2729 = vmatprep.subr.bf16.mxu0 0
    %2730 = vmatpush1.bf16.msra.mxu0 0
    %2731 = vmatprep.subr.bf16.mxu0 0
    %2732 = vmatpush1.bf16.msra.mxu0 0
    %2733 = vmatprep.subr.bf16.mxu0 0
    %2734 = vmatpush1.bf16.msra.mxu0 0
    %2735 = vmatprep.subr.bf16.mxu0 0
    %2736 = vmatpush1.bf16.msra.mxu0 0
    %2737 = vmatprep.mubr.bf16.mxu0 0
    %2738 = vmatmul.mubr.bf16.gmra.mrb[0].mxu0 %v2703
    %v2739 = vpop.f32.mrb[0].mxu0
    %v2740 = vadd.f32 %v2688, %v2739
    %v2741 = vpop.f32.mrb[0].mxu0
    %v2742 = vpop.f32.mrb[0].mxu0
    %v2743 = vadd.f32 %v2688, %v2742
    %v2744 = vpop.f32.mrb[0].mxu0
    %2745 = vdwg.mxu0
    %v2746 = vmax.f32 %v2740, 0.0
    %v2747 = vmax.f32 %v2743, 0.0
    %v2748 = vpack.c.bf16 %v2747, %v2746
    %v2750 = vlaneseq
    %v2751 = vshrl.u32 %v2750, 7
    %v2752 = vsub.s32 0, %v2751
    %v2753 = vrot.slane %v1511, %v2752
    %v2763 = vunpack.c.l.b16 %v1496
    %v2764 = vunpack.c.l.b16 %v1497
    %v2765 = vunpack.c.l.b16 %v1498
    %v2766 = vunpack.c.l.b16 %v1499
    %v2767 = vunpack.c.l.b16 %v1500
    %v2768 = vunpack.c.l.b16 %v1501
    %v2769 = vunpack.c.l.b16 %v1502
    %v2770 = vunpack.c.l.b16 %v1503
    %v2771 = vpack.c.b16 %v2764, %v2763
    %v2772 = vpack.c.b16 %v2766, %v2765
    %v2773 = vpack.c.b16 %v2768, %v2767
    %v2774 = vpack.c.b16 %v2770, %v2769
    %v2780 = vsel %vm193, %v2748, 0
    %2782 = vmatprep.subr.bf16.mxu0 0
    %2783 = vmatpush1.bf16.msra.mxu0 %v2771
    %2784 = vmatprep.subr.bf16.mxu0 0
    %2785 = vmatpush1.bf16.msra.mxu0 %v2772
    %2786 = vmatprep.subr.bf16.mxu0 0
    %2787 = vmatpush1.bf16.msra.mxu0 %v2773
    %2788 = vmatprep.subr.bf16.mxu0 0
    %2789 = vmatpush1.bf16.msra.mxu0 %v2774
    %2790 = vmatprep.subr.bf16.mxu0 0
    %2791 = vmatpush1.bf16.msra.mxu0 0
    %2792 = vmatprep.subr.bf16.mxu0 0
    %2793 = vmatpush1.bf16.msra.mxu0 0
    %2794 = vmatprep.subr.bf16.mxu0 0
    %2795 = vmatpush1.bf16.msra.mxu0 0
    %2796 = vmatprep.subr.bf16.mxu0 0
    %2797 = vmatpush1.bf16.msra.mxu0 0
    %2798 = vmatprep.subr.bf16.mxu0 0
    %2799 = vmatpush1.bf16.msra.mxu0 0
    %2800 = vmatprep.subr.bf16.mxu0 0
    %2801 = vmatpush1.bf16.msra.mxu0 0
    %2802 = vmatprep.subr.bf16.mxu0 0
    %2803 = vmatpush1.bf16.msra.mxu0 0
    %2804 = vmatprep.subr.bf16.mxu0 0
    %2805 = vmatpush1.bf16.msra.mxu0 0
    %2806 = vmatprep.subr.bf16.mxu0 0
    %2807 = vmatpush1.bf16.msra.mxu0 0
    %2808 = vmatprep.subr.bf16.mxu0 0
    %2809 = vmatpush1.bf16.msra.mxu0 0
    %2810 = vmatprep.subr.bf16.mxu0 0
    %2811 = vmatpush1.bf16.msra.mxu0 0
    %2812 = vmatprep.subr.bf16.mxu0 0
    %2813 = vmatpush1.bf16.msra.mxu0 0
    %2814 = vmatprep.mubr.bf16.mxu0 0
    %2815 = vmatmul.mubr.bf16.gmra.mrb[0].mxu0 %v2780
    %v2816 = vpop.f32.mrb[0].mxu0
    %v2817 = vadd.f32 %v2753, %v2816
    %v2818 = vpop.f32.mrb[0].mxu0
    %v2819 = vpop.f32.mrb[0].mxu0
    %v2820 = vadd.f32 %v2753, %v2819
    %v2821 = vpop.f32.mrb[0].mxu0
    %2822 = vdwg.mxu0
    %v2823 = vadd.f32 %v2681, %v2817
    %v2824 = vadd.f32 %v2682, %v2820
    %2825 = vst.msk [vmem:[#allocation13] sm:$0xff] %vm159, %v2823
    %2826 = vst.msk [vmem:[#allocation13 + $0x8] sm:$0xff] %vm159, %v2824
    // Predicated region
    $region66: #{transformer_encoder.1} parent=1 // pred_check
      _
    $region67: #{transformer_encoder.1} parent=1 // pred_check_branch
      %2828 = sbr.rel (0) target = $region69
    $region68: #{transformer_encoder.1} parent=1 // pred_region
      %s2830 = ssub.s32 256, 256
      %2831 = vsyncadd [#allocation4], %s2830
      %s2832 = sshll.u32 [#allocation13], 4
      %s2833 = int_to_ptr.vmem [resolvable:$true] %s2832
      %2838 = dma.vmem_to_hbm [thread:$0]  %s2833, 256, %s10, [#allocation4], 128, 128, 8
    $region69: #{transformer_encoder.1} parent=1 // pred_fallthru
      _
    // Predicated region
    $region70: #{transformer_encoder.1} parent=1 // pred_check
      _
    $region71: #{transformer_encoder.1} parent=1 // pred_check_branch
      %2840 = sbr.rel (0) target = $region73
    $region72: #{transformer_encoder.1} parent=1 // pred_region
      %2841 = dma.done [#allocation4], 256
    $region73: #{transformer_encoder.1} parent=1 // pred_fallthru
      _
    %2842 = vsyncpa [#allocation3], 1
    %2843 = vsyncpa [#allocation6], 1
    %2844 = vsyncpa [#allocation9], 1
    %2845 = vsyncpa [#allocation12], 1
    %2846 = vsyncpa [#allocation4], 1

</llo_original>
